<compile_context>
chip_gen: v7x
topology: tpu7x:2x2x1
jax: 0.10.0
libtpu: 0.0.40
codegen_flags: <defaults>
</compile_context>

<pallas_src>
import functools

import jax
import jax.numpy as jnp
from jax.experimental import pallas as pl
from jax.experimental.pallas import tpu as pltpu

BN_EPS = 1e-5


def _round_up(n, m):
    return ((n + m - 1) // m) * m


def _cdiv(a, b):
    return (a + b - 1) // b


# ---------------------------------------------------------------------------
# Hardware-dependent config (tile budget, VMEM limit, VPU dtype, buffering)
# ---------------------------------------------------------------------------
def _hw_config():
    kind = ""
    try:
        kind = jax.devices()[0].device_kind.lower()
    except Exception:
        pass
    vmem_cap = None
    try:
        vmem_cap = int(pltpu.get_tpu_info().vmem_capacity_bytes)
    except Exception:
        vmem_cap = None
    if not vmem_cap:
        vmem_cap = (64 << 20) if "v7" in kind else (128 << 20)

    if vmem_cap >= (128 << 20):
        vmem_limit = 64 << 20                      # v5e / v6e: plenty of headroom
    else:
        vmem_limit = min(48 << 20, (3 * vmem_cap) // 4)   # v7x: stay well under 64 MiB/TC

    # bf16 affine+ReLU only where the VPU/EUP have native bf16 (v6e / v7x).
    use_bf16_affine = ("v6" in kind) or ("v7" in kind)
    # 3-deep input pipeline only on HBM-bound v6e mid layers.
    stream_buffers = 3 if "v6" in kind else None
    return vmem_limit, use_bf16_affine, stream_buffers, vmem_cap


def _choose_tiles(B, L, vmem_cap, c0):
    """Return (padded_L, lane_tile, num_lane_tiles)."""
    lt_max = 1024
    if vmem_cap >= (128 << 20) and c0 <= 512:
        lt_max = 2048                    # bigger tiles are free on 128-MiB chips
    if L <= 128:
        return L, L, 1                   # full-dim block; no padding needed
    lt = min(lt_max, _round_up(L, 128))
    if B == 1 and L >= 256:
        # Guarantee >= 2 lane tiles so the megacore split (v7x) has work per core.
        lt = min(lt, _round_up(_cdiv(L, 2), 128))
    lp = _round_up(L, lt)                # every block fully in-bounds
    return lp, lt, lp // lt


# ---------------------------------------------------------------------------
# Kernels
# ---------------------------------------------------------------------------
def _emit_stats(y_f32, stats_ref, *, tile_l, total_l, padded_l):
    """Per-channel sum / sum-of-squares for this tile; padded columns masked only on
    the last tile (gated by pl.when) so full tiles pay no extra VPU pass."""
    def write(y):
        stats_ref[:, 0:1] = jnp.sum(y, axis=1, keepdims=True)
        stats_ref[:, 1:2] = jnp.sum(y * y, axis=1, keepdims=True)

    if padded_l == total_l:
        write(y_f32)
    else:
        last = pl.program_id(1) == pl.num_programs(1) - 1
        valid = total_l - (padded_l - tile_l)     # valid columns in the last tile

        @pl.when(last)
        def _():
            col = jax.lax.broadcasted_iota(jnp.int32, (1, tile_l), 1)
            write(jnp.where(col < valid, y_f32, 0.0))

        @pl.when(jnp.logical_not(last))
        def _():
            write(y_f32)


def _first_layer_kernel(x_ref, w_ref, y_ref, stats_ref, *, tile_l, total_l, padded_l):
    # conv1 (bias dropped: exactly cancelled by training-mode BN mean subtraction).
    y = jnp.dot(w_ref[...], x_ref[...].astype(jnp.bfloat16),
                preferred_element_type=jnp.float32)
    y_ref[...] = y.astype(y_ref.dtype)
    _emit_stats(y, stats_ref, tile_l=tile_l, total_l=total_l, padded_l=padded_l)


def _mid_layer_kernel(y_in_ref, scale_ref, shift_ref, w_ref, y_ref, stats_ref, *,
                      tile_l, total_l, padded_l):
    # relu(bn_prev(y_prev)) with BN folded to one scale/shift, then conv_k.
    # scale/shift dtype (bf16 on v6e/v7x, f32 on v5e) selects the VPU path by promotion.
    h = jnp.maximum(y_in_ref[...] * scale_ref[...] + shift_ref[...], 0.0)
    y = jnp.dot(w_ref[...], h.astype(jnp.bfloat16),
                preferred_element_type=jnp.float32)
    y_ref[...] = y.astype(y_ref.dtype)
    _emit_stats(y, stats_ref, tile_l=tile_l, total_l=total_l, padded_l=padded_l)


def _last_layer_kernel(y_in_ref, scale_ref, shift_ref, w_ref, b_ref, o_ref):
    # relu(bn3(y3)) -> conv4 (+bias) -> tanh.  Output is lane-dense (3, L_tile).
    h = jnp.maximum(y_in_ref[...] * scale_ref[...] + shift_ref[...], 0.0)
    y = jnp.dot(w_ref[...], h.astype(jnp.bfloat16),
                preferred_element_type=jnp.float32)
    o_ref[...] = jnp.tanh(y + b_ref[...]).astype(o_ref.dtype)


# ---------------------------------------------------------------------------
# BN fold (tiny O(C) work, runs in XLA between pallas_calls)
# ---------------------------------------------------------------------------
def _fold_bn(partial_stats, gamma, beta, count, dtype):
    s = jnp.sum(partial_stats, axis=(0, 1))                  # (C, 2)
    mean = s[:, 0] / count
    var = jnp.maximum(s[:, 1] / count - mean * mean, 0.0)    # biased variance
    scale = gamma * jax.lax.rsqrt(var + BN_EPS)
    shift = beta - mean * scale
    return scale[:, None].astype(dtype), shift[:, None].astype(dtype)


# ---------------------------------------------------------------------------
# Wrapper
# ---------------------------------------------------------------------------
def pointgencon_forward(x_ncl, params, *, pipeline_hints=True):
    """x_ncl: (B, C0, L) float32 (torch NCL). Returns (B, 3, L) float32."""
    B, C0, L = x_ncl.shape
    C1, C2, C3 = C0 // 2, C0 // 4, 3
    (w1, g1, be1, w2, g2, be2, w3, g3, be3, w4, b4) = params

    vmem_limit, use_bf16_affine, stream_bufs, vmem_cap = _hw_config()
    Lp, Lt, nlt = _choose_tiles(B, L, vmem_cap, C0)
    if Lp != L:
        x_ncl = jnp.pad(x_ncl, ((0, 0), (0, 0), (0, Lp - L)))
    n_rows = float(B * L)                         # BN statistics count (batch * length)
    affine_dtype = jnp.bfloat16 if use_bf16_affine else jnp.float32

    # bf16 weights for the MXU (f32 accumulation via preferred_element_type).
    w1b, w2b, w3b, w4b = (w.astype(jnp.bfloat16) for w in (w1, w2, w3, w4))

    if not pipeline_hints:
        stream_bufs = None
    res_bufs = 1 if pipeline_hints else None      # constants need no double buffer

    def _bspec(shape, index_map, buffers):
        if buffers is None:
            return pl.BlockSpec(shape, index_map)
        return pl.BlockSpec(shape, index_map, pipeline_mode=pl.Buffered(buffers))

    def act_spec(c, buffers=None):   # streamed (B, c, Lp), tiled over (batch, L-tile)
        return _bspec((None, c, Lt), lambda b, lt: (b, 0, lt), buffers)

    def resident(shape):             # weights / scale / shift / bias: stay in VMEM
        return _bspec(shape, lambda b, lt: (0, 0), res_bufs)

    cparams = pltpu.CompilerParams(
        dimension_semantics=("parallel", "parallel"),  # both axes written once
        vmem_limit_bytes=vmem_limit)

    def conv_stats_call(kernel, args, in_specs, c_out, flops, bytes_accessed):
        out_shapes = (
            jax.ShapeDtypeStruct((B, c_out, Lp), jnp.bfloat16),       # pre-BN conv out
            jax.ShapeDtypeStruct((B, nlt, c_out, 2), jnp.float32),    # per-tile stats
        )
        out_specs = (
            pl.BlockSpec((None, c_out, Lt), lambda b, lt: (b, 0, lt)),
            pl.BlockSpec((None, None, c_out, 2), lambda b, lt: (b, lt, 0, 0)),
        )
        return pl.pallas_call(
            kernel,
            out_shape=out_shapes,
            grid=(B, nlt),
            in_specs=in_specs,
            out_specs=out_specs,
            compiler_params=cparams,
            cost_estimate=pl.CostEstimate(flops=int(flops), transcendentals=0,
                                          bytes_accessed=int(bytes_accessed)),
        )(*args)

    kargs = dict(tile_l=Lt, total_l=L, padded_l=Lp)
    k1 = functools.partial(_first_layer_kernel, **kargs)
    kmid = functools.partial(_mid_layer_kernel, **kargs)

    # ---- layer 1: conv1 + stats -------------------------------------------------
    y1, p1 = conv_stats_call(
        k1, (x_ncl, w1b),
        in_specs=[act_spec(C0), resident((C0, C0))],
        c_out=C0,
        flops=2 * B * Lp * C0 * C0,
        bytes_accessed=B * Lp * C0 * 4 + w1b.size * 2 + B * Lp * C0 * 2)
    scale1, shift1 = _fold_bn(p1, g1, be1, n_rows, affine_dtype)

    # ---- layer 2: relu(bn1) -> conv2 + stats ------------------------------------
    y2, p2 = conv_stats_call(
        kmid, (y1, scale1, shift1, w2b),
        in_specs=[act_spec(C0, stream_bufs), resident((C0, 1)), resident((C0, 1)),
                  resident((C1, C0))],
        c_out=C1,
        flops=2 * B * Lp * C0 * C1,
        bytes_accessed=B * Lp * C0 * 2 + w2b.size * 2 + B * Lp * C1 * 2)
    scale2, shift2 = _fold_bn(p2, g2, be2, n_rows, affine_dtype)

    # ---- layer 3: relu(bn2) -> conv3 + stats ------------------------------------
    y3, p3 = conv_stats_call(
        kmid, (y2, scale2, shift2, w3b),
        in_specs=[act_spec(C1, stream_bufs), resident((C1, 1)), resident((C1, 1)),
                  resident((C2, C1))],
        c_out=C2,
        flops=2 * B * Lp * C1 * C2,
        bytes_accessed=B * Lp * C1 * 2 + w3b.size * 2 + B * Lp * C2 * 2)
    scale3, shift3 = _fold_bn(p3, g3, be3, n_rows, affine_dtype)

    # ---- layer 4: relu(bn3) -> conv4 + bias -> tanh ------------------------------
    out = pl.pallas_call(
        _last_layer_kernel,
        out_shape=jax.ShapeDtypeStruct((B, C3, Lp), jnp.float32),
        grid=(B, nlt),
        in_specs=[act_spec(C2, stream_bufs), resident((C2, 1)), resident((C2, 1)),
                  resident((C3, C2)), resident((C3, 1))],
        out_specs=pl.BlockSpec((None, C3, Lt), lambda b, lt: (b, 0, lt)),
        compiler_params=cparams,
        cost_estimate=pl.CostEstimate(
            flops=int(2 * B * Lp * C2 * C3),
            transcendentals=int(B * Lp * C3),
            bytes_accessed=int(B * Lp * C2 * 2 + B * Lp * C3 * 4)),
    )(y3, scale3, shift3, w4b, b4)

    if Lp != L:
        out = out[:, :, :L]
    return out


def init_params(key, bottleneck_size):
    """Synthetic parameters with the same shapes as the PyTorch module.
    Conv weights are (C_out, C_in) like torch Conv1d(k=1).  Conv biases for layers
    1-3 are omitted: a per-channel constant is exactly cancelled by training-mode BN."""
    C0 = bottleneck_size
    C1, C2, C3 = C0 // 2, C0 // 4, 3
    dims = [(C0, C0), (C1, C0), (C2, C1), (C3, C2)]  # (C_out, C_in) per layer
    keys = iter(jax.random.split(key, 12))
    params = []
    for li, (cout, cin) in enumerate(dims):
        w = 0.1 * jax.random.normal(next(keys), (cout, cin), jnp.float32)
        params.append(w)
        if li < 3:  # bn1..bn3 gamma/beta
            g = 1.0 + 0.1 * jax.random.normal(next(keys), (cout,), jnp.float32)
            be = 0.1 * jax.random.normal(next(keys), (cout,), jnp.float32)
            params += [g, be]
        else:       # conv4 bias (kept: no BN after conv4)
            b = 0.1 * jax.random.normal(next(keys), (cout, 1), jnp.float32)
            params.append(b)
    return tuple(params)


if __name__ == "__main__":
    bottleneck_size = 32   # small demo; real AtlasNet uses 1024 (design scales via L tiling)
    B, L = 2, 16           # batch, number of generated points

    key = jax.random.PRNGKey(0)
    k_x, k_p = jax.random.split(key)
    x = jax.random.normal(k_x, (B, bottleneck_size, L), jnp.float32)
    params = init_params(k_p, bottleneck_size)

    try:
        fwd = jax.jit(functools.partial(pointgencon_forward, pipeline_hints=True))
        out = jax.block_until_ready(fwd(x, params))
    except Exception:
        # Fallback if this Pallas build rejects pipeline_mode=pl.Buffered hints:
        # identical math, default 2-deep pipelining.
        fwd = jax.jit(functools.partial(pointgencon_forward, pipeline_hints=False))
        out = jax.block_until_ready(fwd(x, params))

    assert out.shape == (B, 3, L), out.shape
    assert bool(jnp.all(jnp.isfinite(out)))
    print("KERNEL_OK")
</pallas_src>

<mosaic_0001>
module attributes {stable_mosaic.version = 11 : i64} {
  func.func @_first_layer_kernel(%arg0: i32, %arg1: i32, %arg2: memref<1x32x16xf32, #tpu.memory_space<vmem>>, %arg3: memref<32x32xbf16, #tpu.memory_space<vmem>>, %arg4: memref<1x32x16xbf16, #tpu.memory_space<vmem>>, %arg5: memref<1x1x32x2xf32, #tpu.memory_space<vmem>>) attributes {dimension_semantics = [#tpu.dimension_semantics<parallel>, #tpu.dimension_semantics<parallel>], iteration_bounds = array<i64: 2, 1>, scalar_prefetch = 0 : i64, scratch_operands = 0 : i64, tpu.core_type = #tpu.core_type<tc>, window_params = [{transform_indices = @transform_0, window_bounds = array<i64: 1, 32, 16>}, {pipeline_mode = #tpu.pipeline_mode<synchronous>, transform_indices = @transform_1, window_bounds = array<i64: 32, 32>}, {transform_indices = @transform_2, window_bounds = array<i64: 1, 32, 16>}, {transform_indices = @transform_3, window_bounds = array<i64: 1, 1, 32, 2>}]} {
    %c0 = arith.constant 0 : index
    %c0_0 = arith.constant 0 : index
    %0 = vector.load %arg3[%c0, %c0_0] : memref<32x32xbf16, #tpu.memory_space<vmem>>, vector<32x32xbf16>
    %c0_1 = arith.constant 0 : index
    %c0_2 = arith.constant 0 : index
    %c0_3 = arith.constant 0 : index
    %1 = vector.load %arg2[%c0_1, %c0_2, %c0_3] : memref<1x32x16xf32, #tpu.memory_space<vmem>>, vector<1x32x16xf32>
    %2 = vector.shape_cast %1 : vector<1x32x16xf32> to vector<32x16xf32>
    %3 = arith.truncf %2 : vector<32x16xf32> to vector<32x16xbf16>
    %cst = arith.constant dense<0.000000e+00> : vector<32x16xf32>
    %4 = tpu.matmul %0, %3, %cst {dimension_numbers = #tpu.dot_dimension_numbers<[1], [0], [0], [1], [0, 0, 1, 1], [], []>} : vector<32x32xbf16>, vector<32x16xbf16>, vector<32x16xf32> -> vector<32x16xf32>
    %5 = arith.truncf %4 : vector<32x16xf32> to vector<32x16xbf16>
    %c0_4 = arith.constant 0 : index
    %c0_5 = arith.constant 0 : index
    %c0_6 = arith.constant 0 : index
    %6 = vector.load %arg4[%c0_4, %c0_5, %c0_6] : memref<1x32x16xbf16, #tpu.memory_space<vmem>>, vector<1x32x16xbf16>
    %7 = vector.shape_cast %6 : vector<1x32x16xbf16> to vector<32x16xbf16>
    %8 = vector.shape_cast %5 : vector<32x16xbf16> to vector<1x32x16xbf16>
    tpu.vector_store %arg4[%c0_4, %c0_5, %c0_6], %8 {strides = array<i32>} : memref<1x32x16xbf16, #tpu.memory_space<vmem>>, vector<1x32x16xbf16>,
    %cst_7 = arith.constant dense<0.000000e+00> : vector<32xf32>
    %9 = vector.multi_reduction <add>, %4, %cst_7 [1] : vector<32x16xf32> to vector<32xf32>
    %10 = vector.shape_cast %9 : vector<32xf32> to vector<32x1xf32>
    %c0_8 = arith.constant 0 : index
    %c0_9 = arith.constant 0 : index
    %c0_10 = arith.constant 0 : index
    %c0_11 = arith.constant 0 : index
    %11 = vector.load %arg5[%c0_8, %c0_9, %c0_10, %c0_11] : memref<1x1x32x2xf32, #tpu.memory_space<vmem>>, vector<1x1x32x1xf32>
    %12 = vector.shape_cast %11 : vector<1x1x32x1xf32> to vector<32x1xf32>
    %13 = vector.shape_cast %10 : vector<32x1xf32> to vector<1x1x32x1xf32>
    tpu.vector_store %arg5[%c0_8, %c0_9, %c0_10, %c0_11], %13 {strides = array<i32>} : memref<1x1x32x2xf32, #tpu.memory_space<vmem>>, vector<1x1x32x1xf32>,
    %14 = arith.mulf %4, %4 : vector<32x16xf32>
    %cst_12 = arith.constant dense<0.000000e+00> : vector<32xf32>
    %15 = vector.multi_reduction <add>, %14, %cst_12 [1] : vector<32x16xf32> to vector<32xf32>
    %16 = vector.shape_cast %15 : vector<32xf32> to vector<32x1xf32>
    %c0_13 = arith.constant 0 : index
    %c0_14 = arith.constant 0 : index
    %c0_15 = arith.constant 0 : index
    %c1 = arith.constant 1 : index
    %17 = vector.load %arg5[%c0_13, %c0_14, %c0_15, %c1] : memref<1x1x32x2xf32, #tpu.memory_space<vmem>>, vector<1x1x32x1xf32>
    %18 = vector.shape_cast %17 : vector<1x1x32x1xf32> to vector<32x1xf32>
    %19 = vector.shape_cast %16 : vector<32x1xf32> to vector<1x1x32x1xf32>
    tpu.vector_store %arg5[%c0_13, %c0_14, %c0_15, %c1], %19 {strides = array<i32>} : memref<1x1x32x2xf32, #tpu.memory_space<vmem>>, vector<1x1x32x1xf32>,
    return
  }
  func.func @transform_0(%arg0: i32, %arg1: i32) -> (i32, i32, i32) {
    %c0_i32 = arith.constant 0 : i32
    %c0_i32_0 = arith.constant 0 : i32
    return %arg0, %c0_i32, %arg1 : i32, i32, i32
  }
  func.func @transform_1(%arg0: i32, %arg1: i32) -> (i32, i32) {
    %c0_i32 = arith.constant 0 : i32
    %c0_i32_0 = arith.constant 0 : i32
    %c0_i32_1 = arith.constant 0 : i32
    return %c0_i32, %c0_i32_0 : i32, i32
  }
  func.func @transform_2(%arg0: i32, %arg1: i32) -> (i32, i32, i32) {
    %c0_i32 = arith.constant 0 : i32
    %c0_i32_0 = arith.constant 0 : i32
    return %arg0, %c0_i32, %arg1 : i32, i32, i32
  }
  func.func @transform_3(%arg0: i32, %arg1: i32) -> (i32, i32, i32, i32) {
    %c0_i32 = arith.constant 0 : i32
    %c0_i32_0 = arith.constant 0 : i32
    %c0_i32_1 = arith.constant 0 : i32
    return %arg0, %arg1, %c0_i32, %c0_i32_0 : i32, i32, i32, i32
  }
}

module attributes {stable_mosaic.version = 11 : i64} {
  func.func @_mid_layer_kernel(%arg0: i32, %arg1: i32, %arg2: memref<1x32x16xbf16, #tpu.memory_space<vmem>>, %arg3: memref<32x1xf32, #tpu.memory_space<vmem>>, %arg4: memref<32x1xf32, #tpu.memory_space<vmem>>, %arg5: memref<16x32xbf16, #tpu.memory_space<vmem>>, %arg6: memref<1x16x16xbf16, #tpu.memory_space<vmem>>, %arg7: memref<1x1x16x2xf32, #tpu.memory_space<vmem>>) attributes {dimension_semantics = [#tpu.dimension_semantics<parallel>, #tpu.dimension_semantics<parallel>], iteration_bounds = array<i64: 2, 1>, scalar_prefetch = 0 : i64, scratch_operands = 0 : i64, tpu.core_type = #tpu.core_type<tc>, window_params = [{transform_indices = @transform_0, window_bounds = array<i64: 1, 32, 16>}, {pipeline_mode = #tpu.pipeline_mode<synchronous>, transform_indices = @transform_1, window_bounds = array<i64: 32, 1>}, {pipeline_mode = #tpu.pipeline_mode<synchronous>, transform_indices = @transform_2, window_bounds = array<i64: 32, 1>}, {pipeline_mode = #tpu.pipeline_mode<synchronous>, transform_indices = @transform_3, window_bounds = array<i64: 16, 32>}, {transform_indices = @transform_4, window_bounds = array<i64: 1, 16, 16>}, {transform_indices = @transform_5, window_bounds = array<i64: 1, 1, 16, 2>}]} {
    %c0 = arith.constant 0 : index
    %c0_0 = arith.constant 0 : index
    %c0_1 = arith.constant 0 : index
    %0 = vector.load %arg2[%c0, %c0_0, %c0_1] : memref<1x32x16xbf16, #tpu.memory_space<vmem>>, vector<1x32x16xbf16>
    %1 = vector.shape_cast %0 : vector<1x32x16xbf16> to vector<32x16xbf16>
    %c0_2 = arith.constant 0 : index
    %c0_3 = arith.constant 0 : index
    %2 = vector.load %arg3[%c0_2, %c0_3] : memref<32x1xf32, #tpu.memory_space<vmem>>, vector<32x1xf32>
    %3 = arith.extf %1 : vector<32x16xbf16> to vector<32x16xf32>
    %4 = vector.broadcast %2 : vector<32x1xf32> to vector<32x16xf32>
    %5 = arith.mulf %3, %4 : vector<32x16xf32>
    %c0_4 = arith.constant 0 : index
    %c0_5 = arith.constant 0 : index
    %6 = vector.load %arg4[%c0_4, %c0_5] : memref<32x1xf32, #tpu.memory_space<vmem>>, vector<32x1xf32>
    %7 = vector.broadcast %6 : vector<32x1xf32> to vector<32x16xf32>
    %8 = arith.addf %5, %7 : vector<32x16xf32>
    %cst = arith.constant 0.000000e+00 : f32
    %9 = vector.broadcast %cst : f32 to vector<32x16xf32>
    %10 = arith.maximumf %8, %9 : vector<32x16xf32>
    %c0_6 = arith.constant 0 : index
    %c0_7 = arith.constant 0 : index
    %11 = vector.load %arg5[%c0_6, %c0_7] : memref<16x32xbf16, #tpu.memory_space<vmem>>, vector<16x32xbf16>
    %12 = arith.truncf %10 : vector<32x16xf32> to vector<32x16xbf16>
    %cst_8 = arith.constant dense<0.000000e+00> : vector<16x16xf32>
    %13 = tpu.matmul %11, %12, %cst_8 {dimension_numbers = #tpu.dot_dimension_numbers<[1], [0], [0], [1], [0, 0, 1, 1], [], []>} : vector<16x32xbf16>, vector<32x16xbf16>, vector<16x16xf32> -> vector<16x16xf32>
    %14 = arith.truncf %13 : vector<16x16xf32> to vector<16x16xbf16>
    %c0_9 = arith.constant 0 : index
    %c0_10 = arith.constant 0 : index
    %c0_11 = arith.constant 0 : index
    %15 = vector.load %arg6[%c0_9, %c0_10, %c0_11] : memref<1x16x16xbf16, #tpu.memory_space<vmem>>, vector<1x16x16xbf16>
    %16 = vector.shape_cast %15 : vector<1x16x16xbf16> to vector<16x16xbf16>
    %17 = vector.shape_cast %14 : vector<16x16xbf16> to vector<1x16x16xbf16>
    tpu.vector_store %arg6[%c0_9, %c0_10, %c0_11], %17 {strides = array<i32>} : memref<1x16x16xbf16, #tpu.memory_space<vmem>>, vector<1x16x16xbf16>,
    %cst_12 = arith.constant dense<0.000000e+00> : vector<16xf32>
    %18 = vector.multi_reduction <add>, %13, %cst_12 [1] : vector<16x16xf32> to vector<16xf32>
    %19 = vector.shape_cast %18 : vector<16xf32> to vector<16x1xf32>
    %c0_13 = arith.constant 0 : index
    %c0_14 = arith.constant 0 : index
    %c0_15 = arith.constant 0 : index
    %c0_16 = arith.constant 0 : index
    %20 = vector.load %arg7[%c0_13, %c0_14, %c0_15, %c0_16] : memref<1x1x16x2xf32, #tpu.memory_space<vmem>>, vector<1x1x16x1xf32>
    %21 = vector.shape_cast %20 : vector<1x1x16x1xf32> to vector<16x1xf32>
    %22 = vector.shape_cast %19 : vector<16x1xf32> to vector<1x1x16x1xf32>
    tpu.vector_store %arg7[%c0_13, %c0_14, %c0_15, %c0_16], %22 {strides = array<i32>} : memref<1x1x16x2xf32, #tpu.memory_space<vmem>>, vector<1x1x16x1xf32>,
    %23 = arith.mulf %13, %13 : vector<16x16xf32>
    %cst_17 = arith.constant dense<0.000000e+00> : vector<16xf32>
    %24 = vector.multi_reduction <add>, %23, %cst_17 [1] : vector<16x16xf32> to vector<16xf32>
    %25 = vector.shape_cast %24 : vector<16xf32> to vector<16x1xf32>
    %c0_18 = arith.constant 0 : index
    %c0_19 = arith.constant 0 : index
    %c0_20 = arith.constant 0 : index
    %c1 = arith.constant 1 : index
    %26 = vector.load %arg7[%c0_18, %c0_19, %c0_20, %c1] : memref<1x1x16x2xf32, #tpu.memory_space<vmem>>, vector<1x1x16x1xf32>
    %27 = vector.shape_cast %26 : vector<1x1x16x1xf32> to vector<16x1xf32>
    %28 = vector.shape_cast %25 : vector<16x1xf32> to vector<1x1x16x1xf32>
    tpu.vector_store %arg7[%c0_18, %c0_19, %c0_20, %c1], %28 {strides = array<i32>} : memref<1x1x16x2xf32, #tpu.memory_space<vmem>>, vector<1x1x16x1xf32>,
    return
  }
  func.func @transform_0(%arg0: i32, %arg1: i32) -> (i32, i32, i32) {
    %c0_i32 = arith.constant 0 : i32
    %c0_i32_0 = arith.constant 0 : i32
    return %arg0, %c0_i32, %arg1 : i32, i32, i32
  }
  func.func @transform_1(%arg0: i32, %arg1: i32) -> (i32, i32) {
    %c0_i32 = arith.constant 0 : i32
    %c0_i32_0 = arith.constant 0 : i32
    %c0_i32_1 = arith.constant 0 : i32
    return %c0_i32, %c0_i32_0 : i32, i32
  }
  func.func @transform_2(%arg0: i32, %arg1: i32) -> (i32, i32) {
    %c0_i32 = arith.constant 0 : i32
    %c0_i32_0 = arith.constant 0 : i32
    %c0_i32_1 = arith.constant 0 : i32
    return %c0_i32, %c0_i32_0 : i32, i32
  }
  func.func @transform_3(%arg0: i32, %arg1: i32) -> (i32, i32) {
    %c0_i32 = arith.constant 0 : i32
    %c0_i32_0 = arith.constant 0 : i32
    %c0_i32_1 = arith.constant 0 : i32
    return %c0_i32, %c0_i32_0 : i32, i32
  }
  func.func @transform_4(%arg0: i32, %arg1: i32) -> (i32, i32, i32) {
    %c0_i32 = arith.constant 0 : i32
    %c0_i32_0 = arith.constant 0 : i32
    return %arg0, %c0_i32, %arg1 : i32, i32, i32
  }
  func.func @transform_5(%arg0: i32, %arg1: i32) -> (i32, i32, i32, i32) {
    %c0_i32 = arith.constant 0 : i32
    %c0_i32_0 = arith.constant 0 : i32
    %c0_i32_1 = arith.constant 0 : i32
    return %arg0, %arg1, %c0_i32, %c0_i32_0 : i32, i32, i32, i32
  }
}

module attributes {stable_mosaic.version = 11 : i64} {
  func.func @_mid_layer_kernel(%arg0: i32, %arg1: i32, %arg2: memref<1x16x16xbf16, #tpu.memory_space<vmem>>, %arg3: memref<16x1xf32, #tpu.memory_space<vmem>>, %arg4: memref<16x1xf32, #tpu.memory_space<vmem>>, %arg5: memref<8x16xbf16, #tpu.memory_space<vmem>>, %arg6: memref<1x8x16xbf16, #tpu.memory_space<vmem>>, %arg7: memref<1x1x8x2xf32, #tpu.memory_space<vmem>>) attributes {dimension_semantics = [#tpu.dimension_semantics<parallel>, #tpu.dimension_semantics<parallel>], iteration_bounds = array<i64: 2, 1>, scalar_prefetch = 0 : i64, scratch_operands = 0 : i64, tpu.core_type = #tpu.core_type<tc>, window_params = [{transform_indices = @transform_0, window_bounds = array<i64: 1, 16, 16>}, {pipeline_mode = #tpu.pipeline_mode<synchronous>, transform_indices = @transform_1, window_bounds = array<i64: 16, 1>}, {pipeline_mode = #tpu.pipeline_mode<synchronous>, transform_indices = @transform_2, window_bounds = array<i64: 16, 1>}, {pipeline_mode = #tpu.pipeline_mode<synchronous>, transform_indices = @transform_3, window_bounds = array<i64: 8, 16>}, {transform_indices = @transform_4, window_bounds = array<i64: 1, 8, 16>}, {transform_indices = @transform_5, window_bounds = array<i64: 1, 1, 8, 2>}]} {
    %c0 = arith.constant 0 : index
    %c0_0 = arith.constant 0 : index
    %c0_1 = arith.constant 0 : index
    %0 = vector.load %arg2[%c0, %c0_0, %c0_1] : memref<1x16x16xbf16, #tpu.memory_space<vmem>>, vector<1x16x16xbf16>
    %1 = vector.shape_cast %0 : vector<1x16x16xbf16> to vector<16x16xbf16>
    %c0_2 = arith.constant 0 : index
    %c0_3 = arith.constant 0 : index
    %2 = vector.load %arg3[%c0_2, %c0_3] : memref<16x1xf32, #tpu.memory_space<vmem>>, vector<16x1xf32>
    %3 = arith.extf %1 : vector<16x16xbf16> to vector<16x16xf32>
    %4 = vector.broadcast %2 : vector<16x1xf32> to vector<16x16xf32>
    %5 = arith.mulf %3, %4 : vector<16x16xf32>
    %c0_4 = arith.constant 0 : index
    %c0_5 = arith.constant 0 : index
    %6 = vector.load %arg4[%c0_4, %c0_5] : memref<16x1xf32, #tpu.memory_space<vmem>>, vector<16x1xf32>
    %7 = vector.broadcast %6 : vector<16x1xf32> to vector<16x16xf32>
    %8 = arith.addf %5, %7 : vector<16x16xf32>
    %cst = arith.constant 0.000000e+00 : f32
    %9 = vector.broadcast %cst : f32 to vector<16x16xf32>
    %10 = arith.maximumf %8, %9 : vector<16x16xf32>
    %c0_6 = arith.constant 0 : index
    %c0_7 = arith.constant 0 : index
    %11 = vector.load %arg5[%c0_6, %c0_7] : memref<8x16xbf16, #tpu.memory_space<vmem>>, vector<8x16xbf16>
    %12 = arith.truncf %10 : vector<16x16xf32> to vector<16x16xbf16>
    %cst_8 = arith.constant dense<0.000000e+00> : vector<8x16xf32>
    %13 = tpu.matmul %11, %12, %cst_8 {dimension_numbers = #tpu.dot_dimension_numbers<[1], [0], [0], [1], [0, 0, 1, 1], [], []>} : vector<8x16xbf16>, vector<16x16xbf16>, vector<8x16xf32> -> vector<8x16xf32>
    %14 = arith.truncf %13 : vector<8x16xf32> to vector<8x16xbf16>
    %c0_9 = arith.constant 0 : index
    %c0_10 = arith.constant 0 : index
    %c0_11 = arith.constant 0 : index
    %15 = vector.load %arg6[%c0_9, %c0_10, %c0_11] : memref<1x8x16xbf16, #tpu.memory_space<vmem>>, vector<1x8x16xbf16>
    %16 = vector.shape_cast %15 : vector<1x8x16xbf16> to vector<8x16xbf16>
    %17 = vector.shape_cast %14 : vector<8x16xbf16> to vector<1x8x16xbf16>
    tpu.vector_store %arg6[%c0_9, %c0_10, %c0_11], %17 {strides = array<i32>} : memref<1x8x16xbf16, #tpu.memory_space<vmem>>, vector<1x8x16xbf16>,
    %cst_12 = arith.constant dense<0.000000e+00> : vector<8xf32>
    %18 = vector.multi_reduction <add>, %13, %cst_12 [1] : vector<8x16xf32> to vector<8xf32>
    %19 = vector.shape_cast %18 : vector<8xf32> to vector<8x1xf32>
    %c0_13 = arith.constant 0 : index
    %c0_14 = arith.constant 0 : index
    %c0_15 = arith.constant 0 : index
    %c0_16 = arith.constant 0 : index
    %20 = vector.load %arg7[%c0_13, %c0_14, %c0_15, %c0_16] : memref<1x1x8x2xf32, #tpu.memory_space<vmem>>, vector<1x1x8x1xf32>
    %21 = vector.shape_cast %20 : vector<1x1x8x1xf32> to vector<8x1xf32>
    %22 = vector.shape_cast %19 : vector<8x1xf32> to vector<1x1x8x1xf32>
    tpu.vector_store %arg7[%c0_13, %c0_14, %c0_15, %c0_16], %22 {strides = array<i32>} : memref<1x1x8x2xf32, #tpu.memory_space<vmem>>, vector<1x1x8x1xf32>,
    %23 = arith.mulf %13, %13 : vector<8x16xf32>
    %cst_17 = arith.constant dense<0.000000e+00> : vector<8xf32>
    %24 = vector.multi_reduction <add>, %23, %cst_17 [1] : vector<8x16xf32> to vector<8xf32>
    %25 = vector.shape_cast %24 : vector<8xf32> to vector<8x1xf32>
    %c0_18 = arith.constant 0 : index
    %c0_19 = arith.constant 0 : index
    %c0_20 = arith.constant 0 : index
    %c1 = arith.constant 1 : index
    %26 = vector.load %arg7[%c0_18, %c0_19, %c0_20, %c1] : memref<1x1x8x2xf32, #tpu.memory_space<vmem>>, vector<1x1x8x1xf32>
    %27 = vector.shape_cast %26 : vector<1x1x8x1xf32> to vector<8x1xf32>
    %28 = vector.shape_cast %25 : vector<8x1xf32> to vector<1x1x8x1xf32>
    tpu.vector_store %arg7[%c0_18, %c0_19, %c0_20, %c1], %28 {strides = array<i32>} : memref<1x1x8x2xf32, #tpu.memory_space<vmem>>, vector<1x1x8x1xf32>,
    return
  }
  func.func @transform_0(%arg0: i32, %arg1: i32) -> (i32, i32, i32) {
    %c0_i32 = arith.constant 0 : i32
    %c0_i32_0 = arith.constant 0 : i32
    return %arg0, %c0_i32, %arg1 : i32, i32, i32
  }
  func.func @transform_1(%arg0: i32, %arg1: i32) -> (i32, i32) {
    %c0_i32 = arith.constant 0 : i32
    %c0_i32_0 = arith.constant 0 : i32
    %c0_i32_1 = arith.constant 0 : i32
    return %c0_i32, %c0_i32_0 : i32, i32
  }
  func.func @transform_2(%arg0: i32, %arg1: i32) -> (i32, i32) {
    %c0_i32 = arith.constant 0 : i32
    %c0_i32_0 = arith.constant 0 : i32
    %c0_i32_1 = arith.constant 0 : i32
    return %c0_i32, %c0_i32_0 : i32, i32
  }
  func.func @transform_3(%arg0: i32, %arg1: i32) -> (i32, i32) {
    %c0_i32 = arith.constant 0 : i32
    %c0_i32_0 = arith.constant 0 : i32
    %c0_i32_1 = arith.constant 0 : i32
    return %c0_i32, %c0_i32_0 : i32, i32
  }
  func.func @transform_4(%arg0: i32, %arg1: i32) -> (i32, i32, i32) {
    %c0_i32 = arith.constant 0 : i32
    %c0_i32_0 = arith.constant 0 : i32
    return %arg0, %c0_i32, %arg1 : i32, i32, i32
  }
  func.func @transform_5(%arg0: i32, %arg1: i32) -> (i32, i32, i32, i32) {
    %c0_i32 = arith.constant 0 : i32
    %c0_i32_0 = arith.constant 0 : i32
    %c0_i32_1 = arith.constant 0 : i32
    return %arg0, %arg1, %c0_i32, %c0_i32_0 : i32, i32, i32, i32
  }
}

module attributes {stable_mosaic.version = 11 : i64} {
  func.func @_last_layer_kernel(%arg0: i32, %arg1: i32, %arg2: memref<1x8x16xbf16, #tpu.memory_space<vmem>>, %arg3: memref<8x1xf32, #tpu.memory_space<vmem>>, %arg4: memref<8x1xf32, #tpu.memory_space<vmem>>, %arg5: memref<3x8xbf16, #tpu.memory_space<vmem>>, %arg6: memref<3x1xf32, #tpu.memory_space<vmem>>, %arg7: memref<1x3x16xf32, #tpu.memory_space<vmem>>) attributes {dimension_semantics = [#tpu.dimension_semantics<parallel>, #tpu.dimension_semantics<parallel>], iteration_bounds = array<i64: 2, 1>, scalar_prefetch = 0 : i64, scratch_operands = 0 : i64, tpu.core_type = #tpu.core_type<tc>, window_params = [{transform_indices = @transform_0, window_bounds = array<i64: 1, 8, 16>}, {pipeline_mode = #tpu.pipeline_mode<synchronous>, transform_indices = @transform_1, window_bounds = array<i64: 8, 1>}, {pipeline_mode = #tpu.pipeline_mode<synchronous>, transform_indices = @transform_2, window_bounds = array<i64: 8, 1>}, {pipeline_mode = #tpu.pipeline_mode<synchronous>, transform_indices = @transform_3, window_bounds = array<i64: 3, 8>}, {pipeline_mode = #tpu.pipeline_mode<synchronous>, transform_indices = @transform_4, window_bounds = array<i64: 3, 1>}, {transform_indices = @transform_5, window_bounds = array<i64: 1, 3, 16>}]} {
    %c0 = arith.constant 0 : index
    %c0_0 = arith.constant 0 : index
    %c0_1 = arith.constant 0 : index
    %0 = vector.load %arg2[%c0, %c0_0, %c0_1] : memref<1x8x16xbf16, #tpu.memory_space<vmem>>, vector<1x8x16xbf16>
    %1 = vector.shape_cast %0 : vector<1x8x16xbf16> to vector<8x16xbf16>
    %c0_2 = arith.constant 0 : index
    %c0_3 = arith.constant 0 : index
    %2 = vector.load %arg3[%c0_2, %c0_3] : memref<8x1xf32, #tpu.memory_space<vmem>>, vector<8x1xf32>
    %3 = arith.extf %1 : vector<8x16xbf16> to vector<8x16xf32>
    %4 = vector.broadcast %2 : vector<8x1xf32> to vector<8x16xf32>
    %5 = arith.mulf %3, %4 : vector<8x16xf32>
    %c0_4 = arith.constant 0 : index
    %c0_5 = arith.constant 0 : index
    %6 = vector.load %arg4[%c0_4, %c0_5] : memref<8x1xf32, #tpu.memory_space<vmem>>, vector<8x1xf32>
    %7 = vector.broadcast %6 : vector<8x1xf32> to vector<8x16xf32>
    %8 = arith.addf %5, %7 : vector<8x16xf32>
    %cst = arith.constant 0.000000e+00 : f32
    %9 = vector.broadcast %cst : f32 to vector<8x16xf32>
    %10 = arith.maximumf %8, %9 : vector<8x16xf32>
    %c0_6 = arith.constant 0 : index
    %c0_7 = arith.constant 0 : index
    %11 = vector.load %arg5[%c0_6, %c0_7] : memref<3x8xbf16, #tpu.memory_space<vmem>>, vector<3x8xbf16>
    %12 = arith.truncf %10 : vector<8x16xf32> to vector<8x16xbf16>
    %cst_8 = arith.constant dense<0.000000e+00> : vector<3x16xf32>
    %13 = tpu.matmul %11, %12, %cst_8 {dimension_numbers = #tpu.dot_dimension_numbers<[1], [0], [0], [1], [0, 0, 1, 1], [], []>} : vector<3x8xbf16>, vector<8x16xbf16>, vector<3x16xf32> -> vector<3x16xf32>
    %c0_9 = arith.constant 0 : index
    %c0_10 = arith.constant 0 : index
    %14 = vector.load %arg6[%c0_9, %c0_10] : memref<3x1xf32, #tpu.memory_space<vmem>>, vector<3x1xf32>
    %15 = vector.broadcast %14 : vector<3x1xf32> to vector<3x16xf32>
    %16 = arith.addf %13, %15 : vector<3x16xf32>
    %17 = math.tanh %16 : vector<3x16xf32>
    %c0_11 = arith.constant 0 : index
    %c0_12 = arith.constant 0 : index
    %c0_13 = arith.constant 0 : index
    %18 = vector.load %arg7[%c0_11, %c0_12, %c0_13] : memref<1x3x16xf32, #tpu.memory_space<vmem>>, vector<1x3x16xf32>
    %19 = vector.shape_cast %18 : vector<1x3x16xf32> to vector<3x16xf32>
    %20 = vector.shape_cast %17 : vector<3x16xf32> to vector<1x3x16xf32>
    tpu.vector_store %arg7[%c0_11, %c0_12, %c0_13], %20 {strides = array<i32>} : memref<1x3x16xf32, #tpu.memory_space<vmem>>, vector<1x3x16xf32>,
    return
  }
  func.func @transform_0(%arg0: i32, %arg1: i32) -> (i32, i32, i32) {
    %c0_i32 = arith.constant 0 : i32
    %c0_i32_0 = arith.constant 0 : i32
    return %arg0, %c0_i32, %arg1 : i32, i32, i32
  }
  func.func @transform_1(%arg0: i32, %arg1: i32) -> (i32, i32) {
    %c0_i32 = arith.constant 0 : i32
    %c0_i32_0 = arith.constant 0 : i32
    %c0_i32_1 = arith.constant 0 : i32
    return %c0_i32, %c0_i32_0 : i32, i32
  }
  func.func @transform_2(%arg0: i32, %arg1: i32) -> (i32, i32) {
    %c0_i32 = arith.constant 0 : i32
    %c0_i32_0 = arith.constant 0 : i32
    %c0_i32_1 = arith.constant 0 : i32
    return %c0_i32, %c0_i32_0 : i32, i32
  }
  func.func @transform_3(%arg0: i32, %arg1: i32) -> (i32, i32) {
    %c0_i32 = arith.constant 0 : i32
    %c0_i32_0 = arith.constant 0 : i32
    %c0_i32_1 = arith.constant 0 : i32
    return %c0_i32, %c0_i32_0 : i32, i32
  }
  func.func @transform_4(%arg0: i32, %arg1: i32) -> (i32, i32) {
    %c0_i32 = arith.constant 0 : i32
    %c0_i32_0 = arith.constant 0 : i32
    %c0_i32_1 = arith.constant 0 : i32
    return %c0_i32, %c0_i32_0 : i32, i32
  }
  func.func @transform_5(%arg0: i32, %arg1: i32) -> (i32, i32, i32) {
    %c0_i32 = arith.constant 0 : i32
    %c0_i32_0 = arith.constant 0 : i32
    return %arg0, %c0_i32, %arg1 : i32, i32, i32
  }
}

module attributes {stable_mosaic.version = 11 : i64} {
  func.func @_mid_layer_kernel(%arg0: i32, %arg1: i32, %arg2: memref<1x32x16xbf16, #tpu.memory_space<vmem>>, %arg3: memref<32x1xf32, #tpu.memory_space<vmem>>, %arg4: memref<32x1xf32, #tpu.memory_space<vmem>>, %arg5: memref<16x32xbf16, #tpu.memory_space<vmem>>, %arg6: memref<1x16x16xbf16, #tpu.memory_space<vmem>>, %arg7: memref<1x1x16x2xf32, #tpu.memory_space<vmem>>) attributes {dimension_semantics = [#tpu.dimension_semantics<parallel>, #tpu.dimension_semantics<parallel>], iteration_bounds = array<i64: 2, 1>, scalar_prefetch = 0 : i64, scratch_operands = 0 : i64, tpu.core_type = #tpu.core_type<tc>, window_params = [{transform_indices = @transform_0, window_bounds = array<i64: 1, 32, 16>}, {pipeline_mode = #tpu.pipeline_mode<synchronous>, transform_indices = @transform_1, window_bounds = array<i64: 32, 1>}, {pipeline_mode = #tpu.pipeline_mode<synchronous>, transform_indices = @transform_2, window_bounds = array<i64: 32, 1>}, {pipeline_mode = #tpu.pipeline_mode<synchronous>, transform_indices = @transform_3, window_bounds = array<i64: 16, 32>}, {transform_indices = @transform_4, window_bounds = array<i64: 1, 16, 16>}, {transform_indices = @transform_5, window_bounds = array<i64: 1, 1, 16, 2>}]} {
    %c0 = arith.constant 0 : index
    %c0_0 = arith.constant 0 : index
    %c0_1 = arith.constant 0 : index
    %0 = vector.load %arg2[%c0, %c0_0, %c0_1] : memref<1x32x16xbf16, #tpu.memory_space<vmem>>, vector<1x32x16xbf16>
    %1 = vector.shape_cast %0 : vector<1x32x16xbf16> to vector<32x16xbf16>
    %c0_2 = arith.constant 0 : index
    %c0_3 = arith.constant 0 : index
    %2 = vector.load %arg3[%c0_2, %c0_3] : memref<32x1xf32, #tpu.memory_space<vmem>>, vector<32x1xf32>
    %3 = arith.extf %1 : vector<32x16xbf16> to vector<32x16xf32>
    %4 = vector.broadcast %2 : vector<32x1xf32> to vector<32x16xf32>
    %5 = arith.mulf %3, %4 : vector<32x16xf32>
    %c0_4 = arith.constant 0 : index
    %c0_5 = arith.constant 0 : index
    %6 = vector.load %arg4[%c0_4, %c0_5] : memref<32x1xf32, #tpu.memory_space<vmem>>, vector<32x1xf32>
    %7 = vector.broadcast %6 : vector<32x1xf32> to vector<32x16xf32>
    %8 = arith.addf %5, %7 : vector<32x16xf32>
    %cst = arith.constant 0.000000e+00 : f32
    %9 = vector.broadcast %cst : f32 to vector<32x16xf32>
    %10 = arith.maximumf %8, %9 : vector<32x16xf32>
    %c0_6 = arith.constant 0 : index
    %c0_7 = arith.constant 0 : index
    %11 = vector.load %arg5[%c0_6, %c0_7] : memref<16x32xbf16, #tpu.memory_space<vmem>>, vector<16x32xbf16>
    %12 = arith.truncf %10 : vector<32x16xf32> to vector<32x16xbf16>
    %cst_8 = arith.constant dense<0.000000e+00> : vector<16x16xf32>
    %13 = tpu.matmul %11, %12, %cst_8 {dimension_numbers = #tpu.dot_dimension_numbers<[1], [0], [0], [1], [0, 0, 1, 1], [], []>} : vector<16x32xbf16>, vector<32x16xbf16>, vector<16x16xf32> -> vector<16x16xf32>
    %14 = arith.truncf %13 : vector<16x16xf32> to vector<16x16xbf16>
    %c0_9 = arith.constant 0 : index
    %c0_10 = arith.constant 0 : index
    %c0_11 = arith.constant 0 : index
    %15 = vector.load %arg6[%c0_9, %c0_10, %c0_11] : memref<1x16x16xbf16, #tpu.memory_space<vmem>>, vector<1x16x16xbf16>
    %16 = vector.shape_cast %15 : vector<1x16x16xbf16> to vector<16x16xbf16>
    %17 = vector.shape_cast %14 : vector<16x16xbf16> to vector<1x16x16xbf16>
    tpu.vector_store %arg6[%c0_9, %c0_10, %c0_11], %17 {strides = array<i32>} : memref<1x16x16xbf16, #tpu.memory_space<vmem>>, vector<1x16x16xbf16>,
    %cst_12 = arith.constant dense<0.000000e+00> : vector<16xf32>
    %18 = vector.multi_reduction <add>, %13, %cst_12 [1] : vector<16x16xf32> to vector<16xf32>
    %19 = vector.shape_cast %18 : vector<16xf32> to vector<16x1xf32>
    %c0_13 = arith.constant 0 : index
    %c0_14 = arith.constant 0 : index
    %c0_15 = arith.constant 0 : index
    %c0_16 = arith.constant 0 : index
    %20 = vector.load %arg7[%c0_13, %c0_14, %c0_15, %c0_16] : memref<1x1x16x2xf32, #tpu.memory_space<vmem>>, vector<1x1x16x1xf32>
    %21 = vector.shape_cast %20 : vector<1x1x16x1xf32> to vector<16x1xf32>
    %22 = vector.shape_cast %19 : vector<16x1xf32> to vector<1x1x16x1xf32>
    tpu.vector_store %arg7[%c0_13, %c0_14, %c0_15, %c0_16], %22 {strides = array<i32>} : memref<1x1x16x2xf32, #tpu.memory_space<vmem>>, vector<1x1x16x1xf32>,
    %23 = arith.mulf %13, %13 : vector<16x16xf32>
    %cst_17 = arith.constant dense<0.000000e+00> : vector<16xf32>
    %24 = vector.multi_reduction <add>, %23, %cst_17 [1] : vector<16x16xf32> to vector<16xf32>
    %25 = vector.shape_cast %24 : vector<16xf32> to vector<16x1xf32>
    %c0_18 = arith.constant 0 : index
    %c0_19 = arith.constant 0 : index
    %c0_20 = arith.constant 0 : index
    %c1 = arith.constant 1 : index
    %26 = vector.load %arg7[%c0_18, %c0_19, %c0_20, %c1] : memref<1x1x16x2xf32, #tpu.memory_space<vmem>>, vector<1x1x16x1xf32>
    %27 = vector.shape_cast %26 : vector<1x1x16x1xf32> to vector<16x1xf32>
    %28 = vector.shape_cast %25 : vector<16x1xf32> to vector<1x1x16x1xf32>
    tpu.vector_store %arg7[%c0_18, %c0_19, %c0_20, %c1], %28 {strides = array<i32>} : memref<1x1x16x2xf32, #tpu.memory_space<vmem>>, vector<1x1x16x1xf32>,
    return
  }
  func.func @transform_0(%arg0: i32, %arg1: i32) -> (i32, i32, i32) {
    %c0_i32 = arith.constant 0 : i32
    %c0_i32_0 = arith.constant 0 : i32
    return %arg0, %c0_i32, %arg1 : i32, i32, i32
  }
  func.func @transform_1(%arg0: i32, %arg1: i32) -> (i32, i32) {
    %c0_i32 = arith.constant 0 : i32
    %c0_i32_0 = arith.constant 0 : i32
    %c0_i32_1 = arith.constant 0 : i32
    return %c0_i32, %c0_i32_0 : i32, i32
  }
  func.func @transform_2(%arg0: i32, %arg1: i32) -> (i32, i32) {
    %c0_i32 = arith.constant 0 : i32
    %c0_i32_0 = arith.constant 0 : i32
    %c0_i32_1 = arith.constant 0 : i32
    return %c0_i32, %c0_i32_0 : i32, i32
  }
  func.func @transform_3(%arg0: i32, %arg1: i32) -> (i32, i32) {
    %c0_i32 = arith.constant 0 : i32
    %c0_i32_0 = arith.constant 0 : i32
    %c0_i32_1 = arith.constant 0 : i32
    return %c0_i32, %c0_i32_0 : i32, i32
  }
  func.func @transform_4(%arg0: i32, %arg1: i32) -> (i32, i32, i32) {
    %c0_i32 = arith.constant 0 : i32
    %c0_i32_0 = arith.constant 0 : i32
    return %arg0, %c0_i32, %arg1 : i32, i32, i32
  }
  func.func @transform_5(%arg0: i32, %arg1: i32) -> (i32, i32, i32, i32) {
    %c0_i32 = arith.constant 0 : i32
    %c0_i32_0 = arith.constant 0 : i32
    %c0_i32_1 = arith.constant 0 : i32
    return %arg0, %arg1, %c0_i32, %c0_i32_0 : i32, i32, i32, i32
  }
}

module attributes {stable_mosaic.version = 11 : i64} {
  func.func @_first_layer_kernel(%arg0: i32, %arg1: i32, %arg2: memref<1x32x16xf32, #tpu.memory_space<vmem>>, %arg3: memref<32x32xbf16, #tpu.memory_space<vmem>>, %arg4: memref<1x32x16xbf16, #tpu.memory_space<vmem>>, %arg5: memref<1x1x32x2xf32, #tpu.memory_space<vmem>>) attributes {dimension_semantics = [#tpu.dimension_semantics<parallel>, #tpu.dimension_semantics<parallel>], iteration_bounds = array<i64: 2, 1>, scalar_prefetch = 0 : i64, scratch_operands = 0 : i64, tpu.core_type = #tpu.core_type<tc>, window_params = [{transform_indices = @transform_0, window_bounds = array<i64: 1, 32, 16>}, {pipeline_mode = #tpu.pipeline_mode<synchronous>, transform_indices = @transform_1, window_bounds = array<i64: 32, 32>}, {transform_indices = @transform_2, window_bounds = array<i64: 1, 32, 16>}, {transform_indices = @transform_3, window_bounds = array<i64: 1, 1, 32, 2>}]} {
    %c0 = arith.constant 0 : index
    %c0_0 = arith.constant 0 : index
    %0 = vector.load %arg3[%c0, %c0_0] : memref<32x32xbf16, #tpu.memory_space<vmem>>, vector<32x32xbf16>
    %c0_1 = arith.constant 0 : index
    %c0_2 = arith.constant 0 : index
    %c0_3 = arith.constant 0 : index
    %1 = vector.load %arg2[%c0_1, %c0_2, %c0_3] : memref<1x32x16xf32, #tpu.memory_space<vmem>>, vector<1x32x16xf32>
    %2 = vector.shape_cast %1 : vector<1x32x16xf32> to vector<32x16xf32>
    %3 = arith.truncf %2 : vector<32x16xf32> to vector<32x16xbf16>
    %cst = arith.constant dense<0.000000e+00> : vector<32x16xf32>
    %4 = tpu.matmul %0, %3, %cst {dimension_numbers = #tpu.dot_dimension_numbers<[1], [0], [0], [1], [0, 0, 1, 1], [], []>} : vector<32x32xbf16>, vector<32x16xbf16>, vector<32x16xf32> -> vector<32x16xf32>
    %5 = arith.truncf %4 : vector<32x16xf32> to vector<32x16xbf16>
    %c0_4 = arith.constant 0 : index
    %c0_5 = arith.constant 0 : index
    %c0_6 = arith.constant 0 : index
    %6 = vector.load %arg4[%c0_4, %c0_5, %c0_6] : memref<1x32x16xbf16, #tpu.memory_space<vmem>>, vector<1x32x16xbf16>
    %7 = vector.shape_cast %6 : vector<1x32x16xbf16> to vector<32x16xbf16>
    %8 = vector.shape_cast %5 : vector<32x16xbf16> to vector<1x32x16xbf16>
    tpu.vector_store %arg4[%c0_4, %c0_5, %c0_6], %8 {strides = array<i32>} : memref<1x32x16xbf16, #tpu.memory_space<vmem>>, vector<1x32x16xbf16>,
    %cst_7 = arith.constant dense<0.000000e+00> : vector<32xf32>
    %9 = vector.multi_reduction <add>, %4, %cst_7 [1] : vector<32x16xf32> to vector<32xf32>
    %10 = vector.shape_cast %9 : vector<32xf32> to vector<32x1xf32>
    %c0_8 = arith.constant 0 : index
    %c0_9 = arith.constant 0 : index
    %c0_10 = arith.constant 0 : index
    %c0_11 = arith.constant 0 : index
    %11 = vector.load %arg5[%c0_8, %c0_9, %c0_10, %c0_11] : memref<1x1x32x2xf32, #tpu.memory_space<vmem>>, vector<1x1x32x1xf32>
    %12 = vector.shape_cast %11 : vector<1x1x32x1xf32> to vector<32x1xf32>
    %13 = vector.shape_cast %10 : vector<32x1xf32> to vector<1x1x32x1xf32>
    tpu.vector_store %arg5[%c0_8, %c0_9, %c0_10, %c0_11], %13 {strides = array<i32>} : memref<1x1x32x2xf32, #tpu.memory_space<vmem>>, vector<1x1x32x1xf32>,
    %14 = arith.mulf %4, %4 : vector<32x16xf32>
    %cst_12 = arith.constant dense<0.000000e+00> : vector<32xf32>
    %15 = vector.multi_reduction <add>, %14, %cst_12 [1] : vector<32x16xf32> to vector<32xf32>
    %16 = vector.shape_cast %15 : vector<32xf32> to vector<32x1xf32>
    %c0_13 = arith.constant 0 : index
    %c0_14 = arith.constant 0 : index
    %c0_15 = arith.constant 0 : index
    %c1 = arith.constant 1 : index
    %17 = vector.load %arg5[%c0_13, %c0_14, %c0_15, %c1] : memref<1x1x32x2xf32, #tpu.memory_space<vmem>>, vector<1x1x32x1xf32>
    %18 = vector.shape_cast %17 : vector<1x1x32x1xf32> to vector<32x1xf32>
    %19 = vector.shape_cast %16 : vector<32x1xf32> to vector<1x1x32x1xf32>
    tpu.vector_store %arg5[%c0_13, %c0_14, %c0_15, %c1], %19 {strides = array<i32>} : memref<1x1x32x2xf32, #tpu.memory_space<vmem>>, vector<1x1x32x1xf32>,
    return
  }
  func.func @transform_0(%arg0: i32, %arg1: i32) -> (i32, i32, i32) {
    %c0_i32 = arith.constant 0 : i32
    %c0_i32_0 = arith.constant 0 : i32
    return %arg0, %c0_i32, %arg1 : i32, i32, i32
  }
  func.func @transform_1(%arg0: i32, %arg1: i32) -> (i32, i32) {
    %c0_i32 = arith.constant 0 : i32
    %c0_i32_0 = arith.constant 0 : i32
    %c0_i32_1 = arith.constant 0 : i32
    return %c0_i32, %c0_i32_0 : i32, i32
  }
  func.func @transform_2(%arg0: i32, %arg1: i32) -> (i32, i32, i32) {
    %c0_i32 = arith.constant 0 : i32
    %c0_i32_0 = arith.constant 0 : i32
    return %arg0, %c0_i32, %arg1 : i32, i32, i32
  }
  func.func @transform_3(%arg0: i32, %arg1: i32) -> (i32, i32, i32, i32) {
    %c0_i32 = arith.constant 0 : i32
    %c0_i32_0 = arith.constant 0 : i32
    %c0_i32_1 = arith.constant 0 : i32
    return %arg0, %arg1, %c0_i32, %c0_i32_0 : i32, i32, i32, i32
  }
}

module attributes {stable_mosaic.version = 11 : i64} {
  func.func @_mid_layer_kernel(%arg0: i32, %arg1: i32, %arg2: memref<1x16x16xbf16, #tpu.memory_space<vmem>>, %arg3: memref<16x1xf32, #tpu.memory_space<vmem>>, %arg4: memref<16x1xf32, #tpu.memory_space<vmem>>, %arg5: memref<8x16xbf16, #tpu.memory_space<vmem>>, %arg6: memref<1x8x16xbf16, #tpu.memory_space<vmem>>, %arg7: memref<1x1x8x2xf32, #tpu.memory_space<vmem>>) attributes {dimension_semantics = [#tpu.dimension_semantics<parallel>, #tpu.dimension_semantics<parallel>], iteration_bounds = array<i64: 2, 1>, scalar_prefetch = 0 : i64, scratch_operands = 0 : i64, tpu.core_type = #tpu.core_type<tc>, window_params = [{transform_indices = @transform_0, window_bounds = array<i64: 1, 16, 16>}, {pipeline_mode = #tpu.pipeline_mode<synchronous>, transform_indices = @transform_1, window_bounds = array<i64: 16, 1>}, {pipeline_mode = #tpu.pipeline_mode<synchronous>, transform_indices = @transform_2, window_bounds = array<i64: 16, 1>}, {pipeline_mode = #tpu.pipeline_mode<synchronous>, transform_indices = @transform_3, window_bounds = array<i64: 8, 16>}, {transform_indices = @transform_4, window_bounds = array<i64: 1, 8, 16>}, {transform_indices = @transform_5, window_bounds = array<i64: 1, 1, 8, 2>}]} {
    %c0 = arith.constant 0 : index
    %c0_0 = arith.constant 0 : index
    %c0_1 = arith.constant 0 : index
    %0 = vector.load %arg2[%c0, %c0_0, %c0_1] : memref<1x16x16xbf16, #tpu.memory_space<vmem>>, vector<1x16x16xbf16>
    %1 = vector.shape_cast %0 : vector<1x16x16xbf16> to vector<16x16xbf16>
    %c0_2 = arith.constant 0 : index
    %c0_3 = arith.constant 0 : index
    %2 = vector.load %arg3[%c0_2, %c0_3] : memref<16x1xf32, #tpu.memory_space<vmem>>, vector<16x1xf32>
    %3 = arith.extf %1 : vector<16x16xbf16> to vector<16x16xf32>
    %4 = vector.broadcast %2 : vector<16x1xf32> to vector<16x16xf32>
    %5 = arith.mulf %3, %4 : vector<16x16xf32>
    %c0_4 = arith.constant 0 : index
    %c0_5 = arith.constant 0 : index
    %6 = vector.load %arg4[%c0_4, %c0_5] : memref<16x1xf32, #tpu.memory_space<vmem>>, vector<16x1xf32>
    %7 = vector.broadcast %6 : vector<16x1xf32> to vector<16x16xf32>
    %8 = arith.addf %5, %7 : vector<16x16xf32>
    %cst = arith.constant 0.000000e+00 : f32
    %9 = vector.broadcast %cst : f32 to vector<16x16xf32>
    %10 = arith.maximumf %8, %9 : vector<16x16xf32>
    %c0_6 = arith.constant 0 : index
    %c0_7 = arith.constant 0 : index
    %11 = vector.load %arg5[%c0_6, %c0_7] : memref<8x16xbf16, #tpu.memory_space<vmem>>, vector<8x16xbf16>
    %12 = arith.truncf %10 : vector<16x16xf32> to vector<16x16xbf16>
    %cst_8 = arith.constant dense<0.000000e+00> : vector<8x16xf32>
    %13 = tpu.matmul %11, %12, %cst_8 {dimension_numbers = #tpu.dot_dimension_numbers<[1], [0], [0], [1], [0, 0, 1, 1], [], []>} : vector<8x16xbf16>, vector<16x16xbf16>, vector<8x16xf32> -> vector<8x16xf32>
    %14 = arith.truncf %13 : vector<8x16xf32> to vector<8x16xbf16>
    %c0_9 = arith.constant 0 : index
    %c0_10 = arith.constant 0 : index
    %c0_11 = arith.constant 0 : index
    %15 = vector.load %arg6[%c0_9, %c0_10, %c0_11] : memref<1x8x16xbf16, #tpu.memory_space<vmem>>, vector<1x8x16xbf16>
    %16 = vector.shape_cast %15 : vector<1x8x16xbf16> to vector<8x16xbf16>
    %17 = vector.shape_cast %14 : vector<8x16xbf16> to vector<1x8x16xbf16>
    tpu.vector_store %arg6[%c0_9, %c0_10, %c0_11], %17 {strides = array<i32>} : memref<1x8x16xbf16, #tpu.memory_space<vmem>>, vector<1x8x16xbf16>,
    %cst_12 = arith.constant dense<0.000000e+00> : vector<8xf32>
    %18 = vector.multi_reduction <add>, %13, %cst_12 [1] : vector<8x16xf32> to vector<8xf32>
    %19 = vector.shape_cast %18 : vector<8xf32> to vector<8x1xf32>
    %c0_13 = arith.constant 0 : index
    %c0_14 = arith.constant 0 : index
    %c0_15 = arith.constant 0 : index
    %c0_16 = arith.constant 0 : index
    %20 = vector.load %arg7[%c0_13, %c0_14, %c0_15, %c0_16] : memref<1x1x8x2xf32, #tpu.memory_space<vmem>>, vector<1x1x8x1xf32>
    %21 = vector.shape_cast %20 : vector<1x1x8x1xf32> to vector<8x1xf32>
    %22 = vector.shape_cast %19 : vector<8x1xf32> to vector<1x1x8x1xf32>
    tpu.vector_store %arg7[%c0_13, %c0_14, %c0_15, %c0_16], %22 {strides = array<i32>} : memref<1x1x8x2xf32, #tpu.memory_space<vmem>>, vector<1x1x8x1xf32>,
    %23 = arith.mulf %13, %13 : vector<8x16xf32>
    %cst_17 = arith.constant dense<0.000000e+00> : vector<8xf32>
    %24 = vector.multi_reduction <add>, %23, %cst_17 [1] : vector<8x16xf32> to vector<8xf32>
    %25 = vector.shape_cast %24 : vector<8xf32> to vector<8x1xf32>
    %c0_18 = arith.constant 0 : index
    %c0_19 = arith.constant 0 : index
    %c0_20 = arith.constant 0 : index
    %c1 = arith.constant 1 : index
    %26 = vector.load %arg7[%c0_18, %c0_19, %c0_20, %c1] : memref<1x1x8x2xf32, #tpu.memory_space<vmem>>, vector<1x1x8x1xf32>
    %27 = vector.shape_cast %26 : vector<1x1x8x1xf32> to vector<8x1xf32>
    %28 = vector.shape_cast %25 : vector<8x1xf32> to vector<1x1x8x1xf32>
    tpu.vector_store %arg7[%c0_18, %c0_19, %c0_20, %c1], %28 {strides = array<i32>} : memref<1x1x8x2xf32, #tpu.memory_space<vmem>>, vector<1x1x8x1xf32>,
    return
  }
  func.func @transform_0(%arg0: i32, %arg1: i32) -> (i32, i32, i32) {
    %c0_i32 = arith.constant 0 : i32
    %c0_i32_0 = arith.constant 0 : i32
    return %arg0, %c0_i32, %arg1 : i32, i32, i32
  }
  func.func @transform_1(%arg0: i32, %arg1: i32) -> (i32, i32) {
    %c0_i32 = arith.constant 0 : i32
    %c0_i32_0 = arith.constant 0 : i32
    %c0_i32_1 = arith.constant 0 : i32
    return %c0_i32, %c0_i32_0 : i32, i32
  }
  func.func @transform_2(%arg0: i32, %arg1: i32) -> (i32, i32) {
    %c0_i32 = arith.constant 0 : i32
    %c0_i32_0 = arith.constant 0 : i32
    %c0_i32_1 = arith.constant 0 : i32
    return %c0_i32, %c0_i32_0 : i32, i32
  }
  func.func @transform_3(%arg0: i32, %arg1: i32) -> (i32, i32) {
    %c0_i32 = arith.constant 0 : i32
    %c0_i32_0 = arith.constant 0 : i32
    %c0_i32_1 = arith.constant 0 : i32
    return %c0_i32, %c0_i32_0 : i32, i32
  }
  func.func @transform_4(%arg0: i32, %arg1: i32) -> (i32, i32, i32) {
    %c0_i32 = arith.constant 0 : i32
    %c0_i32_0 = arith.constant 0 : i32
    return %arg0, %c0_i32, %arg1 : i32, i32, i32
  }
  func.func @transform_5(%arg0: i32, %arg1: i32) -> (i32, i32, i32, i32) {
    %c0_i32 = arith.constant 0 : i32
    %c0_i32_0 = arith.constant 0 : i32
    %c0_i32_1 = arith.constant 0 : i32
    return %arg0, %arg1, %c0_i32, %c0_i32_0 : i32, i32, i32, i32
  }
}

module attributes {stable_mosaic.version = 11 : i64} {
  func.func @_last_layer_kernel(%arg0: i32, %arg1: i32, %arg2: memref<1x8x16xbf16, #tpu.memory_space<vmem>>, %arg3: memref<8x1xf32, #tpu.memory_space<vmem>>, %arg4: memref<8x1xf32, #tpu.memory_space<vmem>>, %arg5: memref<3x8xbf16, #tpu.memory_space<vmem>>, %arg6: memref<3x1xf32, #tpu.memory_space<vmem>>, %arg7: memref<1x3x16xf32, #tpu.memory_space<vmem>>) attributes {dimension_semantics = [#tpu.dimension_semantics<parallel>, #tpu.dimension_semantics<parallel>], iteration_bounds = array<i64: 2, 1>, scalar_prefetch = 0 : i64, scratch_operands = 0 : i64, tpu.core_type = #tpu.core_type<tc>, window_params = [{transform_indices = @transform_0, window_bounds = array<i64: 1, 8, 16>}, {pipeline_mode = #tpu.pipeline_mode<synchronous>, transform_indices = @transform_1, window_bounds = array<i64: 8, 1>}, {pipeline_mode = #tpu.pipeline_mode<synchronous>, transform_indices = @transform_2, window_bounds = array<i64: 8, 1>}, {pipeline_mode = #tpu.pipeline_mode<synchronous>, transform_indices = @transform_3, window_bounds = array<i64: 3, 8>}, {pipeline_mode = #tpu.pipeline_mode<synchronous>, transform_indices = @transform_4, window_bounds = array<i64: 3, 1>}, {transform_indices = @transform_5, window_bounds = array<i64: 1, 3, 16>}]} {
    %c0 = arith.constant 0 : index
    %c0_0 = arith.constant 0 : index
    %c0_1 = arith.constant 0 : index
    %0 = vector.load %arg2[%c0, %c0_0, %c0_1] : memref<1x8x16xbf16, #tpu.memory_space<vmem>>, vector<1x8x16xbf16>
    %1 = vector.shape_cast %0 : vector<1x8x16xbf16> to vector<8x16xbf16>
    %c0_2 = arith.constant 0 : index
    %c0_3 = arith.constant 0 : index
    %2 = vector.load %arg3[%c0_2, %c0_3] : memref<8x1xf32, #tpu.memory_space<vmem>>, vector<8x1xf32>
    %3 = arith.extf %1 : vector<8x16xbf16> to vector<8x16xf32>
    %4 = vector.broadcast %2 : vector<8x1xf32> to vector<8x16xf32>
    %5 = arith.mulf %3, %4 : vector<8x16xf32>
    %c0_4 = arith.constant 0 : index
    %c0_5 = arith.constant 0 : index
    %6 = vector.load %arg4[%c0_4, %c0_5] : memref<8x1xf32, #tpu.memory_space<vmem>>, vector<8x1xf32>
    %7 = vector.broadcast %6 : vector<8x1xf32> to vector<8x16xf32>
    %8 = arith.addf %5, %7 : vector<8x16xf32>
    %cst = arith.constant 0.000000e+00 : f32
    %9 = vector.broadcast %cst : f32 to vector<8x16xf32>
    %10 = arith.maximumf %8, %9 : vector<8x16xf32>
    %c0_6 = arith.constant 0 : index
    %c0_7 = arith.constant 0 : index
    %11 = vector.load %arg5[%c0_6, %c0_7] : memref<3x8xbf16, #tpu.memory_space<vmem>>, vector<3x8xbf16>
    %12 = arith.truncf %10 : vector<8x16xf32> to vector<8x16xbf16>
    %cst_8 = arith.constant dense<0.000000e+00> : vector<3x16xf32>
    %13 = tpu.matmul %11, %12, %cst_8 {dimension_numbers = #tpu.dot_dimension_numbers<[1], [0], [0], [1], [0, 0, 1, 1], [], []>} : vector<3x8xbf16>, vector<8x16xbf16>, vector<3x16xf32> -> vector<3x16xf32>
    %c0_9 = arith.constant 0 : index
    %c0_10 = arith.constant 0 : index
    %14 = vector.load %arg6[%c0_9, %c0_10] : memref<3x1xf32, #tpu.memory_space<vmem>>, vector<3x1xf32>
    %15 = vector.broadcast %14 : vector<3x1xf32> to vector<3x16xf32>
    %16 = arith.addf %13, %15 : vector<3x16xf32>
    %17 = math.tanh %16 : vector<3x16xf32>
    %c0_11 = arith.constant 0 : index
    %c0_12 = arith.constant 0 : index
    %c0_13 = arith.constant 0 : index
    %18 = vector.load %arg7[%c0_11, %c0_12, %c0_13] : memref<1x3x16xf32, #tpu.memory_space<vmem>>, vector<1x3x16xf32>
    %19 = vector.shape_cast %18 : vector<1x3x16xf32> to vector<3x16xf32>
    %20 = vector.shape_cast %17 : vector<3x16xf32> to vector<1x3x16xf32>
    tpu.vector_store %arg7[%c0_11, %c0_12, %c0_13], %20 {strides = array<i32>} : memref<1x3x16xf32, #tpu.memory_space<vmem>>, vector<1x3x16xf32>,
    return
  }
  func.func @transform_0(%arg0: i32, %arg1: i32) -> (i32, i32, i32) {
    %c0_i32 = arith.constant 0 : i32
    %c0_i32_0 = arith.constant 0 : i32
    return %arg0, %c0_i32, %arg1 : i32, i32, i32
  }
  func.func @transform_1(%arg0: i32, %arg1: i32) -> (i32, i32) {
    %c0_i32 = arith.constant 0 : i32
    %c0_i32_0 = arith.constant 0 : i32
    %c0_i32_1 = arith.constant 0 : i32
    return %c0_i32, %c0_i32_0 : i32, i32
  }
  func.func @transform_2(%arg0: i32, %arg1: i32) -> (i32, i32) {
    %c0_i32 = arith.constant 0 : i32
    %c0_i32_0 = arith.constant 0 : i32
    %c0_i32_1 = arith.constant 0 : i32
    return %c0_i32, %c0_i32_0 : i32, i32
  }
  func.func @transform_3(%arg0: i32, %arg1: i32) -> (i32, i32) {
    %c0_i32 = arith.constant 0 : i32
    %c0_i32_0 = arith.constant 0 : i32
    %c0_i32_1 = arith.constant 0 : i32
    return %c0_i32, %c0_i32_0 : i32, i32
  }
  func.func @transform_4(%arg0: i32, %arg1: i32) -> (i32, i32) {
    %c0_i32 = arith.constant 0 : i32
    %c0_i32_0 = arith.constant 0 : i32
    %c0_i32_1 = arith.constant 0 : i32
    return %c0_i32, %c0_i32_0 : i32, i32
  }
  func.func @transform_5(%arg0: i32, %arg1: i32) -> (i32, i32, i32) {
    %c0_i32 = arith.constant 0 : i32
    %c0_i32_0 = arith.constant 0 : i32
    return %arg0, %c0_i32, %arg1 : i32, i32, i32
  }
}

</mosaic_0001>

<llo_original>
// kernel: pointgencon_forward.4
$region0: #{pointgencon_forward.4}
  #allocation0 [shape = 'u32[]', space=smem, size = 0x4, offset = 0x4, fixed_abs, tag = 'smem constant byte address 0x4 - core index']
  #allocation1 [shape = 'u32[144,128]{1,0:T(1,128)}', space=vmem, size = 0x12000, scoped, tag = 'internal scratch']
  %s0 = inlined_call_operand.hbm [shape: f32[2,32,16], index: 0, kind: input, shape index: {}]
  %s1 = inlined_call_operand.hbm [shape: bf16[32,32], index: 1, kind: input, shape index: {}]
  %s2 = inlined_call_operand.hbm [shape: bf16[2,32,16], index: 2, kind: output, shape index: {0}]
  %s3 = inlined_call_operand.hbm [shape: f32[2,1,32,2], index: 3, kind: output, shape index: {1}]
  %4 = xla_tuple %s2, %s3
  %s5 = sld [smem:[#allocation0]]
  $region57: #{pointgencon_forward.4} parent=0
    _
  %s7 = ssub.s32 1, %s5
  %s8 = scalar_select 0, %s7, %s5
  $region1: #{pointgencon_forward.4} parent=0
    #allocation2 [shape = 'u8[32768]{0}', space=vmem, size = 0x8000, scoped, tag = 'input window, operand 0']
    #allocation3 [shape = 's32[2]{0}', space=sflag, size = 0x8, scoped, tag = 'scoped memory for pointgencon_forward.4']
    #allocation4 [shape = 's32[2]{0}', space=sflag, size = 0x8, scoped, tag = 'scoped memory for pointgencon_forward.4']
    #allocation5 [shape = 'u8[8192]{0}', space=vmem, size = 0x2000, scoped, tag = 'input window, operand 1, single buffered']
    #allocation6 [shape = 's32[1]{0}', space=sflag, size = 0x4, scoped, tag = 'scoped memory for pointgencon_forward.4']
    #allocation7 [shape = 'u8[16384]{0}', space=vmem, size = 0x4000, scoped, tag = 'output window, operand 0']
    #allocation8 [shape = 'u8[32768]{0}', space=vmem, size = 0x8000, scoped, tag = 'output window, operand 1']
    #allocation9 [shape = 's32[2]{0}', space=sflag, size = 0x8, scoped, tag = 'scoped memory for pointgencon_forward.4']
    %9 = vsyncpa [#allocation3], 0
    %s10 = scalar_lea.sflag [#allocation3], 1
    %11 = vsyncpa %s10, 0
    %12 = vsyncpa [#allocation6], 0
    %13 = vsyncpa [#allocation4], 0
    %s14 = scalar_lea.sflag [#allocation4], 1
    %15 = vsyncpa %s14, 0
    %16 = vsyncpa [#allocation9], 0
    %s17 = scalar_lea.sflag [#allocation9], 1
    %18 = vsyncpa %s17, 0
    loop: start=0, step=1, limit=4
    $region2: #{pointgencon_forward.4} parent=1 // loop_pre_header
      _
    $region3: #{pointgencon_forward.4} parent=1 // loop_header
      %s20 = sphi 0, %s24
      %p21 = scmp.ge.s32.totalorder %s20, 4
      %s27 = sphi 0, %s39
      %s28 = sphi 0, %s35
      %s29 = sphi 0, %s27
      %s30 = sphi 0, %s28
      %s31 = sphi 0, %s29
      %s32 = sphi 0, %s30
      %s44 = sphi 0, %s46
      %s47 = sphi 0, %s44
      %s48 = sphi 0, %s47
      %s64 = sphi 0, %s48
      %s68 = sphi 0, %s68
      %s70 = sphi 0, %s68
      %s71 = sphi 0, %s70
      %s85 = sphi 0, %s71
      %s93 = sphi 0, %s95
      %s96 = sphi 0, %s93
      %s97 = sphi 0, %s96
      %s113 = sphi 0, %s97
      %s121 = sphi 0, %s123
      %s124 = sphi 0, %s121
      %s125 = sphi 0, %s124
      %s141 = sphi 0, %s125
    $region4: #{pointgencon_forward.4} parent=1 // loop_header_branch
      %23 = sbr.rel (%p21) target = $region8
    $region5: #{pointgencon_forward.4} parent=1 // loop_body
      %s25 = ssub.s32 %s20, 1
      %s26 = ssub.s32 %s20, 2
      %s33 = sadd.s32 1, %s28
      %p34 = scmp.ge.s32.totalorder %s33, 1
      %s35 = scalar_select %p34, 0, %s33
      %s36 = sadd.s32 1, %s27
      %s37 = scalar_select %p34, %s36, %s27
      %p38 = scmp.ge.s32.totalorder %s37, 2
      %s39 = scalar_select %p38, 0, %s37
      %s40 = ssub.s32 %s27, %s39
      %s41 = ssub.s32 %s28, %s35
      %s42 = sor.u32 %s40, %s41
      %p43 = scmp.eq.s32.totalorder %s42, 0
      %s45 = sadd.s32 %s44, 1
      %s46 = scalar_select %p43, %s44, %s45
      %p49 = pneg %p43
      %p50 = scmp.eq.s32.totalorder %s20, 1
      %p51 = por %p49, %p50
      %p52 = scmp.ne.s32.totalorder %s44, %s47
      %p53 = scmp.eq.s32.totalorder %s20, 0
      %p54 = por %p52, %p53
      %p55 = scmp.ne.s32.totalorder %s44, %s47
      %p56 = scmp.eq.s32.totalorder %s25, 1
      %p57 = por %p55, %p56
      %p58 = scmp.ne.s32.totalorder %s47, %s48
      %p59 = scmp.eq.s32.totalorder %s25, 0
      %p60 = por %p58, %p59
      %p61 = scmp.ne.s32.totalorder %s47, %s48
      %p62 = scmp.eq.s32.totalorder %s26, 1
      %p63 = por %p61, %p62
      %p65 = scmp.ne.s32.totalorder %s48, %s64
      %p66 = scmp.eq.s32.totalorder %s26, 0
      %p67 = por %p65, %p66
      %s69 = sadd.s32 %s68, 1
      %p72 = scmp.eq.s32.totalorder %s20, 1
      %p73 = scmp.ne.s32.totalorder %s68, %s70
      %p74 = scmp.eq.s32.totalorder %s20, 0
      %p75 = por %p73, %p74
      %p76 = scmp.ne.s32.totalorder %s68, %s70
      %p77 = scmp.eq.s32.totalorder %s25, 1
      %p78 = por %p76, %p77
      %p79 = scmp.ne.s32.totalorder %s70, %s71
      %p80 = scmp.eq.s32.totalorder %s25, 0
      %p81 = por %p79, %p80
      %p82 = scmp.ne.s32.totalorder %s70, %s71
      %p83 = scmp.eq.s32.totalorder %s26, 1
      %p84 = por %p82, %p83
      %p86 = scmp.ne.s32.totalorder %s71, %s85
      %p87 = scmp.eq.s32.totalorder %s26, 0
      %p88 = por %p86, %p87
      %s89 = ssub.s32 %s27, %s39
      %s90 = ssub.s32 %s28, %s35
      %s91 = sor.u32 %s89, %s90
      %p92 = scmp.eq.s32.totalorder %s91, 0
      %s94 = sadd.s32 %s93, 1
      %s95 = scalar_select %p92, %s93, %s94
      %p98 = pneg %p92
      %p99 = scmp.eq.s32.totalorder %s20, 1
      %p100 = por %p98, %p99
      %p101 = scmp.ne.s32.totalorder %s93, %s96
      %p102 = scmp.eq.s32.totalorder %s20, 0
      %p103 = por %p101, %p102
      %p104 = scmp.ne.s32.totalorder %s93, %s96
      %p105 = scmp.eq.s32.totalorder %s25, 1
      %p106 = por %p104, %p105
      %p107 = scmp.ne.s32.totalorder %s96, %s97
      %p108 = scmp.eq.s32.totalorder %s25, 0
      %p109 = por %p107, %p108
      %p110 = scmp.ne.s32.totalorder %s96, %s97
      %p111 = scmp.eq.s32.totalorder %s26, 1
      %p112 = por %p110, %p111
      %p114 = scmp.ne.s32.totalorder %s97, %s113
      %p115 = scmp.eq.s32.totalorder %s26, 0
      %p116 = por %p114, %p115
      %s117 = ssub.s32 %s27, %s39
      %s118 = ssub.s32 %s28, %s35
      %s119 = sor.u32 %s117, %s118
      %p120 = scmp.eq.s32.totalorder %s119, 0
      %s122 = sadd.s32 %s121, 1
      %s123 = scalar_select %p120, %s121, %s122
      %p126 = pneg %p120
      %p127 = scmp.eq.s32.totalorder %s20, 1
      %p128 = por %p126, %p127
      %p129 = scmp.ne.s32.totalorder %s121, %s124
      %p130 = scmp.eq.s32.totalorder %s20, 0
      %p131 = por %p129, %p130
      %p132 = scmp.ne.s32.totalorder %s121, %s124
      %p133 = scmp.eq.s32.totalorder %s25, 1
      %p134 = por %p132, %p133
      %p135 = scmp.ne.s32.totalorder %s124, %s125
      %p136 = scmp.eq.s32.totalorder %s25, 0
      %p137 = por %p135, %p136
      %p138 = scmp.ne.s32.totalorder %s124, %s125
      %p139 = scmp.eq.s32.totalorder %s26, 1
      %p140 = por %p138, %p139
      %p142 = scmp.ne.s32.totalorder %s125, %s141
      %p143 = scmp.eq.s32.totalorder %s26, 0
      %p144 = por %p142, %p143
      %p145 = scmp.le.s32.totalorder 1, %s20
      %p146 = scmp.lt.s32.totalorder %s20, 3
      %p147 = pnand %p145, %p146
      %p148 = pneg %p147
      // Predicated region
      $region9: #{pointgencon_forward.4} parent=5 // pred_check
        _
      $region10: #{pointgencon_forward.4} parent=5 // pred_check_branch
        %150 = sbr.rel (%p147) target = $region12
      $region11: #{pointgencon_forward.4} parent=5 // pred_region
        %s151 = ssub.s32 %s20, 1
        // Predicated region
        $region13: #{pointgencon_forward.4} parent=11 // pred_check
          %p152 = pneg %p81
        $region14: #{pointgencon_forward.4} parent=11 // pred_check_branch
          %154 = sbr.rel (%p152) target = $region16
        $region15: #{pointgencon_forward.4} parent=11 // pred_region
          %s156 = ssub.s32 256, 256
          %157 = vsyncadd [#allocation6], %s156
          %s158 = sshll.u32 [#allocation5], 4
          %s159 = int_to_ptr.vmem [resolvable:$true] %s158
          %164 = dma.hbm_to_vmem [thread:$0]  %s1, 256, %s159, [#allocation6], 64, 64, 4
        $region16: #{pointgencon_forward.4} parent=11 // pred_fallthru
          _
      $region12: #{pointgencon_forward.4} parent=5 // pred_fallthru
        _
      %p165 = scmp.lt.s32.totalorder %s20, 2
      // Predicated region
      $region17: #{pointgencon_forward.4} parent=5 // pred_check
        %p166 = pneg %p165
      $region18: #{pointgencon_forward.4} parent=5 // pred_check_branch
        %168 = sbr.rel (%p166) target = $region20
      $region19: #{pointgencon_forward.4} parent=5 // pred_region
        // Predicated region
        $region21: #{pointgencon_forward.4} parent=19 // pred_check
          %p169 = pneg %p54
        $region22: #{pointgencon_forward.4} parent=19 // pred_check_branch
          %171 = sbr.rel (%p169) target = $region24
        $region23: #{pointgencon_forward.4} parent=19 // pred_region
          %s172 = sand.u32 %s44, 1
          %s173 = scalar_lea.sflag [#allocation3], %s172
          %s174 = sand.u32 %s44, 1
          %s175 = smul.addr %s174, 32
          %s176 = scalar_lea.vmem [#allocation2], %s175
          %s178 = ssub.s32 512, 512
          %179 = vsyncadd %s173, %s178
          %s180 = smul.addr %s27, 4
          %s181 = sadd.s32 %s28, %s180
          %s182 = smul.addr %s181, 128
          %s183 = scalar_lea.hbm %s0, %s182
          %s184 = sshll.u32 %s176, 4
          %s185 = int_to_ptr.vmem [resolvable:$true] %s184
          %190 = dma.hbm_to_vmem [thread:$0]  %s183, 512, %s185, %s173, 128, 128, 8
        $region24: #{pointgencon_forward.4} parent=19 // pred_fallthru
          _
      $region20: #{pointgencon_forward.4} parent=5 // pred_fallthru
        _
      %p191 = scmp.le.s32.totalorder 1, %s20
      %p192 = scmp.lt.s32.totalorder %s20, 3
      %p193 = pnand %p191, %p192
      %p194 = pneg %p193
      // Predicated region
      $region25: #{pointgencon_forward.4} parent=5 // pred_check
        _
      $region26: #{pointgencon_forward.4} parent=5 // pred_check_branch
        %196 = sbr.rel (%p193) target = $region28
      $region27: #{pointgencon_forward.4} parent=5 // pred_region
        %s197 = ssub.s32 %s20, 1
        %s198 = sand.u32 %s47, 1
        %s199 = scalar_lea.sflag [#allocation3], %s198
        %s200 = sand.u32 %s47, 1
        %s201 = smul.addr %s200, 32
        %s202 = scalar_lea.vmem [#allocation2], %s201
        // Predicated region
        $region29: #{pointgencon_forward.4} parent=27 // pred_check
          %p203 = pneg %p60
        $region30: #{pointgencon_forward.4} parent=27 // pred_check_branch
          %205 = sbr.rel (%p203) target = $region32
        $region31: #{pointgencon_forward.4} parent=27 // pred_region
          %206 = dma.done %s199, 512
        $region32: #{pointgencon_forward.4} parent=27 // pred_fallthru
          _
        // Predicated region
        $region33: #{pointgencon_forward.4} parent=27 // pred_check
          %p207 = pneg %p81
        $region34: #{pointgencon_forward.4} parent=27 // pred_check_branch
          %209 = sbr.rel (%p207) target = $region36
        $region35: #{pointgencon_forward.4} parent=27 // pred_region
          %210 = dma.done [#allocation6], 256
        $region36: #{pointgencon_forward.4} parent=27 // pred_fallthru
          _
        %s211 = sand.u32 %s47, 1
        %s212 = scalar_lea.sflag [#allocation3], %s211
        %s213 = sand.u32 %s47, 1
        %s214 = smul.addr %s213, 32
        %s215 = scalar_lea.vmem [#allocation2], %s214
        %p216 = pneg %p60
        %p217 = pneg %p57
        %p218 = pneg %p81
        %p219 = pneg %p78
        %p220 = pneg %p109
        %p221 = pneg %p106
        %s222 = sand.u32 %s96, 1
        %s223 = scalar_lea.sflag [#allocation4], %s222
        %s224 = sand.u32 %s96, 1
        %s225 = smul.addr %s224, 16
        %s226 = scalar_lea.vmem [#allocation7], %s225
        %p227 = pneg %p137
        %p228 = pneg %p134
        %s229 = sand.u32 %s124, 1
        %s230 = scalar_lea.sflag [#allocation9], %s229
        %s231 = sand.u32 %s124, 1
        %s232 = smul.addr %s231, 32
        %s233 = scalar_lea.vmem [#allocation8], %s232
        %v235 = vld [vmem:[#allocation5] sm:$0xf]
        %v236 = vld [vmem:[#allocation5 + $0x4] sm:$0xf]
        %v237 = vld [vmem:[#allocation5 + $0x8] sm:$0xf]
        %v238 = vld [vmem:[#allocation5 + $0xc] sm:$0xf]
        %v239 = vld [vmem:[%s202] sm:$0xff]
        %v240 = vld [vmem:[%s202 + $0x8] sm:$0xff]
        %v241 = vld [vmem:[%s202 + $0x10] sm:$0xff]
        %v242 = vld [vmem:[%s202 + $0x18] sm:$0xff]
        %v243 = vpack.c.bf16 %v240, %v239
        %v244 = vpack.c.bf16 %v242, %v241
        %v249 = vunpack.c.l.b16 %v235
        %v250 = vunpack.c.l.b16 %v236
        %v251 = vunpack.c.l.b16 %v237
        %v252 = vunpack.c.l.b16 %v238
        %v253 = vpack.c.b16 %v250, %v249
        %v254 = vpack.c.b16 %v252, %v251
        %vm255 = vcmask 261120
        %v257 = vsel %vm255, %v253, 0
        %v260 = vsel %vm255, %v254, 0
        %262 = vmatprep.subr.bf16.mxu0 0
        %263 = vmatpush1.bf16.msra.mxu0 %v243
        %264 = vmatprep.subr.bf16.mxu0 0
        %265 = vmatpush1.bf16.msra.mxu0 %v244
        %266 = vmatprep.subr.bf16.mxu0 0
        %267 = vmatpush1.bf16.msra.mxu0 0
        %268 = vmatprep.subr.bf16.mxu0 0
        %269 = vmatpush1.bf16.msra.mxu0 0
        %270 = vmatprep.subr.bf16.mxu0 0
        %271 = vmatpush1.bf16.msra.mxu0 0
        %272 = vmatprep.subr.bf16.mxu0 0
        %273 = vmatpush1.bf16.msra.mxu0 0
        %274 = vmatprep.subr.bf16.mxu0 0
        %275 = vmatpush1.bf16.msra.mxu0 0
        %276 = vmatprep.subr.bf16.mxu0 0
        %277 = vmatpush1.bf16.msra.mxu0 0
        %278 = vmatprep.subr.bf16.mxu0 0
        %279 = vmatpush1.bf16.msra.mxu0 0
        %280 = vmatprep.subr.bf16.mxu0 0
        %281 = vmatpush1.bf16.msra.mxu0 0
        %282 = vmatprep.subr.bf16.mxu0 0
        %283 = vmatpush1.bf16.msra.mxu0 0
        %284 = vmatprep.subr.bf16.mxu0 0
        %285 = vmatpush1.bf16.msra.mxu0 0
        %286 = vmatprep.subr.bf16.mxu0 0
        %287 = vmatpush1.bf16.msra.mxu0 0
        %288 = vmatprep.subr.bf16.mxu0 0
        %289 = vmatpush1.bf16.msra.mxu0 0
        %290 = vmatprep.subr.bf16.mxu0 0
        %291 = vmatpush1.bf16.msra.mxu0 0
        %292 = vmatprep.subr.bf16.mxu0 0
        %293 = vmatpush1.bf16.msra.mxu0 0
        %294 = vmatprep.mubr.bf16.mxu0 0
        %295 = vmatmul.mubr.bf16.gmra.mrb[0].mxu0 %v257
        %v296 = vpop.f32.mrb[0].mxu0
        %v297 = vadd.f32 0.0, %v296
        %v298 = vpop.f32.mrb[0].mxu0
        %v299 = vpop.f32.mrb[0].mxu0
        %v300 = vadd.f32 0.0, %v299
        %v301 = vpop.f32.mrb[0].mxu0
        %302 = vmatprep.mubr.bf16.mxu0 0
        %303 = vmatmul.mubr.bf16.gmra.mrb[0].mxu0 %v260
        %v304 = vpop.f32.mrb[0].mxu0
        %v305 = vadd.f32 0.0, %v304
        %v306 = vpop.f32.mrb[0].mxu0
        %v307 = vpop.f32.mrb[0].mxu0
        %v308 = vadd.f32 0.0, %v307
        %v309 = vpop.f32.mrb[0].mxu0
        %310 = vdwg.mxu0
        %v311 = vpack.c.bf16 %v300, %v297
        %v312 = vpack.c.bf16 %v308, %v305
        %v315 = vunpack.c.l.b16 %v311
        %v316 = vunpack.c.h.b16 %v311
        %v317 = vunpack.c.l.b16 %v312
        %v318 = vunpack.c.h.b16 %v312
        %v319 = vpack.c.b16 %v315, %v315
        %v320 = vpack.c.b16 %v316, %v316
        %v321 = vpack.c.b16 %v317, %v317
        %v322 = vpack.c.b16 %v318, %v318
        %vm327 = vcmask 125952
        %328 = vst.msk [vmem:[%s226] sm:$0xf] %vm327, %v319
        %329 = vst.msk [vmem:[%s226 + $0x4] sm:$0xf] %vm327, %v320
        %330 = vst.msk [vmem:[%s226 + $0x8] sm:$0xf] %vm327, %v321
        %331 = vst.msk [vmem:[%s226 + $0xc] sm:$0xf] %vm327, %v322
        %vm332 = vcmask 130048
        %v333 = vsel %vm332, %v297, 0.0
        %334 = vadd.xlane.f32.xlu0 %v333
        %v335 = vpop.xlane.xlu0 %334
        %v336 = vsel %vm332, %v300, 0.0
        %337 = vadd.xlane.f32.xlu0 %v336
        %v338 = vpop.xlane.xlu0 %337
        %v339 = vsel %vm332, %v305, 0.0
        %340 = vadd.xlane.f32.xlu0 %v339
        %v341 = vpop.xlane.xlu0 %340
        %v342 = vsel %vm332, %v308, 0.0
        %343 = vadd.xlane.f32.xlu0 %v342
        %v344 = vpop.xlane.xlu0 %343
        %vm345 = vcmask 7168
        %346 = vst.msk [vmem:[%s233] sm:$0xff] %vm345, %v335
        %347 = vst.msk [vmem:[%s233 + $0x8] sm:$0xff] %vm345, %v338
        %348 = vst.msk [vmem:[%s233 + $0x10] sm:$0xff] %vm345, %v341
        %349 = vst.msk [vmem:[%s233 + $0x18] sm:$0xff] %vm345, %v344
        %v350 = vmul.f32 %v297, %v297
        %v351 = vmul.f32 %v300, %v300
        %v352 = vmul.f32 %v305, %v305
        %v353 = vmul.f32 %v308, %v308
        %v354 = vsel %vm332, %v350, 0.0
        %355 = vadd.xlane.f32.xlu0 %v354
        %v356 = vpop.xlane.xlu0 %355
        %v357 = vsel %vm332, %v351, 0.0
        %358 = vadd.xlane.f32.xlu0 %v357
        %v359 = vpop.xlane.xlu0 %358
        %v360 = vsel %vm332, %v352, 0.0
        %361 = vadd.xlane.f32.xlu0 %v360
        %v362 = vpop.xlane.xlu0 %361
        %v363 = vsel %vm332, %v353, 0.0
        %364 = vadd.xlane.f32.xlu0 %v363
        %v365 = vpop.xlane.xlu0 %364
        %vm366 = vcmask 15368
        %367 = vst.msk [vmem:[%s233] sm:$0xff] %vm366, %v356
        %368 = vst.msk [vmem:[%s233 + $0x8] sm:$0xff] %vm366, %v359
        %369 = vst.msk [vmem:[%s233 + $0x10] sm:$0xff] %vm366, %v362
        %370 = vst.msk [vmem:[%s233 + $0x18] sm:$0xff] %vm366, %v365
        %s371 = sand.u32 %s96, 1
        %s372 = scalar_lea.sflag [#allocation4], %s371
        %s373 = sand.u32 %s96, 1
        %s374 = smul.addr %s373, 16
        %s375 = scalar_lea.vmem [#allocation7], %s374
        %s376 = sand.u32 %s124, 1
        %s377 = scalar_lea.sflag [#allocation9], %s376
        %s378 = sand.u32 %s124, 1
        %s379 = smul.addr %s378, 32
        %s380 = scalar_lea.vmem [#allocation8], %s379
        // Predicated region
        $region37: #{pointgencon_forward.4} parent=27 // pred_check
          %p381 = pneg %p106
        $region38: #{pointgencon_forward.4} parent=27 // pred_check_branch
          %383 = sbr.rel (%p381) target = $region40
        $region39: #{pointgencon_forward.4} parent=27 // pred_region
          %s385 = ssub.s32 256, 256
          %386 = vsyncadd %s372, %s385
          %s387 = smul.addr %s29, 4
          %s388 = sadd.s32 %s30, %s387
          %s389 = smul.addr %s388, 64
          %s390 = scalar_lea.hbm %s2, %s389
          %s391 = sshll.u32 %s375, 4
          %s392 = int_to_ptr.vmem [resolvable:$true] %s391
          %397 = dma.vmem_to_hbm [thread:$0]  %s392, 256, %s390, %s372, 64, 64, 4
        $region40: #{pointgencon_forward.4} parent=27 // pred_fallthru
          _
        // Predicated region
        $region41: #{pointgencon_forward.4} parent=27 // pred_check
          %p398 = pneg %p134
        $region42: #{pointgencon_forward.4} parent=27 // pred_check_branch
          %400 = sbr.rel (%p398) target = $region44
        $region43: #{pointgencon_forward.4} parent=27 // pred_region
          %s402 = ssub.s32 512, 512
          %403 = vsyncadd %s377, %s402
          %s404 = smul.addr %s30, 4
          %s405 = smul.addr %s29, 4
          %s406 = sadd.s32 %s404, %s405
          %s407 = smul.addr %s406, 128
          %s408 = scalar_lea.hbm %s3, %s407
          %s409 = sshll.u32 %s380, 4
          %s410 = int_to_ptr.vmem [resolvable:$true] %s409
          %415 = dma.vmem_to_hbm [thread:$0]  %s410, 512, %s408, %s377, 128, 128, 8
        $region44: #{pointgencon_forward.4} parent=27 // pred_fallthru
          _
      $region28: #{pointgencon_forward.4} parent=5 // pred_fallthru
        _
      %p416 = scmp.le.s32.totalorder 2, %s20
      // Predicated region
      $region45: #{pointgencon_forward.4} parent=5 // pred_check
        %p417 = pneg %p416
      $region46: #{pointgencon_forward.4} parent=5 // pred_check_branch
        %419 = sbr.rel (%p417) target = $region48
      $region47: #{pointgencon_forward.4} parent=5 // pred_region
        %s420 = ssub.s32 %s20, 2
        // Predicated region
        $region49: #{pointgencon_forward.4} parent=47 // pred_check
          %p421 = pneg %p112
        $region50: #{pointgencon_forward.4} parent=47 // pred_check_branch
          %423 = sbr.rel (%p421) target = $region52
        $region51: #{pointgencon_forward.4} parent=47 // pred_region
          %s424 = sand.u32 %s97, 1
          %s425 = scalar_lea.sflag [#allocation4], %s424
          %s426 = sand.u32 %s97, 1
          %s427 = smul.addr %s426, 16
          %s428 = scalar_lea.vmem [#allocation7], %s427
          %429 = dma.done %s425, 256
        $region52: #{pointgencon_forward.4} parent=47 // pred_fallthru
          _
        // Predicated region
        $region53: #{pointgencon_forward.4} parent=47 // pred_check
          %p430 = pneg %p140
        $region54: #{pointgencon_forward.4} parent=47 // pred_check_branch
          %432 = sbr.rel (%p430) target = $region56
        $region55: #{pointgencon_forward.4} parent=47 // pred_region
          %s433 = sand.u32 %s125, 1
          %s434 = scalar_lea.sflag [#allocation9], %s433
          %s435 = sand.u32 %s125, 1
          %s436 = smul.addr %s435, 32
          %s437 = scalar_lea.vmem [#allocation8], %s436
          %438 = dma.done %s434, 512
        $region56: #{pointgencon_forward.4} parent=47 // pred_fallthru
          _
      $region48: #{pointgencon_forward.4} parent=5 // pred_fallthru
        _
    $region6: #{pointgencon_forward.4} parent=1 // loop_footer
      %s24 = sadd.s32 1, %s20
    $region7: #{pointgencon_forward.4} parent=1 // loop_footer_branch
      %19 = sbr.rel target = $region3
    $region8: #{pointgencon_forward.4} parent=1 // loop_exit
      _
    %439 = vsyncpa [#allocation3], 1
    %s440 = scalar_lea.sflag [#allocation3], 1
    %441 = vsyncpa %s440, 1
    %442 = vsyncpa [#allocation6], 1
    %443 = vsyncpa [#allocation4], 1
    %s444 = scalar_lea.sflag [#allocation4], 1
    %445 = vsyncpa %s444, 1
    %446 = vsyncpa [#allocation9], 1
    %s447 = scalar_lea.sflag [#allocation9], 1
    %448 = vsyncpa %s447, 1

// kernel: pointgencon_forward.5
$region0: #{pointgencon_forward.5}
  #allocation0 [shape = 'u32[]', space=smem, size = 0x4, offset = 0x4, fixed_abs, tag = 'smem constant byte address 0x4 - core index']
  #allocation1 [shape = 'u32[144,128]{1,0:T(1,128)}', space=vmem, size = 0x12000, scoped, tag = 'internal scratch']
  %s0 = inlined_call_operand.hbm [shape: bf16[2,32,16], index: 0, kind: input, shape index: {}]
  %s1 = inlined_call_operand.hbm [shape: f32[32,1], index: 1, kind: input, shape index: {}]
  %s2 = inlined_call_operand.hbm [shape: f32[32,1], index: 2, kind: input, shape index: {}]
  %s3 = inlined_call_operand.hbm [shape: bf16[16,32], index: 3, kind: input, shape index: {}]
  %s4 = inlined_call_operand.hbm [shape: bf16[2,16,16], index: 4, kind: output, shape index: {0}]
  %s5 = inlined_call_operand.hbm [shape: f32[2,1,16,2], index: 5, kind: output, shape index: {1}]
  %6 = xla_tuple %s4, %s5
  %s7 = sld [smem:[#allocation0]]
  $region73: #{pointgencon_forward.5} parent=0
    _
  %s9 = ssub.s32 1, %s7
  %s10 = scalar_select 0, %s9, %s7
  $region1: #{pointgencon_forward.5} parent=0
    #allocation2 [shape = 'u8[16384]{0}', space=vmem, size = 0x4000, scoped, tag = 'input window, operand 0']
    #allocation3 [shape = 's32[2]{0}', space=sflag, size = 0x8, scoped, tag = 'scoped memory for pointgencon_forward.5']
    #allocation4 [shape = 's32[2]{0}', space=sflag, size = 0x8, scoped, tag = 'scoped memory for pointgencon_forward.5']
    #allocation5 [shape = 'u8[16384]{0}', space=vmem, size = 0x4000, scoped, tag = 'input window, operand 1, single buffered']
    #allocation6 [shape = 's32[1]{0}', space=sflag, size = 0x4, scoped, tag = 'scoped memory for pointgencon_forward.5']
    #allocation7 [shape = 'u8[16384]{0}', space=vmem, size = 0x4000, scoped, tag = 'input window, operand 2, single buffered']
    #allocation8 [shape = 'u8[4096]{0}', space=vmem, size = 0x1000, scoped, tag = 'input window, operand 3, single buffered']
    #allocation9 [shape = 's32[1]{0}', space=sflag, size = 0x4, scoped, tag = 'scoped memory for pointgencon_forward.5']
    #allocation10 [shape = 'u8[8192]{0}', space=vmem, size = 0x2000, scoped, tag = 'output window, operand 0']
    #allocation11 [shape = 'u8[16384]{0}', space=vmem, size = 0x4000, scoped, tag = 'output window, operand 1']
    #allocation12 [shape = 's32[2]{0}', space=sflag, size = 0x8, scoped, tag = 'scoped memory for pointgencon_forward.5']
    %11 = vsyncpa [#allocation3], 0
    %s12 = scalar_lea.sflag [#allocation3], 1
    %13 = vsyncpa %s12, 0
    %14 = vsyncpa [#allocation6], 0
    %15 = vsyncpa [#allocation9], 0
    %16 = vsyncpa [#allocation4], 0
    %s17 = scalar_lea.sflag [#allocation4], 1
    %18 = vsyncpa %s17, 0
    %19 = vsyncpa [#allocation12], 0
    %s20 = scalar_lea.sflag [#allocation12], 1
    %21 = vsyncpa %s20, 0
    loop: start=0, step=1, limit=4
    $region2: #{pointgencon_forward.5} parent=1 // loop_pre_header
      _
    $region3: #{pointgencon_forward.5} parent=1 // loop_header
      %s23 = sphi 0, %s27
      %p24 = scmp.ge.s32.totalorder %s23, 4
      %s30 = sphi 0, %s42
      %s31 = sphi 0, %s38
      %s32 = sphi 0, %s30
      %s33 = sphi 0, %s31
      %s34 = sphi 0, %s32
      %s35 = sphi 0, %s33
      %s47 = sphi 0, %s49
      %s50 = sphi 0, %s47
      %s51 = sphi 0, %s50
      %s67 = sphi 0, %s51
      %s71 = sphi 0, %s71
      %s73 = sphi 0, %s71
      %s74 = sphi 0, %s73
      %s88 = sphi 0, %s74
      %s92 = sphi 0, %s92
      %s94 = sphi 0, %s92
      %s95 = sphi 0, %s94
      %s109 = sphi 0, %s95
      %s113 = sphi 0, %s113
      %s115 = sphi 0, %s113
      %s116 = sphi 0, %s115
      %s130 = sphi 0, %s116
      %s138 = sphi 0, %s140
      %s141 = sphi 0, %s138
      %s142 = sphi 0, %s141
      %s158 = sphi 0, %s142
      %s166 = sphi 0, %s168
      %s169 = sphi 0, %s166
      %s170 = sphi 0, %s169
      %s186 = sphi 0, %s170
    $region4: #{pointgencon_forward.5} parent=1 // loop_header_branch
      %26 = sbr.rel (%p24) target = $region8
    $region5: #{pointgencon_forward.5} parent=1 // loop_body
      %s28 = ssub.s32 %s23, 1
      %s29 = ssub.s32 %s23, 2
      %s36 = sadd.s32 1, %s31
      %p37 = scmp.ge.s32.totalorder %s36, 1
      %s38 = scalar_select %p37, 0, %s36
      %s39 = sadd.s32 1, %s30
      %s40 = scalar_select %p37, %s39, %s30
      %p41 = scmp.ge.s32.totalorder %s40, 2
      %s42 = scalar_select %p41, 0, %s40
      %s43 = ssub.s32 %s30, %s42
      %s44 = ssub.s32 %s31, %s38
      %s45 = sor.u32 %s43, %s44
      %p46 = scmp.eq.s32.totalorder %s45, 0
      %s48 = sadd.s32 %s47, 1
      %s49 = scalar_select %p46, %s47, %s48
      %p52 = pneg %p46
      %p53 = scmp.eq.s32.totalorder %s23, 1
      %p54 = por %p52, %p53
      %p55 = scmp.ne.s32.totalorder %s47, %s50
      %p56 = scmp.eq.s32.totalorder %s23, 0
      %p57 = por %p55, %p56
      %p58 = scmp.ne.s32.totalorder %s47, %s50
      %p59 = scmp.eq.s32.totalorder %s28, 1
      %p60 = por %p58, %p59
      %p61 = scmp.ne.s32.totalorder %s50, %s51
      %p62 = scmp.eq.s32.totalorder %s28, 0
      %p63 = por %p61, %p62
      %p64 = scmp.ne.s32.totalorder %s50, %s51
      %p65 = scmp.eq.s32.totalorder %s29, 1
      %p66 = por %p64, %p65
      %p68 = scmp.ne.s32.totalorder %s51, %s67
      %p69 = scmp.eq.s32.totalorder %s29, 0
      %p70 = por %p68, %p69
      %s72 = sadd.s32 %s71, 1
      %p75 = scmp.eq.s32.totalorder %s23, 1
      %p76 = scmp.ne.s32.totalorder %s71, %s73
      %p77 = scmp.eq.s32.totalorder %s23, 0
      %p78 = por %p76, %p77
      %p79 = scmp.ne.s32.totalorder %s71, %s73
      %p80 = scmp.eq.s32.totalorder %s28, 1
      %p81 = por %p79, %p80
      %p82 = scmp.ne.s32.totalorder %s73, %s74
      %p83 = scmp.eq.s32.totalorder %s28, 0
      %p84 = por %p82, %p83
      %p85 = scmp.ne.s32.totalorder %s73, %s74
      %p86 = scmp.eq.s32.totalorder %s29, 1
      %p87 = por %p85, %p86
      %p89 = scmp.ne.s32.totalorder %s74, %s88
      %p90 = scmp.eq.s32.totalorder %s29, 0
      %p91 = por %p89, %p90
      %s93 = sadd.s32 %s92, 1
      %p96 = scmp.eq.s32.totalorder %s23, 1
      %p97 = scmp.ne.s32.totalorder %s92, %s94
      %p98 = scmp.eq.s32.totalorder %s23, 0
      %p99 = por %p97, %p98
      %p100 = scmp.ne.s32.totalorder %s92, %s94
      %p101 = scmp.eq.s32.totalorder %s28, 1
      %p102 = por %p100, %p101
      %p103 = scmp.ne.s32.totalorder %s94, %s95
      %p104 = scmp.eq.s32.totalorder %s28, 0
      %p105 = por %p103, %p104
      %p106 = scmp.ne.s32.totalorder %s94, %s95
      %p107 = scmp.eq.s32.totalorder %s29, 1
      %p108 = por %p106, %p107
      %p110 = scmp.ne.s32.totalorder %s95, %s109
      %p111 = scmp.eq.s32.totalorder %s29, 0
      %p112 = por %p110, %p111
      %s114 = sadd.s32 %s113, 1
      %p117 = scmp.eq.s32.totalorder %s23, 1
      %p118 = scmp.ne.s32.totalorder %s113, %s115
      %p119 = scmp.eq.s32.totalorder %s23, 0
      %p120 = por %p118, %p119
      %p121 = scmp.ne.s32.totalorder %s113, %s115
      %p122 = scmp.eq.s32.totalorder %s28, 1
      %p123 = por %p121, %p122
      %p124 = scmp.ne.s32.totalorder %s115, %s116
      %p125 = scmp.eq.s32.totalorder %s28, 0
      %p126 = por %p124, %p125
      %p127 = scmp.ne.s32.totalorder %s115, %s116
      %p128 = scmp.eq.s32.totalorder %s29, 1
      %p129 = por %p127, %p128
      %p131 = scmp.ne.s32.totalorder %s116, %s130
      %p132 = scmp.eq.s32.totalorder %s29, 0
      %p133 = por %p131, %p132
      %s134 = ssub.s32 %s30, %s42
      %s135 = ssub.s32 %s31, %s38
      %s136 = sor.u32 %s134, %s135
      %p137 = scmp.eq.s32.totalorder %s136, 0
      %s139 = sadd.s32 %s138, 1
      %s140 = scalar_select %p137, %s138, %s139
      %p143 = pneg %p137
      %p144 = scmp.eq.s32.totalorder %s23, 1
      %p145 = por %p143, %p144
      %p146 = scmp.ne.s32.totalorder %s138, %s141
      %p147 = scmp.eq.s32.totalorder %s23, 0
      %p148 = por %p146, %p147
      %p149 = scmp.ne.s32.totalorder %s138, %s141
      %p150 = scmp.eq.s32.totalorder %s28, 1
      %p151 = por %p149, %p150
      %p152 = scmp.ne.s32.totalorder %s141, %s142
      %p153 = scmp.eq.s32.totalorder %s28, 0
      %p154 = por %p152, %p153
      %p155 = scmp.ne.s32.totalorder %s141, %s142
      %p156 = scmp.eq.s32.totalorder %s29, 1
      %p157 = por %p155, %p156
      %p159 = scmp.ne.s32.totalorder %s142, %s158
      %p160 = scmp.eq.s32.totalorder %s29, 0
      %p161 = por %p159, %p160
      %s162 = ssub.s32 %s30, %s42
      %s163 = ssub.s32 %s31, %s38
      %s164 = sor.u32 %s162, %s163
      %p165 = scmp.eq.s32.totalorder %s164, 0
      %s167 = sadd.s32 %s166, 1
      %s168 = scalar_select %p165, %s166, %s167
      %p171 = pneg %p165
      %p172 = scmp.eq.s32.totalorder %s23, 1
      %p173 = por %p171, %p172
      %p174 = scmp.ne.s32.totalorder %s166, %s169
      %p175 = scmp.eq.s32.totalorder %s23, 0
      %p176 = por %p174, %p175
      %p177 = scmp.ne.s32.totalorder %s166, %s169
      %p178 = scmp.eq.s32.totalorder %s28, 1
      %p179 = por %p177, %p178
      %p180 = scmp.ne.s32.totalorder %s169, %s170
      %p181 = scmp.eq.s32.totalorder %s28, 0
      %p182 = por %p180, %p181
      %p183 = scmp.ne.s32.totalorder %s169, %s170
      %p184 = scmp.eq.s32.totalorder %s29, 1
      %p185 = por %p183, %p184
      %p187 = scmp.ne.s32.totalorder %s170, %s186
      %p188 = scmp.eq.s32.totalorder %s29, 0
      %p189 = por %p187, %p188
      %p190 = scmp.le.s32.totalorder 1, %s23
      %p191 = scmp.lt.s32.totalorder %s23, 3
      %p192 = pnand %p190, %p191
      %p193 = pneg %p192
      // Predicated region
      $region9: #{pointgencon_forward.5} parent=5 // pred_check
        _
      $region10: #{pointgencon_forward.5} parent=5 // pred_check_branch
        %195 = sbr.rel (%p192) target = $region12
      $region11: #{pointgencon_forward.5} parent=5 // pred_region
        %s196 = ssub.s32 %s23, 1
        // Predicated region
        $region13: #{pointgencon_forward.5} parent=11 // pred_check
          %p197 = pneg %p84
        $region14: #{pointgencon_forward.5} parent=11 // pred_check_branch
          %199 = sbr.rel (%p197) target = $region16
        $region15: #{pointgencon_forward.5} parent=11 // pred_region
          %s201 = ssub.s32 512, 512
          %202 = vsyncadd [#allocation6], %s201
          %s203 = sshll.u32 [#allocation5], 4
          %s204 = int_to_ptr.vmem [resolvable:$true] %s203
          %209 = dma.hbm_to_vmem [thread:$0]  %s1, 512, %s204, [#allocation6], 128, 128, 8
        $region16: #{pointgencon_forward.5} parent=11 // pred_fallthru
          _
        // Predicated region
        $region17: #{pointgencon_forward.5} parent=11 // pred_check
          %p210 = pneg %p105
        $region18: #{pointgencon_forward.5} parent=11 // pred_check_branch
          %212 = sbr.rel (%p210) target = $region20
        $region19: #{pointgencon_forward.5} parent=11 // pred_region
          %s214 = ssub.s32 512, 512
          %215 = vsyncadd [#allocation6], %s214
          %s216 = sshll.u32 [#allocation7], 4
          %s217 = int_to_ptr.vmem [resolvable:$true] %s216
          %222 = dma.hbm_to_vmem [thread:$0]  %s2, 512, %s217, [#allocation6], 128, 128, 8
        $region20: #{pointgencon_forward.5} parent=11 // pred_fallthru
          _
        // Predicated region
        $region21: #{pointgencon_forward.5} parent=11 // pred_check
          %p223 = pneg %p126
        $region22: #{pointgencon_forward.5} parent=11 // pred_check_branch
          %225 = sbr.rel (%p223) target = $region24
        $region23: #{pointgencon_forward.5} parent=11 // pred_region
          %s227 = ssub.s32 128, 128
          %228 = vsyncadd [#allocation9], %s227
          %s229 = sshll.u32 [#allocation8], 4
          %s230 = int_to_ptr.vmem [resolvable:$true] %s229
          %235 = dma.hbm_to_vmem [thread:$0]  %s3, 128, %s230, [#allocation9], 64, 64, 4
        $region24: #{pointgencon_forward.5} parent=11 // pred_fallthru
          _
      $region12: #{pointgencon_forward.5} parent=5 // pred_fallthru
        _
      %p236 = scmp.lt.s32.totalorder %s23, 2
      // Predicated region
      $region25: #{pointgencon_forward.5} parent=5 // pred_check
        %p237 = pneg %p236
      $region26: #{pointgencon_forward.5} parent=5 // pred_check_branch
        %239 = sbr.rel (%p237) target = $region28
      $region27: #{pointgencon_forward.5} parent=5 // pred_region
        // Predicated region
        $region29: #{pointgencon_forward.5} parent=27 // pred_check
          %p240 = pneg %p57
        $region30: #{pointgencon_forward.5} parent=27 // pred_check_branch
          %242 = sbr.rel (%p240) target = $region32
        $region31: #{pointgencon_forward.5} parent=27 // pred_region
          %s243 = sand.u32 %s47, 1
          %s244 = scalar_lea.sflag [#allocation3], %s243
          %s245 = sand.u32 %s47, 1
          %s246 = smul.addr %s245, 16
          %s247 = scalar_lea.vmem [#allocation2], %s246
          %s249 = ssub.s32 256, 256
          %250 = vsyncadd %s244, %s249
          %s251 = smul.addr %s30, 4
          %s252 = sadd.s32 %s31, %s251
          %s253 = smul.addr %s252, 64
          %s254 = scalar_lea.hbm %s0, %s253
          %s255 = sshll.u32 %s247, 4
          %s256 = int_to_ptr.vmem [resolvable:$true] %s255
          %261 = dma.hbm_to_vmem [thread:$0]  %s254, 256, %s256, %s244, 64, 64, 4
        $region32: #{pointgencon_forward.5} parent=27 // pred_fallthru
          _
      $region28: #{pointgencon_forward.5} parent=5 // pred_fallthru
        _
      %p262 = scmp.le.s32.totalorder 1, %s23
      %p263 = scmp.lt.s32.totalorder %s23, 3
      %p264 = pnand %p262, %p263
      %p265 = pneg %p264
      // Predicated region
      $region33: #{pointgencon_forward.5} parent=5 // pred_check
        _
      $region34: #{pointgencon_forward.5} parent=5 // pred_check_branch
        %267 = sbr.rel (%p264) target = $region36
      $region35: #{pointgencon_forward.5} parent=5 // pred_region
        %s268 = ssub.s32 %s23, 1
        %s269 = sand.u32 %s50, 1
        %s270 = scalar_lea.sflag [#allocation3], %s269
        %s271 = sand.u32 %s50, 1
        %s272 = smul.addr %s271, 16
        %s273 = scalar_lea.vmem [#allocation2], %s272
        // Predicated region
        $region37: #{pointgencon_forward.5} parent=35 // pred_check
          %p274 = pneg %p63
        $region38: #{pointgencon_forward.5} parent=35 // pred_check_branch
          %276 = sbr.rel (%p274) target = $region40
        $region39: #{pointgencon_forward.5} parent=35 // pred_region
          %277 = dma.done %s270, 256
        $region40: #{pointgencon_forward.5} parent=35 // pred_fallthru
          _
        // Predicated region
        $region41: #{pointgencon_forward.5} parent=35 // pred_check
          %p278 = pneg %p84
        $region42: #{pointgencon_forward.5} parent=35 // pred_check_branch
          %280 = sbr.rel (%p278) target = $region44
        $region43: #{pointgencon_forward.5} parent=35 // pred_region
          %281 = dma.done [#allocation6], 512
        $region44: #{pointgencon_forward.5} parent=35 // pred_fallthru
          _
        // Predicated region
        $region45: #{pointgencon_forward.5} parent=35 // pred_check
          %p282 = pneg %p105
        $region46: #{pointgencon_forward.5} parent=35 // pred_check_branch
          %284 = sbr.rel (%p282) target = $region48
        $region47: #{pointgencon_forward.5} parent=35 // pred_region
          %285 = dma.done [#allocation6], 512
        $region48: #{pointgencon_forward.5} parent=35 // pred_fallthru
          _
        // Predicated region
        $region49: #{pointgencon_forward.5} parent=35 // pred_check
          %p286 = pneg %p126
        $region50: #{pointgencon_forward.5} parent=35 // pred_check_branch
          %288 = sbr.rel (%p286) target = $region52
        $region51: #{pointgencon_forward.5} parent=35 // pred_region
          %289 = dma.done [#allocation9], 128
        $region52: #{pointgencon_forward.5} parent=35 // pred_fallthru
          _
        %s290 = sand.u32 %s50, 1
        %s291 = scalar_lea.sflag [#allocation3], %s290
        %s292 = sand.u32 %s50, 1
        %s293 = smul.addr %s292, 16
        %s294 = scalar_lea.vmem [#allocation2], %s293
        %p295 = pneg %p63
        %p296 = pneg %p60
        %p297 = pneg %p84
        %p298 = pneg %p81
        %p299 = pneg %p105
        %p300 = pneg %p102
        %p301 = pneg %p126
        %p302 = pneg %p123
        %p303 = pneg %p154
        %p304 = pneg %p151
        %s305 = sand.u32 %s141, 1
        %s306 = scalar_lea.sflag [#allocation4], %s305
        %s307 = sand.u32 %s141, 1
        %s308 = smul.addr %s307, 8
        %s309 = scalar_lea.vmem [#allocation10], %s308
        %p310 = pneg %p182
        %p311 = pneg %p179
        %s312 = sand.u32 %s169, 1
        %s313 = scalar_lea.sflag [#allocation12], %s312
        %s314 = sand.u32 %s169, 1
        %s315 = smul.addr %s314, 16
        %s316 = scalar_lea.vmem [#allocation11], %s315
        %v318 = vld [vmem:[%s273] sm:$0xf]
        %v319 = vld [vmem:[%s273 + $0x4] sm:$0xf]
        %v320 = vld [vmem:[%s273 + $0x8] sm:$0xf]
        %v321 = vld [vmem:[%s273 + $0xc] sm:$0xf]
        %v322 = vld [vmem:[#allocation5] sm:$0xff]
        %v323 = vld [vmem:[#allocation5 + $0x8] sm:$0xff]
        %v324 = vld [vmem:[#allocation5 + $0x10] sm:$0xff]
        %v325 = vld [vmem:[#allocation5 + $0x18] sm:$0xff]
        %v326 = vunpack.c.l.bf16 %v318
        %v327 = vunpack.c.l.bf16 %v319
        %v328 = vunpack.c.l.bf16 %v320
        %v329 = vunpack.c.l.bf16 %v321
        %331 = vset.pattern.permute.xlu0 0
        %332 = vperm.xlu0 %331, %v322
        %v333 = vpop.permute.xlu0 %332
        %336 = vset.pattern.permute.xlu0 0
        %337 = vperm.xlu0 %336, %v323
        %v338 = vpop.permute.xlu0 %337
        %341 = vset.pattern.permute.xlu0 0
        %342 = vperm.xlu0 %341, %v324
        %v343 = vpop.permute.xlu0 %342
        %346 = vset.pattern.permute.xlu0 0
        %347 = vperm.xlu0 %346, %v325
        %v348 = vpop.permute.xlu0 %347
        %v350 = vmul.f32 %v326, %v333
        %v351 = vmul.f32 %v327, %v338
        %v352 = vmul.f32 %v328, %v343
        %v353 = vmul.f32 %v329, %v348
        %v354 = vld [vmem:[#allocation7] sm:$0xff]
        %v355 = vld [vmem:[#allocation7 + $0x8] sm:$0xff]
        %v356 = vld [vmem:[#allocation7 + $0x10] sm:$0xff]
        %v357 = vld [vmem:[#allocation7 + $0x18] sm:$0xff]
        %359 = vset.pattern.permute.xlu0 0
        %360 = vperm.xlu0 %359, %v354
        %v361 = vpop.permute.xlu0 %360
        %364 = vset.pattern.permute.xlu0 0
        %365 = vperm.xlu0 %364, %v355
        %v366 = vpop.permute.xlu0 %365
        %369 = vset.pattern.permute.xlu0 0
        %370 = vperm.xlu0 %369, %v356
        %v371 = vpop.permute.xlu0 %370
        %374 = vset.pattern.permute.xlu0 0
        %375 = vperm.xlu0 %374, %v357
        %v376 = vpop.permute.xlu0 %375
        %v378 = vadd.f32 %v350, %v361
        %v379 = vadd.f32 %v351, %v366
        %v380 = vadd.f32 %v352, %v371
        %v381 = vadd.f32 %v353, %v376
        %v382 = vmax.f32 %v378, 0.0
        %v383 = vmax.f32 %v379, 0.0
        %v384 = vmax.f32 %v380, 0.0
        %v385 = vmax.f32 %v381, 0.0
        %v386 = vld [vmem:[#allocation8] sm:$0xf]
        %v387 = vld [vmem:[#allocation8 + $0x4] sm:$0xf]
        %v388 = vpack.c.bf16 %v383, %v382
        %v389 = vpack.c.bf16 %v385, %v384
        %v392 = vunpack.c.l.b16 %v386
        %v393 = vunpack.c.l.b16 %v387
        %v394 = vpack.c.b16 %v393, %v392
        %vm395 = vcmask 261120
        %v397 = vsel %vm395, %v394, 0
        %399 = vmatprep.subr.bf16.mxu0 0
        %400 = vmatpush1.bf16.msra.mxu0 %v388
        %401 = vmatprep.subr.bf16.mxu0 0
        %402 = vmatpush1.bf16.msra.mxu0 %v389
        %403 = vmatprep.subr.bf16.mxu0 0
        %404 = vmatpush1.bf16.msra.mxu0 0
        %405 = vmatprep.subr.bf16.mxu0 0
        %406 = vmatpush1.bf16.msra.mxu0 0
        %407 = vmatprep.subr.bf16.mxu0 0
        %408 = vmatpush1.bf16.msra.mxu0 0
        %409 = vmatprep.subr.bf16.mxu0 0
        %410 = vmatpush1.bf16.msra.mxu0 0
        %411 = vmatprep.subr.bf16.mxu0 0
        %412 = vmatpush1.bf16.msra.mxu0 0
        %413 = vmatprep.subr.bf16.mxu0 0
        %414 = vmatpush1.bf16.msra.mxu0 0
        %415 = vmatprep.subr.bf16.mxu0 0
        %416 = vmatpush1.bf16.msra.mxu0 0
        %417 = vmatprep.subr.bf16.mxu0 0
        %418 = vmatpush1.bf16.msra.mxu0 0
        %419 = vmatprep.subr.bf16.mxu0 0
        %420 = vmatpush1.bf16.msra.mxu0 0
        %421 = vmatprep.subr.bf16.mxu0 0
        %422 = vmatpush1.bf16.msra.mxu0 0
        %423 = vmatprep.subr.bf16.mxu0 0
        %424 = vmatpush1.bf16.msra.mxu0 0
        %425 = vmatprep.subr.bf16.mxu0 0
        %426 = vmatpush1.bf16.msra.mxu0 0
        %427 = vmatprep.subr.bf16.mxu0 0
        %428 = vmatpush1.bf16.msra.mxu0 0
        %429 = vmatprep.subr.bf16.mxu0 0
        %430 = vmatpush1.bf16.msra.mxu0 0
        %431 = vmatprep.mubr.bf16.mxu0 0
        %432 = vmatmul.mubr.bf16.gmra.mrb[0].mxu0 %v397
        %v433 = vpop.f32.mrb[0].mxu0
        %v434 = vadd.f32 0.0, %v433
        %v435 = vpop.f32.mrb[0].mxu0
        %v436 = vpop.f32.mrb[0].mxu0
        %v437 = vadd.f32 0.0, %v436
        %v438 = vpop.f32.mrb[0].mxu0
        %439 = vdwg.mxu0
        %v440 = vpack.c.bf16 %v437, %v434
        %v442 = vunpack.c.l.b16 %v440
        %v443 = vunpack.c.h.b16 %v440
        %v444 = vpack.c.b16 %v442, %v442
        %v445 = vpack.c.b16 %v443, %v443
        %vm448 = vcmask 125952
        %449 = vst.msk [vmem:[%s309] sm:$0xf] %vm448, %v444
        %450 = vst.msk [vmem:[%s309 + $0x4] sm:$0xf] %vm448, %v445
        %vm451 = vcmask 130048
        %v452 = vsel %vm451, %v434, 0.0
        %453 = vadd.xlane.f32.xlu0 %v452
        %v454 = vpop.xlane.xlu0 %453
        %v455 = vsel %vm451, %v437, 0.0
        %456 = vadd.xlane.f32.xlu0 %v455
        %v457 = vpop.xlane.xlu0 %456
        %vm458 = vcmask 7168
        %459 = vst.msk [vmem:[%s316] sm:$0xff] %vm458, %v454
        %460 = vst.msk [vmem:[%s316 + $0x8] sm:$0xff] %vm458, %v457
        %v461 = vmul.f32 %v434, %v434
        %v462 = vmul.f32 %v437, %v437
        %v463 = vsel %vm451, %v461, 0.0
        %464 = vadd.xlane.f32.xlu0 %v463
        %v465 = vpop.xlane.xlu0 %464
        %v466 = vsel %vm451, %v462, 0.0
        %467 = vadd.xlane.f32.xlu0 %v466
        %v468 = vpop.xlane.xlu0 %467
        %vm469 = vcmask 15368
        %470 = vst.msk [vmem:[%s316] sm:$0xff] %vm469, %v465
        %471 = vst.msk [vmem:[%s316 + $0x8] sm:$0xff] %vm469, %v468
        %s472 = sand.u32 %s141, 1
        %s473 = scalar_lea.sflag [#allocation4], %s472
        %s474 = sand.u32 %s141, 1
        %s475 = smul.addr %s474, 8
        %s476 = scalar_lea.vmem [#allocation10], %s475
        %s477 = sand.u32 %s169, 1
        %s478 = scalar_lea.sflag [#allocation12], %s477
        %s479 = sand.u32 %s169, 1
        %s480 = smul.addr %s479, 16
        %s481 = scalar_lea.vmem [#allocation11], %s480
        // Predicated region
        $region53: #{pointgencon_forward.5} parent=35 // pred_check
          %p482 = pneg %p151
        $region54: #{pointgencon_forward.5} parent=35 // pred_check_branch
          %484 = sbr.rel (%p482) target = $region56
        $region55: #{pointgencon_forward.5} parent=35 // pred_region
          %s486 = ssub.s32 128, 128
          %487 = vsyncadd %s473, %s486
          %s488 = smul.addr %s32, 2
          %s489 = sadd.s32 %s33, %s488
          %s490 = smul.addr %s489, 64
          %s491 = scalar_lea.hbm %s4, %s490
          %s492 = sshll.u32 %s476, 4
          %s493 = int_to_ptr.vmem [resolvable:$true] %s492
          %498 = dma.vmem_to_hbm [thread:$0]  %s493, 128, %s491, %s473, 64, 64, 4
        $region56: #{pointgencon_forward.5} parent=35 // pred_fallthru
          _
        // Predicated region
        $region57: #{pointgencon_forward.5} parent=35 // pred_check
          %p499 = pneg %p179
        $region58: #{pointgencon_forward.5} parent=35 // pred_check_branch
          %501 = sbr.rel (%p499) target = $region60
        $region59: #{pointgencon_forward.5} parent=35 // pred_region
          %s503 = ssub.s32 256, 256
          %504 = vsyncadd %s478, %s503
          %s505 = smul.addr %s33, 2
          %s506 = smul.addr %s32, 2
          %s507 = sadd.s32 %s505, %s506
          %s508 = smul.addr %s507, 128
          %s509 = scalar_lea.hbm %s5, %s508
          %s510 = sshll.u32 %s481, 4
          %s511 = int_to_ptr.vmem [resolvable:$true] %s510
          %516 = dma.vmem_to_hbm [thread:$0]  %s511, 256, %s509, %s478, 128, 128, 8
        $region60: #{pointgencon_forward.5} parent=35 // pred_fallthru
          _
      $region36: #{pointgencon_forward.5} parent=5 // pred_fallthru
        _
      %p517 = scmp.le.s32.totalorder 2, %s23
      // Predicated region
      $region61: #{pointgencon_forward.5} parent=5 // pred_check
        %p518 = pneg %p517
      $region62: #{pointgencon_forward.5} parent=5 // pred_check_branch
        %520 = sbr.rel (%p518) target = $region64
      $region63: #{pointgencon_forward.5} parent=5 // pred_region
        %s521 = ssub.s32 %s23, 2
        // Predicated region
        $region65: #{pointgencon_forward.5} parent=63 // pred_check
          %p522 = pneg %p157
        $region66: #{pointgencon_forward.5} parent=63 // pred_check_branch
          %524 = sbr.rel (%p522) target = $region68
        $region67: #{pointgencon_forward.5} parent=63 // pred_region
          %s525 = sand.u32 %s142, 1
          %s526 = scalar_lea.sflag [#allocation4], %s525
          %s527 = sand.u32 %s142, 1
          %s528 = smul.addr %s527, 8
          %s529 = scalar_lea.vmem [#allocation10], %s528
          %530 = dma.done %s526, 128
        $region68: #{pointgencon_forward.5} parent=63 // pred_fallthru
          _
        // Predicated region
        $region69: #{pointgencon_forward.5} parent=63 // pred_check
          %p531 = pneg %p185
        $region70: #{pointgencon_forward.5} parent=63 // pred_check_branch
          %533 = sbr.rel (%p531) target = $region72
        $region71: #{pointgencon_forward.5} parent=63 // pred_region
          %s534 = sand.u32 %s170, 1
          %s535 = scalar_lea.sflag [#allocation12], %s534
          %s536 = sand.u32 %s170, 1
          %s537 = smul.addr %s536, 16
          %s538 = scalar_lea.vmem [#allocation11], %s537
          %539 = dma.done %s535, 256
        $region72: #{pointgencon_forward.5} parent=63 // pred_fallthru
          _
      $region64: #{pointgencon_forward.5} parent=5 // pred_fallthru
        _
    $region6: #{pointgencon_forward.5} parent=1 // loop_footer
      %s27 = sadd.s32 1, %s23
    $region7: #{pointgencon_forward.5} parent=1 // loop_footer_branch
      %22 = sbr.rel target = $region3
    $region8: #{pointgencon_forward.5} parent=1 // loop_exit
      _
    %540 = vsyncpa [#allocation3], 1
    %s541 = scalar_lea.sflag [#allocation3], 1
    %542 = vsyncpa %s541, 1
    %543 = vsyncpa [#allocation6], 1
    %544 = vsyncpa [#allocation9], 1
    %545 = vsyncpa [#allocation4], 1
    %s546 = scalar_lea.sflag [#allocation4], 1
    %547 = vsyncpa %s546, 1
    %548 = vsyncpa [#allocation12], 1
    %s549 = scalar_lea.sflag [#allocation12], 1
    %550 = vsyncpa %s549, 1

// kernel: pointgencon_forward.6
$region0: #{pointgencon_forward.6}
  #allocation0 [shape = 'u32[]', space=smem, size = 0x4, offset = 0x4, fixed_abs, tag = 'smem constant byte address 0x4 - core index']
  #allocation1 [shape = 'u32[144,128]{1,0:T(1,128)}', space=vmem, size = 0x12000, scoped, tag = 'internal scratch']
  %s0 = inlined_call_operand.hbm [shape: bf16[2,16,16], index: 0, kind: input, shape index: {}]
  %s1 = inlined_call_operand.hbm [shape: f32[16,1], index: 1, kind: input, shape index: {}]
  %s2 = inlined_call_operand.hbm [shape: f32[16,1], index: 2, kind: input, shape index: {}]
  %s3 = inlined_call_operand.hbm [shape: bf16[8,16], index: 3, kind: input, shape index: {}]
  %s4 = inlined_call_operand.hbm [shape: bf16[2,8,16], index: 4, kind: output, shape index: {0}]
  %s5 = inlined_call_operand.hbm [shape: f32[2,1,8,2], index: 5, kind: output, shape index: {1}]
  %6 = xla_tuple %s4, %s5
  %s7 = sld [smem:[#allocation0]]
  $region73: #{pointgencon_forward.6} parent=0
    _
  %s9 = ssub.s32 1, %s7
  %s10 = scalar_select 0, %s9, %s7
  $region1: #{pointgencon_forward.6} parent=0
    #allocation2 [shape = 'u8[8192]{0}', space=vmem, size = 0x2000, scoped, tag = 'input window, operand 0']
    #allocation3 [shape = 's32[2]{0}', space=sflag, size = 0x8, scoped, tag = 'scoped memory for pointgencon_forward.6']
    #allocation4 [shape = 's32[2]{0}', space=sflag, size = 0x8, scoped, tag = 'scoped memory for pointgencon_forward.6']
    #allocation5 [shape = 'u8[8192]{0}', space=vmem, size = 0x2000, scoped, tag = 'input window, operand 1, single buffered']
    #allocation6 [shape = 's32[1]{0}', space=sflag, size = 0x4, scoped, tag = 'scoped memory for pointgencon_forward.6']
    #allocation7 [shape = 'u8[8192]{0}', space=vmem, size = 0x2000, scoped, tag = 'input window, operand 2, single buffered']
    #allocation8 [shape = 'u8[2048]{0}', space=vmem, size = 0x800, scoped, tag = 'input window, operand 3, single buffered']
    #allocation9 [shape = 's32[1]{0}', space=sflag, size = 0x4, scoped, tag = 'scoped memory for pointgencon_forward.6']
    #allocation10 [shape = 'u8[4096]{0}', space=vmem, size = 0x1000, scoped, tag = 'output window, operand 0']
    #allocation11 [shape = 'u8[8192]{0}', space=vmem, size = 0x2000, scoped, tag = 'output window, operand 1']
    #allocation12 [shape = 's32[2]{0}', space=sflag, size = 0x8, scoped, tag = 'scoped memory for pointgencon_forward.6']
    %11 = vsyncpa [#allocation3], 0
    %s12 = scalar_lea.sflag [#allocation3], 1
    %13 = vsyncpa %s12, 0
    %14 = vsyncpa [#allocation6], 0
    %15 = vsyncpa [#allocation9], 0
    %16 = vsyncpa [#allocation4], 0
    %s17 = scalar_lea.sflag [#allocation4], 1
    %18 = vsyncpa %s17, 0
    %19 = vsyncpa [#allocation12], 0
    %s20 = scalar_lea.sflag [#allocation12], 1
    %21 = vsyncpa %s20, 0
    loop: start=0, step=1, limit=4
    $region2: #{pointgencon_forward.6} parent=1 // loop_pre_header
      _
    $region3: #{pointgencon_forward.6} parent=1 // loop_header
      %s23 = sphi 0, %s27
      %p24 = scmp.ge.s32.totalorder %s23, 4
      %s30 = sphi 0, %s42
      %s31 = sphi 0, %s38
      %s32 = sphi 0, %s30
      %s33 = sphi 0, %s31
      %s34 = sphi 0, %s32
      %s35 = sphi 0, %s33
      %s47 = sphi 0, %s49
      %s50 = sphi 0, %s47
      %s51 = sphi 0, %s50
      %s67 = sphi 0, %s51
      %s71 = sphi 0, %s71
      %s73 = sphi 0, %s71
      %s74 = sphi 0, %s73
      %s88 = sphi 0, %s74
      %s92 = sphi 0, %s92
      %s94 = sphi 0, %s92
      %s95 = sphi 0, %s94
      %s109 = sphi 0, %s95
      %s113 = sphi 0, %s113
      %s115 = sphi 0, %s113
      %s116 = sphi 0, %s115
      %s130 = sphi 0, %s116
      %s138 = sphi 0, %s140
      %s141 = sphi 0, %s138
      %s142 = sphi 0, %s141
      %s158 = sphi 0, %s142
      %s166 = sphi 0, %s168
      %s169 = sphi 0, %s166
      %s170 = sphi 0, %s169
      %s186 = sphi 0, %s170
    $region4: #{pointgencon_forward.6} parent=1 // loop_header_branch
      %26 = sbr.rel (%p24) target = $region8
    $region5: #{pointgencon_forward.6} parent=1 // loop_body
      %s28 = ssub.s32 %s23, 1
      %s29 = ssub.s32 %s23, 2
      %s36 = sadd.s32 1, %s31
      %p37 = scmp.ge.s32.totalorder %s36, 1
      %s38 = scalar_select %p37, 0, %s36
      %s39 = sadd.s32 1, %s30
      %s40 = scalar_select %p37, %s39, %s30
      %p41 = scmp.ge.s32.totalorder %s40, 2
      %s42 = scalar_select %p41, 0, %s40
      %s43 = ssub.s32 %s30, %s42
      %s44 = ssub.s32 %s31, %s38
      %s45 = sor.u32 %s43, %s44
      %p46 = scmp.eq.s32.totalorder %s45, 0
      %s48 = sadd.s32 %s47, 1
      %s49 = scalar_select %p46, %s47, %s48
      %p52 = pneg %p46
      %p53 = scmp.eq.s32.totalorder %s23, 1
      %p54 = por %p52, %p53
      %p55 = scmp.ne.s32.totalorder %s47, %s50
      %p56 = scmp.eq.s32.totalorder %s23, 0
      %p57 = por %p55, %p56
      %p58 = scmp.ne.s32.totalorder %s47, %s50
      %p59 = scmp.eq.s32.totalorder %s28, 1
      %p60 = por %p58, %p59
      %p61 = scmp.ne.s32.totalorder %s50, %s51
      %p62 = scmp.eq.s32.totalorder %s28, 0
      %p63 = por %p61, %p62
      %p64 = scmp.ne.s32.totalorder %s50, %s51
      %p65 = scmp.eq.s32.totalorder %s29, 1
      %p66 = por %p64, %p65
      %p68 = scmp.ne.s32.totalorder %s51, %s67
      %p69 = scmp.eq.s32.totalorder %s29, 0
      %p70 = por %p68, %p69
      %s72 = sadd.s32 %s71, 1
      %p75 = scmp.eq.s32.totalorder %s23, 1
      %p76 = scmp.ne.s32.totalorder %s71, %s73
      %p77 = scmp.eq.s32.totalorder %s23, 0
      %p78 = por %p76, %p77
      %p79 = scmp.ne.s32.totalorder %s71, %s73
      %p80 = scmp.eq.s32.totalorder %s28, 1
      %p81 = por %p79, %p80
      %p82 = scmp.ne.s32.totalorder %s73, %s74
      %p83 = scmp.eq.s32.totalorder %s28, 0
      %p84 = por %p82, %p83
      %p85 = scmp.ne.s32.totalorder %s73, %s74
      %p86 = scmp.eq.s32.totalorder %s29, 1
      %p87 = por %p85, %p86
      %p89 = scmp.ne.s32.totalorder %s74, %s88
      %p90 = scmp.eq.s32.totalorder %s29, 0
      %p91 = por %p89, %p90
      %s93 = sadd.s32 %s92, 1
      %p96 = scmp.eq.s32.totalorder %s23, 1
      %p97 = scmp.ne.s32.totalorder %s92, %s94
      %p98 = scmp.eq.s32.totalorder %s23, 0
      %p99 = por %p97, %p98
      %p100 = scmp.ne.s32.totalorder %s92, %s94
      %p101 = scmp.eq.s32.totalorder %s28, 1
      %p102 = por %p100, %p101
      %p103 = scmp.ne.s32.totalorder %s94, %s95
      %p104 = scmp.eq.s32.totalorder %s28, 0
      %p105 = por %p103, %p104
      %p106 = scmp.ne.s32.totalorder %s94, %s95
      %p107 = scmp.eq.s32.totalorder %s29, 1
      %p108 = por %p106, %p107
      %p110 = scmp.ne.s32.totalorder %s95, %s109
      %p111 = scmp.eq.s32.totalorder %s29, 0
      %p112 = por %p110, %p111
      %s114 = sadd.s32 %s113, 1
      %p117 = scmp.eq.s32.totalorder %s23, 1
      %p118 = scmp.ne.s32.totalorder %s113, %s115
      %p119 = scmp.eq.s32.totalorder %s23, 0
      %p120 = por %p118, %p119
      %p121 = scmp.ne.s32.totalorder %s113, %s115
      %p122 = scmp.eq.s32.totalorder %s28, 1
      %p123 = por %p121, %p122
      %p124 = scmp.ne.s32.totalorder %s115, %s116
      %p125 = scmp.eq.s32.totalorder %s28, 0
      %p126 = por %p124, %p125
      %p127 = scmp.ne.s32.totalorder %s115, %s116
      %p128 = scmp.eq.s32.totalorder %s29, 1
      %p129 = por %p127, %p128
      %p131 = scmp.ne.s32.totalorder %s116, %s130
      %p132 = scmp.eq.s32.totalorder %s29, 0
      %p133 = por %p131, %p132
      %s134 = ssub.s32 %s30, %s42
      %s135 = ssub.s32 %s31, %s38
      %s136 = sor.u32 %s134, %s135
      %p137 = scmp.eq.s32.totalorder %s136, 0
      %s139 = sadd.s32 %s138, 1
      %s140 = scalar_select %p137, %s138, %s139
      %p143 = pneg %p137
      %p144 = scmp.eq.s32.totalorder %s23, 1
      %p145 = por %p143, %p144
      %p146 = scmp.ne.s32.totalorder %s138, %s141
      %p147 = scmp.eq.s32.totalorder %s23, 0
      %p148 = por %p146, %p147
      %p149 = scmp.ne.s32.totalorder %s138, %s141
      %p150 = scmp.eq.s32.totalorder %s28, 1
      %p151 = por %p149, %p150
      %p152 = scmp.ne.s32.totalorder %s141, %s142
      %p153 = scmp.eq.s32.totalorder %s28, 0
      %p154 = por %p152, %p153
      %p155 = scmp.ne.s32.totalorder %s141, %s142
      %p156 = scmp.eq.s32.totalorder %s29, 1
      %p157 = por %p155, %p156
      %p159 = scmp.ne.s32.totalorder %s142, %s158
      %p160 = scmp.eq.s32.totalorder %s29, 0
      %p161 = por %p159, %p160
      %s162 = ssub.s32 %s30, %s42
      %s163 = ssub.s32 %s31, %s38
      %s164 = sor.u32 %s162, %s163
      %p165 = scmp.eq.s32.totalorder %s164, 0
      %s167 = sadd.s32 %s166, 1
      %s168 = scalar_select %p165, %s166, %s167
      %p171 = pneg %p165
      %p172 = scmp.eq.s32.totalorder %s23, 1
      %p173 = por %p171, %p172
      %p174 = scmp.ne.s32.totalorder %s166, %s169
      %p175 = scmp.eq.s32.totalorder %s23, 0
      %p176 = por %p174, %p175
      %p177 = scmp.ne.s32.totalorder %s166, %s169
      %p178 = scmp.eq.s32.totalorder %s28, 1
      %p179 = por %p177, %p178
      %p180 = scmp.ne.s32.totalorder %s169, %s170
      %p181 = scmp.eq.s32.totalorder %s28, 0
      %p182 = por %p180, %p181
      %p183 = scmp.ne.s32.totalorder %s169, %s170
      %p184 = scmp.eq.s32.totalorder %s29, 1
      %p185 = por %p183, %p184
      %p187 = scmp.ne.s32.totalorder %s170, %s186
      %p188 = scmp.eq.s32.totalorder %s29, 0
      %p189 = por %p187, %p188
      %p190 = scmp.le.s32.totalorder 1, %s23
      %p191 = scmp.lt.s32.totalorder %s23, 3
      %p192 = pnand %p190, %p191
      %p193 = pneg %p192
      // Predicated region
      $region9: #{pointgencon_forward.6} parent=5 // pred_check
        _
      $region10: #{pointgencon_forward.6} parent=5 // pred_check_branch
        %195 = sbr.rel (%p192) target = $region12
      $region11: #{pointgencon_forward.6} parent=5 // pred_region
        %s196 = ssub.s32 %s23, 1
        // Predicated region
        $region13: #{pointgencon_forward.6} parent=11 // pred_check
          %p197 = pneg %p84
        $region14: #{pointgencon_forward.6} parent=11 // pred_check_branch
          %199 = sbr.rel (%p197) target = $region16
        $region15: #{pointgencon_forward.6} parent=11 // pred_region
          %s201 = ssub.s32 256, 256
          %202 = vsyncadd [#allocation6], %s201
          %s203 = sshll.u32 [#allocation5], 4
          %s204 = int_to_ptr.vmem [resolvable:$true] %s203
          %209 = dma.hbm_to_vmem [thread:$0]  %s1, 256, %s204, [#allocation6], 128, 128, 8
        $region16: #{pointgencon_forward.6} parent=11 // pred_fallthru
          _
        // Predicated region
        $region17: #{pointgencon_forward.6} parent=11 // pred_check
          %p210 = pneg %p105
        $region18: #{pointgencon_forward.6} parent=11 // pred_check_branch
          %212 = sbr.rel (%p210) target = $region20
        $region19: #{pointgencon_forward.6} parent=11 // pred_region
          %s214 = ssub.s32 256, 256
          %215 = vsyncadd [#allocation6], %s214
          %s216 = sshll.u32 [#allocation7], 4
          %s217 = int_to_ptr.vmem [resolvable:$true] %s216
          %222 = dma.hbm_to_vmem [thread:$0]  %s2, 256, %s217, [#allocation6], 128, 128, 8
        $region20: #{pointgencon_forward.6} parent=11 // pred_fallthru
          _
        // Predicated region
        $region21: #{pointgencon_forward.6} parent=11 // pred_check
          %p223 = pneg %p126
        $region22: #{pointgencon_forward.6} parent=11 // pred_check_branch
          %225 = sbr.rel (%p223) target = $region24
        $region23: #{pointgencon_forward.6} parent=11 // pred_region
          %s227 = ssub.s32 64, 64
          %228 = vsyncadd [#allocation9], %s227
          %s230 = sshll.u32 [#allocation8], 4
          %s231 = int_to_ptr.vmem [resolvable:$true] %s230
          %233 = dma.hbm_to_vmem [thread:$0]  %s3, 64, %s231, [#allocation9]
        $region24: #{pointgencon_forward.6} parent=11 // pred_fallthru
          _
      $region12: #{pointgencon_forward.6} parent=5 // pred_fallthru
        _
      %p234 = scmp.lt.s32.totalorder %s23, 2
      // Predicated region
      $region25: #{pointgencon_forward.6} parent=5 // pred_check
        %p235 = pneg %p234
      $region26: #{pointgencon_forward.6} parent=5 // pred_check_branch
        %237 = sbr.rel (%p235) target = $region28
      $region27: #{pointgencon_forward.6} parent=5 // pred_region
        // Predicated region
        $region29: #{pointgencon_forward.6} parent=27 // pred_check
          %p238 = pneg %p57
        $region30: #{pointgencon_forward.6} parent=27 // pred_check_branch
          %240 = sbr.rel (%p238) target = $region32
        $region31: #{pointgencon_forward.6} parent=27 // pred_region
          %s241 = sand.u32 %s47, 1
          %s242 = scalar_lea.sflag [#allocation3], %s241
          %s243 = sand.u32 %s47, 1
          %s244 = smul.addr %s243, 8
          %s245 = scalar_lea.vmem [#allocation2], %s244
          %s247 = ssub.s32 128, 128
          %248 = vsyncadd %s242, %s247
          %s249 = smul.addr %s30, 2
          %s250 = sadd.s32 %s31, %s249
          %s251 = smul.addr %s250, 64
          %s252 = scalar_lea.hbm %s0, %s251
          %s253 = sshll.u32 %s245, 4
          %s254 = int_to_ptr.vmem [resolvable:$true] %s253
          %259 = dma.hbm_to_vmem [thread:$0]  %s252, 128, %s254, %s242, 64, 64, 4
        $region32: #{pointgencon_forward.6} parent=27 // pred_fallthru
          _
      $region28: #{pointgencon_forward.6} parent=5 // pred_fallthru
        _
      %p260 = scmp.le.s32.totalorder 1, %s23
      %p261 = scmp.lt.s32.totalorder %s23, 3
      %p262 = pnand %p260, %p261
      %p263 = pneg %p262
      // Predicated region
      $region33: #{pointgencon_forward.6} parent=5 // pred_check
        _
      $region34: #{pointgencon_forward.6} parent=5 // pred_check_branch
        %265 = sbr.rel (%p262) target = $region36
      $region35: #{pointgencon_forward.6} parent=5 // pred_region
        %s266 = ssub.s32 %s23, 1
        %s267 = sand.u32 %s50, 1
        %s268 = scalar_lea.sflag [#allocation3], %s267
        %s269 = sand.u32 %s50, 1
        %s270 = smul.addr %s269, 8
        %s271 = scalar_lea.vmem [#allocation2], %s270
        // Predicated region
        $region37: #{pointgencon_forward.6} parent=35 // pred_check
          %p272 = pneg %p63
        $region38: #{pointgencon_forward.6} parent=35 // pred_check_branch
          %274 = sbr.rel (%p272) target = $region40
        $region39: #{pointgencon_forward.6} parent=35 // pred_region
          %275 = dma.done %s268, 128
        $region40: #{pointgencon_forward.6} parent=35 // pred_fallthru
          _
        // Predicated region
        $region41: #{pointgencon_forward.6} parent=35 // pred_check
          %p276 = pneg %p84
        $region42: #{pointgencon_forward.6} parent=35 // pred_check_branch
          %278 = sbr.rel (%p276) target = $region44
        $region43: #{pointgencon_forward.6} parent=35 // pred_region
          %279 = dma.done [#allocation6], 256
        $region44: #{pointgencon_forward.6} parent=35 // pred_fallthru
          _
        // Predicated region
        $region45: #{pointgencon_forward.6} parent=35 // pred_check
          %p280 = pneg %p105
        $region46: #{pointgencon_forward.6} parent=35 // pred_check_branch
          %282 = sbr.rel (%p280) target = $region48
        $region47: #{pointgencon_forward.6} parent=35 // pred_region
          %283 = dma.done [#allocation6], 256
        $region48: #{pointgencon_forward.6} parent=35 // pred_fallthru
          _
        // Predicated region
        $region49: #{pointgencon_forward.6} parent=35 // pred_check
          %p284 = pneg %p126
        $region50: #{pointgencon_forward.6} parent=35 // pred_check_branch
          %286 = sbr.rel (%p284) target = $region52
        $region51: #{pointgencon_forward.6} parent=35 // pred_region
          %287 = dma.done [#allocation9], 64
        $region52: #{pointgencon_forward.6} parent=35 // pred_fallthru
          _
        %s288 = sand.u32 %s50, 1
        %s289 = scalar_lea.sflag [#allocation3], %s288
        %s290 = sand.u32 %s50, 1
        %s291 = smul.addr %s290, 8
        %s292 = scalar_lea.vmem [#allocation2], %s291
        %p293 = pneg %p63
        %p294 = pneg %p60
        %p295 = pneg %p84
        %p296 = pneg %p81
        %p297 = pneg %p105
        %p298 = pneg %p102
        %p299 = pneg %p126
        %p300 = pneg %p123
        %p301 = pneg %p154
        %p302 = pneg %p151
        %s303 = sand.u32 %s141, 1
        %s304 = scalar_lea.sflag [#allocation4], %s303
        %s305 = sand.u32 %s141, 1
        %s306 = smul.addr %s305, 4
        %s307 = scalar_lea.vmem [#allocation10], %s306
        %p308 = pneg %p182
        %p309 = pneg %p179
        %s310 = sand.u32 %s169, 1
        %s311 = scalar_lea.sflag [#allocation12], %s310
        %s312 = sand.u32 %s169, 1
        %s313 = smul.addr %s312, 8
        %s314 = scalar_lea.vmem [#allocation11], %s313
        %v316 = vld [vmem:[%s271] sm:$0xf]
        %v317 = vld [vmem:[%s271 + $0x4] sm:$0xf]
        %v318 = vld [vmem:[#allocation5] sm:$0xff]
        %v319 = vld [vmem:[#allocation5 + $0x8] sm:$0xff]
        %v320 = vunpack.c.l.bf16 %v316
        %v321 = vunpack.c.l.bf16 %v317
        %323 = vset.pattern.permute.xlu0 0
        %324 = vperm.xlu0 %323, %v318
        %v325 = vpop.permute.xlu0 %324
        %328 = vset.pattern.permute.xlu0 0
        %329 = vperm.xlu0 %328, %v319
        %v330 = vpop.permute.xlu0 %329
        %v332 = vmul.f32 %v320, %v325
        %v333 = vmul.f32 %v321, %v330
        %v334 = vld [vmem:[#allocation7] sm:$0xff]
        %v335 = vld [vmem:[#allocation7 + $0x8] sm:$0xff]
        %337 = vset.pattern.permute.xlu0 0
        %338 = vperm.xlu0 %337, %v334
        %v339 = vpop.permute.xlu0 %338
        %342 = vset.pattern.permute.xlu0 0
        %343 = vperm.xlu0 %342, %v335
        %v344 = vpop.permute.xlu0 %343
        %v346 = vadd.f32 %v332, %v339
        %v347 = vadd.f32 %v333, %v344
        %v348 = vmax.f32 %v346, 0.0
        %v349 = vmax.f32 %v347, 0.0
        %v350 = vld [vmem:[#allocation8] sm:$0xf]
        %v351 = vpack.c.bf16 %v349, %v348
        %vm352 = vcmask 130048
        %v354 = vsel %vm352, %v350, 0
        %356 = vmatprep.subr.bf16.mxu0 0
        %357 = vmatpush1.bf16.msra.mxu0 %v351
        %358 = vmatprep.subr.bf16.mxu0 0
        %359 = vmatpush1.bf16.msra.mxu0 0
        %360 = vmatprep.subr.bf16.mxu0 0
        %361 = vmatpush1.bf16.msra.mxu0 0
        %362 = vmatprep.subr.bf16.mxu0 0
        %363 = vmatpush1.bf16.msra.mxu0 0
        %364 = vmatprep.subr.bf16.mxu0 0
        %365 = vmatpush1.bf16.msra.mxu0 0
        %366 = vmatprep.subr.bf16.mxu0 0
        %367 = vmatpush1.bf16.msra.mxu0 0
        %368 = vmatprep.subr.bf16.mxu0 0
        %369 = vmatpush1.bf16.msra.mxu0 0
        %370 = vmatprep.subr.bf16.mxu0 0
        %371 = vmatpush1.bf16.msra.mxu0 0
        %372 = vmatprep.subr.bf16.mxu0 0
        %373 = vmatpush1.bf16.msra.mxu0 0
        %374 = vmatprep.subr.bf16.mxu0 0
        %375 = vmatpush1.bf16.msra.mxu0 0
        %376 = vmatprep.subr.bf16.mxu0 0
        %377 = vmatpush1.bf16.msra.mxu0 0
        %378 = vmatprep.subr.bf16.mxu0 0
        %379 = vmatpush1.bf16.msra.mxu0 0
        %380 = vmatprep.subr.bf16.mxu0 0
        %381 = vmatpush1.bf16.msra.mxu0 0
        %382 = vmatprep.subr.bf16.mxu0 0
        %383 = vmatpush1.bf16.msra.mxu0 0
        %384 = vmatprep.subr.bf16.mxu0 0
        %385 = vmatpush1.bf16.msra.mxu0 0
        %386 = vmatprep.subr.bf16.mxu0 0
        %387 = vmatpush1.bf16.msra.mxu0 0
        %388 = vmatprep.mubr.bf16.mxu0 0
        %389 = vmatmul.mubr.bf16.gmra.mrb[0].mxu0 %v354
        %v390 = vpop.f32.mrb[0].mxu0
        %v391 = vadd.f32 0.0, %v390
        %v392 = vpop.f32.mrb[0].mxu0
        %v393 = vpop.f32.mrb[0].mxu0
        %v394 = vpop.f32.mrb[0].mxu0
        %395 = vdwg.mxu0
        %v396 = vpack.c.bf16 %v391, %v391
        %vm397 = vcmask 125952
        %398 = vst.msk [vmem:[%s307] sm:$0xf] %vm397, %v396
        %v399 = vsel %vm352, %v391, 0.0
        %400 = vadd.xlane.f32.xlu0 %v399
        %v401 = vpop.xlane.xlu0 %400
        %vm402 = vcmask 7168
        %403 = vst.msk [vmem:[%s314] sm:$0xff] %vm402, %v401
        %v404 = vmul.f32 %v391, %v391
        %v405 = vsel %vm352, %v404, 0.0
        %406 = vadd.xlane.f32.xlu0 %v405
        %v407 = vpop.xlane.xlu0 %406
        %vm408 = vcmask 15368
        %409 = vst.msk [vmem:[%s314] sm:$0xff] %vm408, %v407
        %s410 = sand.u32 %s141, 1
        %s411 = scalar_lea.sflag [#allocation4], %s410
        %s412 = sand.u32 %s141, 1
        %s413 = smul.addr %s412, 4
        %s414 = scalar_lea.vmem [#allocation10], %s413
        %s415 = sand.u32 %s169, 1
        %s416 = scalar_lea.sflag [#allocation12], %s415
        %s417 = sand.u32 %s169, 1
        %s418 = smul.addr %s417, 8
        %s419 = scalar_lea.vmem [#allocation11], %s418
        // Predicated region
        $region53: #{pointgencon_forward.6} parent=35 // pred_check
          %p420 = pneg %p151
        $region54: #{pointgencon_forward.6} parent=35 // pred_check_branch
          %422 = sbr.rel (%p420) target = $region56
        $region55: #{pointgencon_forward.6} parent=35 // pred_region
          %s424 = ssub.s32 64, 64
          %425 = vsyncadd %s411, %s424
          %s426 = sadd.s32 %s33, %s32
          %s427 = smul.addr %s426, 64
          %s428 = scalar_lea.hbm %s4, %s427
          %s430 = sshll.u32 %s414, 4
          %s431 = int_to_ptr.vmem [resolvable:$true] %s430
          %433 = dma.vmem_to_hbm [thread:$0]  %s431, 64, %s428, %s411
        $region56: #{pointgencon_forward.6} parent=35 // pred_fallthru
          _
        // Predicated region
        $region57: #{pointgencon_forward.6} parent=35 // pred_check
          %p434 = pneg %p179
        $region58: #{pointgencon_forward.6} parent=35 // pred_check_branch
          %436 = sbr.rel (%p434) target = $region60
        $region59: #{pointgencon_forward.6} parent=35 // pred_region
          %s438 = ssub.s32 128, 128
          %439 = vsyncadd %s416, %s438
          %s440 = sadd.s32 %s33, %s32
          %s441 = smul.addr %s440, 128
          %s442 = scalar_lea.hbm %s5, %s441
          %s444 = sshll.u32 %s419, 4
          %s445 = int_to_ptr.vmem [resolvable:$true] %s444
          %447 = dma.vmem_to_hbm [thread:$0]  %s445, 128, %s442, %s416
        $region60: #{pointgencon_forward.6} parent=35 // pred_fallthru
          _
      $region36: #{pointgencon_forward.6} parent=5 // pred_fallthru
        _
      %p448 = scmp.le.s32.totalorder 2, %s23
      // Predicated region
      $region61: #{pointgencon_forward.6} parent=5 // pred_check
        %p449 = pneg %p448
      $region62: #{pointgencon_forward.6} parent=5 // pred_check_branch
        %451 = sbr.rel (%p449) target = $region64
      $region63: #{pointgencon_forward.6} parent=5 // pred_region
        %s452 = ssub.s32 %s23, 2
        // Predicated region
        $region65: #{pointgencon_forward.6} parent=63 // pred_check
          %p453 = pneg %p157
        $region66: #{pointgencon_forward.6} parent=63 // pred_check_branch
          %455 = sbr.rel (%p453) target = $region68
        $region67: #{pointgencon_forward.6} parent=63 // pred_region
          %s456 = sand.u32 %s142, 1
          %s457 = scalar_lea.sflag [#allocation4], %s456
          %s458 = sand.u32 %s142, 1
          %s459 = smul.addr %s458, 4
          %s460 = scalar_lea.vmem [#allocation10], %s459
          %461 = dma.done %s457, 64
        $region68: #{pointgencon_forward.6} parent=63 // pred_fallthru
          _
        // Predicated region
        $region69: #{pointgencon_forward.6} parent=63 // pred_check
          %p462 = pneg %p185
        $region70: #{pointgencon_forward.6} parent=63 // pred_check_branch
          %464 = sbr.rel (%p462) target = $region72
        $region71: #{pointgencon_forward.6} parent=63 // pred_region
          %s465 = sand.u32 %s170, 1
          %s466 = scalar_lea.sflag [#allocation12], %s465
          %s467 = sand.u32 %s170, 1
          %s468 = smul.addr %s467, 8
          %s469 = scalar_lea.vmem [#allocation11], %s468
          %470 = dma.done %s466, 128
        $region72: #{pointgencon_forward.6} parent=63 // pred_fallthru
          _
      $region64: #{pointgencon_forward.6} parent=5 // pred_fallthru
        _
    $region6: #{pointgencon_forward.6} parent=1 // loop_footer
      %s27 = sadd.s32 1, %s23
    $region7: #{pointgencon_forward.6} parent=1 // loop_footer_branch
      %22 = sbr.rel target = $region3
    $region8: #{pointgencon_forward.6} parent=1 // loop_exit
      _
    %471 = vsyncpa [#allocation3], 1
    %s472 = scalar_lea.sflag [#allocation3], 1
    %473 = vsyncpa %s472, 1
    %474 = vsyncpa [#allocation6], 1
    %475 = vsyncpa [#allocation9], 1
    %476 = vsyncpa [#allocation4], 1
    %s477 = scalar_lea.sflag [#allocation4], 1
    %478 = vsyncpa %s477, 1
    %479 = vsyncpa [#allocation12], 1
    %s480 = scalar_lea.sflag [#allocation12], 1
    %481 = vsyncpa %s480, 1

// kernel: pointgencon_forward.7
$region0: #{pointgencon_forward.7}
  #allocation0 [shape = 'u32[]', space=smem, size = 0x4, offset = 0x4, fixed_abs, tag = 'smem constant byte address 0x4 - core index']
  #allocation1 [shape = 'u32[144,128]{1,0:T(1,128)}', space=vmem, size = 0x12000, scoped, tag = 'internal scratch']
  %s0 = inlined_call_operand.hbm [shape: bf16[2,8,16], index: 0, kind: input, shape index: {}]
  %s1 = inlined_call_operand.hbm [shape: f32[8,1], index: 1, kind: input, shape index: {}]
  %s2 = inlined_call_operand.hbm [shape: f32[8,1], index: 2, kind: input, shape index: {}]
  %s3 = inlined_call_operand.hbm [shape: bf16[3,8], index: 3, kind: input, shape index: {}]
  %s4 = inlined_call_operand.hbm [shape: f32[3,1], index: 4, kind: input, shape index: {}]
  %s5 = inlined_call_operand.hbm [shape: f32[2,3,16], index: 5, kind: output, shape index: {}]
  %s6 = sld [smem:[#allocation0]]
  $region73: #{pointgencon_forward.7} parent=0
    _
  %s8 = ssub.s32 1, %s6
  %s9 = scalar_select 0, %s8, %s6
  $region1: #{pointgencon_forward.7} parent=0
    #allocation2 [shape = 'u8[4096]{0}', space=vmem, size = 0x1000, scoped, tag = 'input window, operand 0']
    #allocation3 [shape = 's32[2]{0}', space=sflag, size = 0x8, scoped, tag = 'scoped memory for pointgencon_forward.7']
    #allocation4 [shape = 's32[2]{0}', space=sflag, size = 0x8, scoped, tag = 'scoped memory for pointgencon_forward.7']
    #allocation5 [shape = 'u8[4096]{0}', space=vmem, size = 0x1000, scoped, tag = 'input window, operand 1, single buffered']
    #allocation6 [shape = 's32[1]{0}', space=sflag, size = 0x4, scoped, tag = 'scoped memory for pointgencon_forward.7']
    #allocation7 [shape = 'u8[4096]{0}', space=vmem, size = 0x1000, scoped, tag = 'input window, operand 2, single buffered']
    #allocation8 [shape = 'u8[1024]{0}', space=vmem, size = 0x400, scoped, tag = 'input window, operand 3, single buffered']
    #allocation9 [shape = 's32[1]{0}', space=sflag, size = 0x4, scoped, tag = 'scoped memory for pointgencon_forward.7']
    #allocation10 [shape = 'u8[2048]{0}', space=vmem, size = 0x800, scoped, tag = 'input window, operand 4, single buffered']
    #allocation11 [shape = 'u8[4096]{0}', space=vmem, size = 0x1000, scoped, tag = 'output window, operand 0']
    %10 = vsyncpa [#allocation3], 0
    %s11 = scalar_lea.sflag [#allocation3], 1
    %12 = vsyncpa %s11, 0
    %13 = vsyncpa [#allocation6], 0
    %14 = vsyncpa [#allocation9], 0
    %15 = vsyncpa [#allocation4], 0
    %s16 = scalar_lea.sflag [#allocation4], 1
    %17 = vsyncpa %s16, 0
    loop: start=0, step=1, limit=4
    $region2: #{pointgencon_forward.7} parent=1 // loop_pre_header
      _
    $region3: #{pointgencon_forward.7} parent=1 // loop_header
      %s19 = sphi 0, %s23
      %p20 = scmp.ge.s32.totalorder %s19, 4
      %s26 = sphi 0, %s38
      %s27 = sphi 0, %s34
      %s28 = sphi 0, %s26
      %s29 = sphi 0, %s27
      %s30 = sphi 0, %s28
      %s31 = sphi 0, %s29
      %s43 = sphi 0, %s45
      %s46 = sphi 0, %s43
      %s47 = sphi 0, %s46
      %s63 = sphi 0, %s47
      %s67 = sphi 0, %s67
      %s69 = sphi 0, %s67
      %s70 = sphi 0, %s69
      %s84 = sphi 0, %s70
      %s88 = sphi 0, %s88
      %s90 = sphi 0, %s88
      %s91 = sphi 0, %s90
      %s105 = sphi 0, %s91
      %s109 = sphi 0, %s109
      %s111 = sphi 0, %s109
      %s112 = sphi 0, %s111
      %s126 = sphi 0, %s112
      %s130 = sphi 0, %s130
      %s132 = sphi 0, %s130
      %s133 = sphi 0, %s132
      %s147 = sphi 0, %s133
      %s155 = sphi 0, %s157
      %s158 = sphi 0, %s155
      %s159 = sphi 0, %s158
      %s175 = sphi 0, %s159
    $region4: #{pointgencon_forward.7} parent=1 // loop_header_branch
      %22 = sbr.rel (%p20) target = $region8
    $region5: #{pointgencon_forward.7} parent=1 // loop_body
      %s24 = ssub.s32 %s19, 1
      %s25 = ssub.s32 %s19, 2
      %s32 = sadd.s32 1, %s27
      %p33 = scmp.ge.s32.totalorder %s32, 1
      %s34 = scalar_select %p33, 0, %s32
      %s35 = sadd.s32 1, %s26
      %s36 = scalar_select %p33, %s35, %s26
      %p37 = scmp.ge.s32.totalorder %s36, 2
      %s38 = scalar_select %p37, 0, %s36
      %s39 = ssub.s32 %s26, %s38
      %s40 = ssub.s32 %s27, %s34
      %s41 = sor.u32 %s39, %s40
      %p42 = scmp.eq.s32.totalorder %s41, 0
      %s44 = sadd.s32 %s43, 1
      %s45 = scalar_select %p42, %s43, %s44
      %p48 = pneg %p42
      %p49 = scmp.eq.s32.totalorder %s19, 1
      %p50 = por %p48, %p49
      %p51 = scmp.ne.s32.totalorder %s43, %s46
      %p52 = scmp.eq.s32.totalorder %s19, 0
      %p53 = por %p51, %p52
      %p54 = scmp.ne.s32.totalorder %s43, %s46
      %p55 = scmp.eq.s32.totalorder %s24, 1
      %p56 = por %p54, %p55
      %p57 = scmp.ne.s32.totalorder %s46, %s47
      %p58 = scmp.eq.s32.totalorder %s24, 0
      %p59 = por %p57, %p58
      %p60 = scmp.ne.s32.totalorder %s46, %s47
      %p61 = scmp.eq.s32.totalorder %s25, 1
      %p62 = por %p60, %p61
      %p64 = scmp.ne.s32.totalorder %s47, %s63
      %p65 = scmp.eq.s32.totalorder %s25, 0
      %p66 = por %p64, %p65
      %s68 = sadd.s32 %s67, 1
      %p71 = scmp.eq.s32.totalorder %s19, 1
      %p72 = scmp.ne.s32.totalorder %s67, %s69
      %p73 = scmp.eq.s32.totalorder %s19, 0
      %p74 = por %p72, %p73
      %p75 = scmp.ne.s32.totalorder %s67, %s69
      %p76 = scmp.eq.s32.totalorder %s24, 1
      %p77 = por %p75, %p76
      %p78 = scmp.ne.s32.totalorder %s69, %s70
      %p79 = scmp.eq.s32.totalorder %s24, 0
      %p80 = por %p78, %p79
      %p81 = scmp.ne.s32.totalorder %s69, %s70
      %p82 = scmp.eq.s32.totalorder %s25, 1
      %p83 = por %p81, %p82
      %p85 = scmp.ne.s32.totalorder %s70, %s84
      %p86 = scmp.eq.s32.totalorder %s25, 0
      %p87 = por %p85, %p86
      %s89 = sadd.s32 %s88, 1
      %p92 = scmp.eq.s32.totalorder %s19, 1
      %p93 = scmp.ne.s32.totalorder %s88, %s90
      %p94 = scmp.eq.s32.totalorder %s19, 0
      %p95 = por %p93, %p94
      %p96 = scmp.ne.s32.totalorder %s88, %s90
      %p97 = scmp.eq.s32.totalorder %s24, 1
      %p98 = por %p96, %p97
      %p99 = scmp.ne.s32.totalorder %s90, %s91
      %p100 = scmp.eq.s32.totalorder %s24, 0
      %p101 = por %p99, %p100
      %p102 = scmp.ne.s32.totalorder %s90, %s91
      %p103 = scmp.eq.s32.totalorder %s25, 1
      %p104 = por %p102, %p103
      %p106 = scmp.ne.s32.totalorder %s91, %s105
      %p107 = scmp.eq.s32.totalorder %s25, 0
      %p108 = por %p106, %p107
      %s110 = sadd.s32 %s109, 1
      %p113 = scmp.eq.s32.totalorder %s19, 1
      %p114 = scmp.ne.s32.totalorder %s109, %s111
      %p115 = scmp.eq.s32.totalorder %s19, 0
      %p116 = por %p114, %p115
      %p117 = scmp.ne.s32.totalorder %s109, %s111
      %p118 = scmp.eq.s32.totalorder %s24, 1
      %p119 = por %p117, %p118
      %p120 = scmp.ne.s32.totalorder %s111, %s112
      %p121 = scmp.eq.s32.totalorder %s24, 0
      %p122 = por %p120, %p121
      %p123 = scmp.ne.s32.totalorder %s111, %s112
      %p124 = scmp.eq.s32.totalorder %s25, 1
      %p125 = por %p123, %p124
      %p127 = scmp.ne.s32.totalorder %s112, %s126
      %p128 = scmp.eq.s32.totalorder %s25, 0
      %p129 = por %p127, %p128
      %s131 = sadd.s32 %s130, 1
      %p134 = scmp.eq.s32.totalorder %s19, 1
      %p135 = scmp.ne.s32.totalorder %s130, %s132
      %p136 = scmp.eq.s32.totalorder %s19, 0
      %p137 = por %p135, %p136
      %p138 = scmp.ne.s32.totalorder %s130, %s132
      %p139 = scmp.eq.s32.totalorder %s24, 1
      %p140 = por %p138, %p139
      %p141 = scmp.ne.s32.totalorder %s132, %s133
      %p142 = scmp.eq.s32.totalorder %s24, 0
      %p143 = por %p141, %p142
      %p144 = scmp.ne.s32.totalorder %s132, %s133
      %p145 = scmp.eq.s32.totalorder %s25, 1
      %p146 = por %p144, %p145
      %p148 = scmp.ne.s32.totalorder %s133, %s147
      %p149 = scmp.eq.s32.totalorder %s25, 0
      %p150 = por %p148, %p149
      %s151 = ssub.s32 %s26, %s38
      %s152 = ssub.s32 %s27, %s34
      %s153 = sor.u32 %s151, %s152
      %p154 = scmp.eq.s32.totalorder %s153, 0
      %s156 = sadd.s32 %s155, 1
      %s157 = scalar_select %p154, %s155, %s156
      %p160 = pneg %p154
      %p161 = scmp.eq.s32.totalorder %s19, 1
      %p162 = por %p160, %p161
      %p163 = scmp.ne.s32.totalorder %s155, %s158
      %p164 = scmp.eq.s32.totalorder %s19, 0
      %p165 = por %p163, %p164
      %p166 = scmp.ne.s32.totalorder %s155, %s158
      %p167 = scmp.eq.s32.totalorder %s24, 1
      %p168 = por %p166, %p167
      %p169 = scmp.ne.s32.totalorder %s158, %s159
      %p170 = scmp.eq.s32.totalorder %s24, 0
      %p171 = por %p169, %p170
      %p172 = scmp.ne.s32.totalorder %s158, %s159
      %p173 = scmp.eq.s32.totalorder %s25, 1
      %p174 = por %p172, %p173
      %p176 = scmp.ne.s32.totalorder %s159, %s175
      %p177 = scmp.eq.s32.totalorder %s25, 0
      %p178 = por %p176, %p177
      %p179 = scmp.le.s32.totalorder 1, %s19
      %p180 = scmp.lt.s32.totalorder %s19, 3
      %p181 = pnand %p179, %p180
      %p182 = pneg %p181
      // Predicated region
      $region9: #{pointgencon_forward.7} parent=5 // pred_check
        _
      $region10: #{pointgencon_forward.7} parent=5 // pred_check_branch
        %184 = sbr.rel (%p181) target = $region12
      $region11: #{pointgencon_forward.7} parent=5 // pred_region
        %s185 = ssub.s32 %s19, 1
        // Predicated region
        $region13: #{pointgencon_forward.7} parent=11 // pred_check
          %p186 = pneg %p80
        $region14: #{pointgencon_forward.7} parent=11 // pred_check_branch
          %188 = sbr.rel (%p186) target = $region16
        $region15: #{pointgencon_forward.7} parent=11 // pred_region
          %s190 = ssub.s32 128, 128
          %191 = vsyncadd [#allocation6], %s190
          %s193 = sshll.u32 [#allocation5], 4
          %s194 = int_to_ptr.vmem [resolvable:$true] %s193
          %196 = dma.hbm_to_vmem [thread:$0]  %s1, 128, %s194, [#allocation6]
        $region16: #{pointgencon_forward.7} parent=11 // pred_fallthru
          _
        // Predicated region
        $region17: #{pointgencon_forward.7} parent=11 // pred_check
          %p197 = pneg %p101
        $region18: #{pointgencon_forward.7} parent=11 // pred_check_branch
          %199 = sbr.rel (%p197) target = $region20
        $region19: #{pointgencon_forward.7} parent=11 // pred_region
          %s201 = ssub.s32 128, 128
          %202 = vsyncadd [#allocation6], %s201
          %s204 = sshll.u32 [#allocation7], 4
          %s205 = int_to_ptr.vmem [resolvable:$true] %s204
          %207 = dma.hbm_to_vmem [thread:$0]  %s2, 128, %s205, [#allocation6]
        $region20: #{pointgencon_forward.7} parent=11 // pred_fallthru
          _
        // Predicated region
        $region21: #{pointgencon_forward.7} parent=11 // pred_check
          %p208 = pneg %p122
        $region22: #{pointgencon_forward.7} parent=11 // pred_check_branch
          %210 = sbr.rel (%p208) target = $region24
        $region23: #{pointgencon_forward.7} parent=11 // pred_region
          %s212 = ssub.s32 32, 32
          %213 = vsyncadd [#allocation9], %s212
          %s215 = sshll.u32 [#allocation8], 4
          %s216 = int_to_ptr.vmem [resolvable:$true] %s215
          %218 = dma.hbm_to_vmem [thread:$0]  %s3, 32, %s216, [#allocation9]
        $region24: #{pointgencon_forward.7} parent=11 // pred_fallthru
          _
        // Predicated region
        $region25: #{pointgencon_forward.7} parent=11 // pred_check
          %p219 = pneg %p143
        $region26: #{pointgencon_forward.7} parent=11 // pred_check_branch
          %221 = sbr.rel (%p219) target = $region28
        $region27: #{pointgencon_forward.7} parent=11 // pred_region
          %s223 = ssub.s32 64, 64
          %224 = vsyncadd [#allocation9], %s223
          %s226 = sshll.u32 [#allocation10], 4
          %s227 = int_to_ptr.vmem [resolvable:$true] %s226
          %229 = dma.hbm_to_vmem [thread:$0]  %s4, 64, %s227, [#allocation9]
        $region28: #{pointgencon_forward.7} parent=11 // pred_fallthru
          _
      $region12: #{pointgencon_forward.7} parent=5 // pred_fallthru
        _
      %p230 = scmp.lt.s32.totalorder %s19, 2
      // Predicated region
      $region29: #{pointgencon_forward.7} parent=5 // pred_check
        %p231 = pneg %p230
      $region30: #{pointgencon_forward.7} parent=5 // pred_check_branch
        %233 = sbr.rel (%p231) target = $region32
      $region31: #{pointgencon_forward.7} parent=5 // pred_region
        // Predicated region
        $region33: #{pointgencon_forward.7} parent=31 // pred_check
          %p234 = pneg %p53
        $region34: #{pointgencon_forward.7} parent=31 // pred_check_branch
          %236 = sbr.rel (%p234) target = $region36
        $region35: #{pointgencon_forward.7} parent=31 // pred_region
          %s237 = sand.u32 %s43, 1
          %s238 = scalar_lea.sflag [#allocation3], %s237
          %s239 = sand.u32 %s43, 1
          %s240 = smul.addr %s239, 4
          %s241 = scalar_lea.vmem [#allocation2], %s240
          %s243 = ssub.s32 64, 64
          %244 = vsyncadd %s238, %s243
          %s245 = sadd.s32 %s27, %s26
          %s246 = smul.addr %s245, 64
          %s247 = scalar_lea.hbm %s0, %s246
          %s249 = sshll.u32 %s241, 4
          %s250 = int_to_ptr.vmem [resolvable:$true] %s249
          %252 = dma.hbm_to_vmem [thread:$0]  %s247, 64, %s250, %s238
        $region36: #{pointgencon_forward.7} parent=31 // pred_fallthru
          _
      $region32: #{pointgencon_forward.7} parent=5 // pred_fallthru
        _
      %p253 = scmp.le.s32.totalorder 1, %s19
      %p254 = scmp.lt.s32.totalorder %s19, 3
      %p255 = pnand %p253, %p254
      %p256 = pneg %p255
      // Predicated region
      $region37: #{pointgencon_forward.7} parent=5 // pred_check
        _
      $region38: #{pointgencon_forward.7} parent=5 // pred_check_branch
        %258 = sbr.rel (%p255) target = $region40
      $region39: #{pointgencon_forward.7} parent=5 // pred_region
        %s259 = ssub.s32 %s19, 1
        %s260 = sand.u32 %s46, 1
        %s261 = scalar_lea.sflag [#allocation3], %s260
        %s262 = sand.u32 %s46, 1
        %s263 = smul.addr %s262, 4
        %s264 = scalar_lea.vmem [#allocation2], %s263
        // Predicated region
        $region41: #{pointgencon_forward.7} parent=39 // pred_check
          %p265 = pneg %p59
        $region42: #{pointgencon_forward.7} parent=39 // pred_check_branch
          %267 = sbr.rel (%p265) target = $region44
        $region43: #{pointgencon_forward.7} parent=39 // pred_region
          %268 = dma.done %s261, 64
        $region44: #{pointgencon_forward.7} parent=39 // pred_fallthru
          _
        // Predicated region
        $region45: #{pointgencon_forward.7} parent=39 // pred_check
          %p269 = pneg %p80
        $region46: #{pointgencon_forward.7} parent=39 // pred_check_branch
          %271 = sbr.rel (%p269) target = $region48
        $region47: #{pointgencon_forward.7} parent=39 // pred_region
          %272 = dma.done [#allocation6], 128
        $region48: #{pointgencon_forward.7} parent=39 // pred_fallthru
          _
        // Predicated region
        $region49: #{pointgencon_forward.7} parent=39 // pred_check
          %p273 = pneg %p101
        $region50: #{pointgencon_forward.7} parent=39 // pred_check_branch
          %275 = sbr.rel (%p273) target = $region52
        $region51: #{pointgencon_forward.7} parent=39 // pred_region
          %276 = dma.done [#allocation6], 128
        $region52: #{pointgencon_forward.7} parent=39 // pred_fallthru
          _
        // Predicated region
        $region53: #{pointgencon_forward.7} parent=39 // pred_check
          %p277 = pneg %p122
        $region54: #{pointgencon_forward.7} parent=39 // pred_check_branch
          %279 = sbr.rel (%p277) target = $region56
        $region55: #{pointgencon_forward.7} parent=39 // pred_region
          %280 = dma.done [#allocation9], 32
        $region56: #{pointgencon_forward.7} parent=39 // pred_fallthru
          _
        // Predicated region
        $region57: #{pointgencon_forward.7} parent=39 // pred_check
          %p281 = pneg %p143
        $region58: #{pointgencon_forward.7} parent=39 // pred_check_branch
          %283 = sbr.rel (%p281) target = $region60
        $region59: #{pointgencon_forward.7} parent=39 // pred_region
          %284 = dma.done [#allocation9], 64
        $region60: #{pointgencon_forward.7} parent=39 // pred_fallthru
          _
        %s285 = sand.u32 %s46, 1
        %s286 = scalar_lea.sflag [#allocation3], %s285
        %s287 = sand.u32 %s46, 1
        %s288 = smul.addr %s287, 4
        %s289 = scalar_lea.vmem [#allocation2], %s288
        %p290 = pneg %p59
        %p291 = pneg %p56
        %p292 = pneg %p80
        %p293 = pneg %p77
        %p294 = pneg %p101
        %p295 = pneg %p98
        %p296 = pneg %p122
        %p297 = pneg %p119
        %p298 = pneg %p143
        %p299 = pneg %p140
        %p300 = pneg %p171
        %p301 = pneg %p168
        %s302 = sand.u32 %s158, 1
        %s303 = scalar_lea.sflag [#allocation4], %s302
        %s304 = sand.u32 %s158, 1
        %s305 = smul.addr %s304, 4
        %s306 = scalar_lea.vmem [#allocation11], %s305
        %v308 = vld [vmem:[%s264] sm:$0xf]
        %v309 = vld [vmem:[#allocation5] sm:$0xff]
        %v310 = vunpack.c.l.bf16 %v308
        %312 = vset.pattern.permute.xlu0 0
        %313 = vperm.xlu0 %312, %v309
        %v314 = vpop.permute.xlu0 %313
        %v316 = vmul.f32 %v310, %v314
        %v317 = vld [vmem:[#allocation7] sm:$0xff]
        %319 = vset.pattern.permute.xlu0 0
        %320 = vperm.xlu0 %319, %v317
        %v321 = vpop.permute.xlu0 %320
        %v323 = vadd.f32 %v316, %v321
        %v324 = vmax.f32 %v323, 0.0
        %v325 = vld [vmem:[#allocation8] sm:$0x3]
        %v326 = vpack.c.bf16 %v324, %v324
        %v327 = vld [vmem:[#allocation10] sm:$0x7]
        %329 = vset.pattern.permute.xlu0 0
        %330 = vperm.xlu0 %329, %v327
        %v331 = vpop.permute.xlu0 %330
        %vm333 = vcmask 64512
        %v335 = vsel %vm333, %v325, 0
        %vm337 = vcmask 1043456
        %v339 = vsel %vm337, %v326, 0
        %341 = vmatprep.subr.bf16.mxu0 0
        %342 = vmatpush1.bf16.msra.mxu0 %v339
        %343 = vmatprep.subr.bf16.mxu0 0
        %344 = vmatpush1.bf16.msra.mxu0 0
        %345 = vmatprep.subr.bf16.mxu0 0
        %346 = vmatpush1.bf16.msra.mxu0 0
        %347 = vmatprep.subr.bf16.mxu0 0
        %348 = vmatpush1.bf16.msra.mxu0 0
        %349 = vmatprep.subr.bf16.mxu0 0
        %350 = vmatpush1.bf16.msra.mxu0 0
        %351 = vmatprep.subr.bf16.mxu0 0
        %352 = vmatpush1.bf16.msra.mxu0 0
        %353 = vmatprep.subr.bf16.mxu0 0
        %354 = vmatpush1.bf16.msra.mxu0 0
        %355 = vmatprep.subr.bf16.mxu0 0
        %356 = vmatpush1.bf16.msra.mxu0 0
        %357 = vmatprep.subr.bf16.mxu0 0
        %358 = vmatpush1.bf16.msra.mxu0 0
        %359 = vmatprep.subr.bf16.mxu0 0
        %360 = vmatpush1.bf16.msra.mxu0 0
        %361 = vmatprep.subr.bf16.mxu0 0
        %362 = vmatpush1.bf16.msra.mxu0 0
        %363 = vmatprep.subr.bf16.mxu0 0
        %364 = vmatpush1.bf16.msra.mxu0 0
        %365 = vmatprep.subr.bf16.mxu0 0
        %366 = vmatpush1.bf16.msra.mxu0 0
        %367 = vmatprep.subr.bf16.mxu0 0
        %368 = vmatpush1.bf16.msra.mxu0 0
        %369 = vmatprep.subr.bf16.mxu0 0
        %370 = vmatpush1.bf16.msra.mxu0 0
        %371 = vmatprep.subr.bf16.mxu0 0
        %372 = vmatpush1.bf16.msra.mxu0 0
        %373 = vmatprep.mubr.bf16.mxu0 0
        %374 = vmatmul.mubr.bf16.gmra.mrb[0].mxu0 %v335
        %v375 = vpop.f32.mrb[0].mxu0
        %v376 = vadd.f32 %v331, %v375
        %v377 = vpop.f32.mrb[0].mxu0
        %v378 = vpop.f32.mrb[0].mxu0
        %v379 = vpop.f32.mrb[0].mxu0
        %380 = vdwg.mxu0
        %v381 = vtanh.pop %v376
        %vm382 = vcmask 124928
        %383 = vst.msk [vmem:[%s306] sm:$0x7] %vm382, %v381
        %s384 = sand.u32 %s158, 1
        %s385 = scalar_lea.sflag [#allocation4], %s384
        %s386 = sand.u32 %s158, 1
        %s387 = smul.addr %s386, 4
        %s388 = scalar_lea.vmem [#allocation11], %s387
        // Predicated region
        $region61: #{pointgencon_forward.7} parent=39 // pred_check
          %p389 = pneg %p168
        $region62: #{pointgencon_forward.7} parent=39 // pred_check_branch
          %391 = sbr.rel (%p389) target = $region64
        $region63: #{pointgencon_forward.7} parent=39 // pred_region
          %s393 = ssub.s32 64, 64
          %394 = vsyncadd %s385, %s393
          %s395 = sadd.s32 %s29, %s28
          %s396 = smul.addr %s395, 64
          %s397 = scalar_lea.hbm %s5, %s396
          %s399 = sshll.u32 %s388, 4
          %s400 = int_to_ptr.vmem [resolvable:$true] %s399
          %402 = dma.vmem_to_hbm [thread:$0]  %s400, 64, %s397, %s385
        $region64: #{pointgencon_forward.7} parent=39 // pred_fallthru
          _
      $region40: #{pointgencon_forward.7} parent=5 // pred_fallthru
        _
      %p403 = scmp.le.s32.totalorder 2, %s19
      // Predicated region
      $region65: #{pointgencon_forward.7} parent=5 // pred_check
        %p404 = pneg %p403
      $region66: #{pointgencon_forward.7} parent=5 // pred_check_branch
        %406 = sbr.rel (%p404) target = $region68
      $region67: #{pointgencon_forward.7} parent=5 // pred_region
        %s407 = ssub.s32 %s19, 2
        // Predicated region
        $region69: #{pointgencon_forward.7} parent=67 // pred_check
          %p408 = pneg %p174
        $region70: #{pointgencon_forward.7} parent=67 // pred_check_branch
          %410 = sbr.rel (%p408) target = $region72
        $region71: #{pointgencon_forward.7} parent=67 // pred_region
          %s411 = sand.u32 %s159, 1
          %s412 = scalar_lea.sflag [#allocation4], %s411
          %s413 = sand.u32 %s159, 1
          %s414 = smul.addr %s413, 4
          %s415 = scalar_lea.vmem [#allocation11], %s414
          %416 = dma.done %s412, 64
        $region72: #{pointgencon_forward.7} parent=67 // pred_fallthru
          _
      $region68: #{pointgencon_forward.7} parent=5 // pred_fallthru
        _
    $region6: #{pointgencon_forward.7} parent=1 // loop_footer
      %s23 = sadd.s32 1, %s19
    $region7: #{pointgencon_forward.7} parent=1 // loop_footer_branch
      %18 = sbr.rel target = $region3
    $region8: #{pointgencon_forward.7} parent=1 // loop_exit
      _
    %417 = vsyncpa [#allocation3], 1
    %s418 = scalar_lea.sflag [#allocation3], 1
    %419 = vsyncpa %s418, 1
    %420 = vsyncpa [#allocation6], 1
    %421 = vsyncpa [#allocation9], 1
    %422 = vsyncpa [#allocation4], 1
    %s423 = scalar_lea.sflag [#allocation4], 1
    %424 = vsyncpa %s423, 1

// kernel: pointgencon_forward.5
$region0: #{pointgencon_forward.5}
  #allocation0 [shape = 'u32[]', space=smem, size = 0x4, offset = 0x4, fixed_abs, tag = 'smem constant byte address 0x4 - core index']
  #allocation1 [shape = 'u32[144,128]{1,0:T(1,128)}', space=vmem, size = 0x12000, scoped, tag = 'internal scratch']
  %s0 = inlined_call_operand.hbm [shape: bf16[2,32,16], index: 0, kind: input, shape index: {}]
  %s1 = inlined_call_operand.hbm [shape: f32[32,1], index: 1, kind: input, shape index: {}]
  %s2 = inlined_call_operand.hbm [shape: f32[32,1], index: 2, kind: input, shape index: {}]
  %s3 = inlined_call_operand.hbm [shape: bf16[16,32], index: 3, kind: input, shape index: {}]
  %s4 = inlined_call_operand.hbm [shape: bf16[2,16,16], index: 4, kind: output, shape index: {0}]
  %s5 = inlined_call_operand.hbm [shape: f32[2,1,16,2], index: 5, kind: output, shape index: {1}]
  %6 = xla_tuple %s4, %s5
  %s7 = sld [smem:[#allocation0]]
  $region73: #{pointgencon_forward.5} parent=0
    _
  %s9 = ssub.s32 1, %s7
  %s10 = scalar_select 0, %s9, %s7
  $region1: #{pointgencon_forward.5} parent=0
    #allocation2 [shape = 'u8[16384]{0}', space=vmem, size = 0x4000, scoped, tag = 'input window, operand 0']
    #allocation3 [shape = 's32[2]{0}', space=sflag, size = 0x8, scoped, tag = 'scoped memory for pointgencon_forward.5']
    #allocation4 [shape = 's32[2]{0}', space=sflag, size = 0x8, scoped, tag = 'scoped memory for pointgencon_forward.5']
    #allocation5 [shape = 'u8[16384]{0}', space=vmem, size = 0x4000, scoped, tag = 'input window, operand 1, single buffered']
    #allocation6 [shape = 's32[1]{0}', space=sflag, size = 0x4, scoped, tag = 'scoped memory for pointgencon_forward.5']
    #allocation7 [shape = 'u8[16384]{0}', space=vmem, size = 0x4000, scoped, tag = 'input window, operand 2, single buffered']
    #allocation8 [shape = 'u8[4096]{0}', space=vmem, size = 0x1000, scoped, tag = 'input window, operand 3, single buffered']
    #allocation9 [shape = 's32[1]{0}', space=sflag, size = 0x4, scoped, tag = 'scoped memory for pointgencon_forward.5']
    #allocation10 [shape = 'u8[8192]{0}', space=vmem, size = 0x2000, scoped, tag = 'output window, operand 0']
    #allocation11 [shape = 'u8[16384]{0}', space=vmem, size = 0x4000, scoped, tag = 'output window, operand 1']
    #allocation12 [shape = 's32[2]{0}', space=sflag, size = 0x8, scoped, tag = 'scoped memory for pointgencon_forward.5']
    %11 = vsyncpa [#allocation3], 0
    %s12 = scalar_lea.sflag [#allocation3], 1
    %13 = vsyncpa %s12, 0
    %14 = vsyncpa [#allocation6], 0
    %15 = vsyncpa [#allocation9], 0
    %16 = vsyncpa [#allocation4], 0
    %s17 = scalar_lea.sflag [#allocation4], 1
    %18 = vsyncpa %s17, 0
    %19 = vsyncpa [#allocation12], 0
    %s20 = scalar_lea.sflag [#allocation12], 1
    %21 = vsyncpa %s20, 0
    loop: start=0, step=1, limit=4
    $region2: #{pointgencon_forward.5} parent=1 // loop_pre_header
      _
    $region3: #{pointgencon_forward.5} parent=1 // loop_header
      %s23 = sphi 0, %s27
      %p24 = scmp.ge.s32.totalorder %s23, 4
      %s30 = sphi 0, %s42
      %s31 = sphi 0, %s38
      %s32 = sphi 0, %s30
      %s33 = sphi 0, %s31
      %s34 = sphi 0, %s32
      %s35 = sphi 0, %s33
      %s47 = sphi 0, %s49
      %s50 = sphi 0, %s47
      %s51 = sphi 0, %s50
      %s67 = sphi 0, %s51
      %s71 = sphi 0, %s71
      %s73 = sphi 0, %s71
      %s74 = sphi 0, %s73
      %s88 = sphi 0, %s74
      %s92 = sphi 0, %s92
      %s94 = sphi 0, %s92
      %s95 = sphi 0, %s94
      %s109 = sphi 0, %s95
      %s113 = sphi 0, %s113
      %s115 = sphi 0, %s113
      %s116 = sphi 0, %s115
      %s130 = sphi 0, %s116
      %s138 = sphi 0, %s140
      %s141 = sphi 0, %s138
      %s142 = sphi 0, %s141
      %s158 = sphi 0, %s142
      %s166 = sphi 0, %s168
      %s169 = sphi 0, %s166
      %s170 = sphi 0, %s169
      %s186 = sphi 0, %s170
    $region4: #{pointgencon_forward.5} parent=1 // loop_header_branch
      %26 = sbr.rel (%p24) target = $region8
    $region5: #{pointgencon_forward.5} parent=1 // loop_body
      %s28 = ssub.s32 %s23, 1
      %s29 = ssub.s32 %s23, 2
      %s36 = sadd.s32 1, %s31
      %p37 = scmp.ge.s32.totalorder %s36, 1
      %s38 = scalar_select %p37, 0, %s36
      %s39 = sadd.s32 1, %s30
      %s40 = scalar_select %p37, %s39, %s30
      %p41 = scmp.ge.s32.totalorder %s40, 2
      %s42 = scalar_select %p41, 0, %s40
      %s43 = ssub.s32 %s30, %s42
      %s44 = ssub.s32 %s31, %s38
      %s45 = sor.u32 %s43, %s44
      %p46 = scmp.eq.s32.totalorder %s45, 0
      %s48 = sadd.s32 %s47, 1
      %s49 = scalar_select %p46, %s47, %s48
      %p52 = pneg %p46
      %p53 = scmp.eq.s32.totalorder %s23, 1
      %p54 = por %p52, %p53
      %p55 = scmp.ne.s32.totalorder %s47, %s50
      %p56 = scmp.eq.s32.totalorder %s23, 0
      %p57 = por %p55, %p56
      %p58 = scmp.ne.s32.totalorder %s47, %s50
      %p59 = scmp.eq.s32.totalorder %s28, 1
      %p60 = por %p58, %p59
      %p61 = scmp.ne.s32.totalorder %s50, %s51
      %p62 = scmp.eq.s32.totalorder %s28, 0
      %p63 = por %p61, %p62
      %p64 = scmp.ne.s32.totalorder %s50, %s51
      %p65 = scmp.eq.s32.totalorder %s29, 1
      %p66 = por %p64, %p65
      %p68 = scmp.ne.s32.totalorder %s51, %s67
      %p69 = scmp.eq.s32.totalorder %s29, 0
      %p70 = por %p68, %p69
      %s72 = sadd.s32 %s71, 1
      %p75 = scmp.eq.s32.totalorder %s23, 1
      %p76 = scmp.ne.s32.totalorder %s71, %s73
      %p77 = scmp.eq.s32.totalorder %s23, 0
      %p78 = por %p76, %p77
      %p79 = scmp.ne.s32.totalorder %s71, %s73
      %p80 = scmp.eq.s32.totalorder %s28, 1
      %p81 = por %p79, %p80
      %p82 = scmp.ne.s32.totalorder %s73, %s74
      %p83 = scmp.eq.s32.totalorder %s28, 0
      %p84 = por %p82, %p83
      %p85 = scmp.ne.s32.totalorder %s73, %s74
      %p86 = scmp.eq.s32.totalorder %s29, 1
      %p87 = por %p85, %p86
      %p89 = scmp.ne.s32.totalorder %s74, %s88
      %p90 = scmp.eq.s32.totalorder %s29, 0
      %p91 = por %p89, %p90
      %s93 = sadd.s32 %s92, 1
      %p96 = scmp.eq.s32.totalorder %s23, 1
      %p97 = scmp.ne.s32.totalorder %s92, %s94
      %p98 = scmp.eq.s32.totalorder %s23, 0
      %p99 = por %p97, %p98
      %p100 = scmp.ne.s32.totalorder %s92, %s94
      %p101 = scmp.eq.s32.totalorder %s28, 1
      %p102 = por %p100, %p101
      %p103 = scmp.ne.s32.totalorder %s94, %s95
      %p104 = scmp.eq.s32.totalorder %s28, 0
      %p105 = por %p103, %p104
      %p106 = scmp.ne.s32.totalorder %s94, %s95
      %p107 = scmp.eq.s32.totalorder %s29, 1
      %p108 = por %p106, %p107
      %p110 = scmp.ne.s32.totalorder %s95, %s109
      %p111 = scmp.eq.s32.totalorder %s29, 0
      %p112 = por %p110, %p111
      %s114 = sadd.s32 %s113, 1
      %p117 = scmp.eq.s32.totalorder %s23, 1
      %p118 = scmp.ne.s32.totalorder %s113, %s115
      %p119 = scmp.eq.s32.totalorder %s23, 0
      %p120 = por %p118, %p119
      %p121 = scmp.ne.s32.totalorder %s113, %s115
      %p122 = scmp.eq.s32.totalorder %s28, 1
      %p123 = por %p121, %p122
      %p124 = scmp.ne.s32.totalorder %s115, %s116
      %p125 = scmp.eq.s32.totalorder %s28, 0
      %p126 = por %p124, %p125
      %p127 = scmp.ne.s32.totalorder %s115, %s116
      %p128 = scmp.eq.s32.totalorder %s29, 1
      %p129 = por %p127, %p128
      %p131 = scmp.ne.s32.totalorder %s116, %s130
      %p132 = scmp.eq.s32.totalorder %s29, 0
      %p133 = por %p131, %p132
      %s134 = ssub.s32 %s30, %s42
      %s135 = ssub.s32 %s31, %s38
      %s136 = sor.u32 %s134, %s135
      %p137 = scmp.eq.s32.totalorder %s136, 0
      %s139 = sadd.s32 %s138, 1
      %s140 = scalar_select %p137, %s138, %s139
      %p143 = pneg %p137
      %p144 = scmp.eq.s32.totalorder %s23, 1
      %p145 = por %p143, %p144
      %p146 = scmp.ne.s32.totalorder %s138, %s141
      %p147 = scmp.eq.s32.totalorder %s23, 0
      %p148 = por %p146, %p147
      %p149 = scmp.ne.s32.totalorder %s138, %s141
      %p150 = scmp.eq.s32.totalorder %s28, 1
      %p151 = por %p149, %p150
      %p152 = scmp.ne.s32.totalorder %s141, %s142
      %p153 = scmp.eq.s32.totalorder %s28, 0
      %p154 = por %p152, %p153
      %p155 = scmp.ne.s32.totalorder %s141, %s142
      %p156 = scmp.eq.s32.totalorder %s29, 1
      %p157 = por %p155, %p156
      %p159 = scmp.ne.s32.totalorder %s142, %s158
      %p160 = scmp.eq.s32.totalorder %s29, 0
      %p161 = por %p159, %p160
      %s162 = ssub.s32 %s30, %s42
      %s163 = ssub.s32 %s31, %s38
      %s164 = sor.u32 %s162, %s163
      %p165 = scmp.eq.s32.totalorder %s164, 0
      %s167 = sadd.s32 %s166, 1
      %s168 = scalar_select %p165, %s166, %s167
      %p171 = pneg %p165
      %p172 = scmp.eq.s32.totalorder %s23, 1
      %p173 = por %p171, %p172
      %p174 = scmp.ne.s32.totalorder %s166, %s169
      %p175 = scmp.eq.s32.totalorder %s23, 0
      %p176 = por %p174, %p175
      %p177 = scmp.ne.s32.totalorder %s166, %s169
      %p178 = scmp.eq.s32.totalorder %s28, 1
      %p179 = por %p177, %p178
      %p180 = scmp.ne.s32.totalorder %s169, %s170
      %p181 = scmp.eq.s32.totalorder %s28, 0
      %p182 = por %p180, %p181
      %p183 = scmp.ne.s32.totalorder %s169, %s170
      %p184 = scmp.eq.s32.totalorder %s29, 1
      %p185 = por %p183, %p184
      %p187 = scmp.ne.s32.totalorder %s170, %s186
      %p188 = scmp.eq.s32.totalorder %s29, 0
      %p189 = por %p187, %p188
      %p190 = scmp.le.s32.totalorder 1, %s23
      %p191 = scmp.lt.s32.totalorder %s23, 3
      %p192 = pnand %p190, %p191
      %p193 = pneg %p192
      // Predicated region
      $region9: #{pointgencon_forward.5} parent=5 // pred_check
        _
      $region10: #{pointgencon_forward.5} parent=5 // pred_check_branch
        %195 = sbr.rel (%p192) target = $region12
      $region11: #{pointgencon_forward.5} parent=5 // pred_region
        %s196 = ssub.s32 %s23, 1
        // Predicated region
        $region13: #{pointgencon_forward.5} parent=11 // pred_check
          %p197 = pneg %p84
        $region14: #{pointgencon_forward.5} parent=11 // pred_check_branch
          %199 = sbr.rel (%p197) target = $region16
        $region15: #{pointgencon_forward.5} parent=11 // pred_region
          %s201 = ssub.s32 512, 512
          %202 = vsyncadd [#allocation6], %s201
          %s203 = sshll.u32 [#allocation5], 4
          %s204 = int_to_ptr.vmem [resolvable:$true] %s203
          %209 = dma.hbm_to_vmem [thread:$0]  %s1, 512, %s204, [#allocation6], 128, 128, 8
        $region16: #{pointgencon_forward.5} parent=11 // pred_fallthru
          _
        // Predicated region
        $region17: #{pointgencon_forward.5} parent=11 // pred_check
          %p210 = pneg %p105
        $region18: #{pointgencon_forward.5} parent=11 // pred_check_branch
          %212 = sbr.rel (%p210) target = $region20
        $region19: #{pointgencon_forward.5} parent=11 // pred_region
          %s214 = ssub.s32 512, 512
          %215 = vsyncadd [#allocation6], %s214
          %s216 = sshll.u32 [#allocation7], 4
          %s217 = int_to_ptr.vmem [resolvable:$true] %s216
          %222 = dma.hbm_to_vmem [thread:$0]  %s2, 512, %s217, [#allocation6], 128, 128, 8
        $region20: #{pointgencon_forward.5} parent=11 // pred_fallthru
          _
        // Predicated region
        $region21: #{pointgencon_forward.5} parent=11 // pred_check
          %p223 = pneg %p126
        $region22: #{pointgencon_forward.5} parent=11 // pred_check_branch
          %225 = sbr.rel (%p223) target = $region24
        $region23: #{pointgencon_forward.5} parent=11 // pred_region
          %s227 = ssub.s32 128, 128
          %228 = vsyncadd [#allocation9], %s227
          %s229 = sshll.u32 [#allocation8], 4
          %s230 = int_to_ptr.vmem [resolvable:$true] %s229
          %235 = dma.hbm_to_vmem [thread:$0]  %s3, 128, %s230, [#allocation9], 64, 64, 4
        $region24: #{pointgencon_forward.5} parent=11 // pred_fallthru
          _
      $region12: #{pointgencon_forward.5} parent=5 // pred_fallthru
        _
      %p236 = scmp.lt.s32.totalorder %s23, 2
      // Predicated region
      $region25: #{pointgencon_forward.5} parent=5 // pred_check
        %p237 = pneg %p236
      $region26: #{pointgencon_forward.5} parent=5 // pred_check_branch
        %239 = sbr.rel (%p237) target = $region28
      $region27: #{pointgencon_forward.5} parent=5 // pred_region
        // Predicated region
        $region29: #{pointgencon_forward.5} parent=27 // pred_check
          %p240 = pneg %p57
        $region30: #{pointgencon_forward.5} parent=27 // pred_check_branch
          %242 = sbr.rel (%p240) target = $region32
        $region31: #{pointgencon_forward.5} parent=27 // pred_region
          %s243 = sand.u32 %s47, 1
          %s244 = scalar_lea.sflag [#allocation3], %s243
          %s245 = sand.u32 %s47, 1
          %s246 = smul.addr %s245, 16
          %s247 = scalar_lea.vmem [#allocation2], %s246
          %s249 = ssub.s32 256, 256
          %250 = vsyncadd %s244, %s249
          %s251 = smul.addr %s30, 4
          %s252 = sadd.s32 %s31, %s251
          %s253 = smul.addr %s252, 64
          %s254 = scalar_lea.hbm %s0, %s253
          %s255 = sshll.u32 %s247, 4
          %s256 = int_to_ptr.vmem [resolvable:$true] %s255
          %261 = dma.hbm_to_vmem [thread:$0]  %s254, 256, %s256, %s244, 64, 64, 4
        $region32: #{pointgencon_forward.5} parent=27 // pred_fallthru
          _
      $region28: #{pointgencon_forward.5} parent=5 // pred_fallthru
        _
      %p262 = scmp.le.s32.totalorder 1, %s23
      %p263 = scmp.lt.s32.totalorder %s23, 3
      %p264 = pnand %p262, %p263
      %p265 = pneg %p264
      // Predicated region
      $region33: #{pointgencon_forward.5} parent=5 // pred_check
        _
      $region34: #{pointgencon_forward.5} parent=5 // pred_check_branch
        %267 = sbr.rel (%p264) target = $region36
      $region35: #{pointgencon_forward.5} parent=5 // pred_region
        %s268 = ssub.s32 %s23, 1
        %s269 = sand.u32 %s50, 1
        %s270 = scalar_lea.sflag [#allocation3], %s269
        %s271 = sand.u32 %s50, 1
        %s272 = smul.addr %s271, 16
        %s273 = scalar_lea.vmem [#allocation2], %s272
        // Predicated region
        $region37: #{pointgencon_forward.5} parent=35 // pred_check
          %p274 = pneg %p63
        $region38: #{pointgencon_forward.5} parent=35 // pred_check_branch
          %276 = sbr.rel (%p274) target = $region40
        $region39: #{pointgencon_forward.5} parent=35 // pred_region
          %277 = dma.done %s270, 256
        $region40: #{pointgencon_forward.5} parent=35 // pred_fallthru
          _
        // Predicated region
        $region41: #{pointgencon_forward.5} parent=35 // pred_check
          %p278 = pneg %p84
        $region42: #{pointgencon_forward.5} parent=35 // pred_check_branch
          %280 = sbr.rel (%p278) target = $region44
        $region43: #{pointgencon_forward.5} parent=35 // pred_region
          %281 = dma.done [#allocation6], 512
        $region44: #{pointgencon_forward.5} parent=35 // pred_fallthru
          _
        // Predicated region
        $region45: #{pointgencon_forward.5} parent=35 // pred_check
          %p282 = pneg %p105
        $region46: #{pointgencon_forward.5} parent=35 // pred_check_branch
          %284 = sbr.rel (%p282) target = $region48
        $region47: #{pointgencon_forward.5} parent=35 // pred_region
          %285 = dma.done [#allocation6], 512
        $region48: #{pointgencon_forward.5} parent=35 // pred_fallthru
          _
        // Predicated region
        $region49: #{pointgencon_forward.5} parent=35 // pred_check
          %p286 = pneg %p126
        $region50: #{pointgencon_forward.5} parent=35 // pred_check_branch
          %288 = sbr.rel (%p286) target = $region52
        $region51: #{pointgencon_forward.5} parent=35 // pred_region
          %289 = dma.done [#allocation9], 128
        $region52: #{pointgencon_forward.5} parent=35 // pred_fallthru
          _
        %s290 = sand.u32 %s50, 1
        %s291 = scalar_lea.sflag [#allocation3], %s290
        %s292 = sand.u32 %s50, 1
        %s293 = smul.addr %s292, 16
        %s294 = scalar_lea.vmem [#allocation2], %s293
        %p295 = pneg %p63
        %p296 = pneg %p60
        %p297 = pneg %p84
        %p298 = pneg %p81
        %p299 = pneg %p105
        %p300 = pneg %p102
        %p301 = pneg %p126
        %p302 = pneg %p123
        %p303 = pneg %p154
        %p304 = pneg %p151
        %s305 = sand.u32 %s141, 1
        %s306 = scalar_lea.sflag [#allocation4], %s305
        %s307 = sand.u32 %s141, 1
        %s308 = smul.addr %s307, 8
        %s309 = scalar_lea.vmem [#allocation10], %s308
        %p310 = pneg %p182
        %p311 = pneg %p179
        %s312 = sand.u32 %s169, 1
        %s313 = scalar_lea.sflag [#allocation12], %s312
        %s314 = sand.u32 %s169, 1
        %s315 = smul.addr %s314, 16
        %s316 = scalar_lea.vmem [#allocation11], %s315
        %v318 = vld [vmem:[%s273] sm:$0xf]
        %v319 = vld [vmem:[%s273 + $0x4] sm:$0xf]
        %v320 = vld [vmem:[%s273 + $0x8] sm:$0xf]
        %v321 = vld [vmem:[%s273 + $0xc] sm:$0xf]
        %v322 = vld [vmem:[#allocation5] sm:$0xff]
        %v323 = vld [vmem:[#allocation5 + $0x8] sm:$0xff]
        %v324 = vld [vmem:[#allocation5 + $0x10] sm:$0xff]
        %v325 = vld [vmem:[#allocation5 + $0x18] sm:$0xff]
        %v326 = vunpack.c.l.bf16 %v318
        %v327 = vunpack.c.l.bf16 %v319
        %v328 = vunpack.c.l.bf16 %v320
        %v329 = vunpack.c.l.bf16 %v321
        %331 = vset.pattern.permute.xlu0 0
        %332 = vperm.xlu0 %331, %v322
        %v333 = vpop.permute.xlu0 %332
        %336 = vset.pattern.permute.xlu0 0
        %337 = vperm.xlu0 %336, %v323
        %v338 = vpop.permute.xlu0 %337
        %341 = vset.pattern.permute.xlu0 0
        %342 = vperm.xlu0 %341, %v324
        %v343 = vpop.permute.xlu0 %342
        %346 = vset.pattern.permute.xlu0 0
        %347 = vperm.xlu0 %346, %v325
        %v348 = vpop.permute.xlu0 %347
        %v350 = vmul.f32 %v326, %v333
        %v351 = vmul.f32 %v327, %v338
        %v352 = vmul.f32 %v328, %v343
        %v353 = vmul.f32 %v329, %v348
        %v354 = vld [vmem:[#allocation7] sm:$0xff]
        %v355 = vld [vmem:[#allocation7 + $0x8] sm:$0xff]
        %v356 = vld [vmem:[#allocation7 + $0x10] sm:$0xff]
        %v357 = vld [vmem:[#allocation7 + $0x18] sm:$0xff]
        %359 = vset.pattern.permute.xlu0 0
        %360 = vperm.xlu0 %359, %v354
        %v361 = vpop.permute.xlu0 %360
        %364 = vset.pattern.permute.xlu0 0
        %365 = vperm.xlu0 %364, %v355
        %v366 = vpop.permute.xlu0 %365
        %369 = vset.pattern.permute.xlu0 0
        %370 = vperm.xlu0 %369, %v356
        %v371 = vpop.permute.xlu0 %370
        %374 = vset.pattern.permute.xlu0 0
        %375 = vperm.xlu0 %374, %v357
        %v376 = vpop.permute.xlu0 %375
        %v378 = vadd.f32 %v350, %v361
        %v379 = vadd.f32 %v351, %v366
        %v380 = vadd.f32 %v352, %v371
        %v381 = vadd.f32 %v353, %v376
        %v382 = vmax.f32 %v378, 0.0
        %v383 = vmax.f32 %v379, 0.0
        %v384 = vmax.f32 %v380, 0.0
        %v385 = vmax.f32 %v381, 0.0
        %v386 = vld [vmem:[#allocation8] sm:$0xf]
        %v387 = vld [vmem:[#allocation8 + $0x4] sm:$0xf]
        %v388 = vpack.c.bf16 %v383, %v382
        %v389 = vpack.c.bf16 %v385, %v384
        %v392 = vunpack.c.l.b16 %v386
        %v393 = vunpack.c.l.b16 %v387
        %v394 = vpack.c.b16 %v393, %v392
        %vm395 = vcmask 261120
        %v397 = vsel %vm395, %v394, 0
        %399 = vmatprep.subr.bf16.mxu0 0
        %400 = vmatpush1.bf16.msra.mxu0 %v388
        %401 = vmatprep.subr.bf16.mxu0 0
        %402 = vmatpush1.bf16.msra.mxu0 %v389
        %403 = vmatprep.subr.bf16.mxu0 0
        %404 = vmatpush1.bf16.msra.mxu0 0
        %405 = vmatprep.subr.bf16.mxu0 0
        %406 = vmatpush1.bf16.msra.mxu0 0
        %407 = vmatprep.subr.bf16.mxu0 0
        %408 = vmatpush1.bf16.msra.mxu0 0
        %409 = vmatprep.subr.bf16.mxu0 0
        %410 = vmatpush1.bf16.msra.mxu0 0
        %411 = vmatprep.subr.bf16.mxu0 0
        %412 = vmatpush1.bf16.msra.mxu0 0
        %413 = vmatprep.subr.bf16.mxu0 0
        %414 = vmatpush1.bf16.msra.mxu0 0
        %415 = vmatprep.subr.bf16.mxu0 0
        %416 = vmatpush1.bf16.msra.mxu0 0
        %417 = vmatprep.subr.bf16.mxu0 0
        %418 = vmatpush1.bf16.msra.mxu0 0
        %419 = vmatprep.subr.bf16.mxu0 0
        %420 = vmatpush1.bf16.msra.mxu0 0
        %421 = vmatprep.subr.bf16.mxu0 0
        %422 = vmatpush1.bf16.msra.mxu0 0
        %423 = vmatprep.subr.bf16.mxu0 0
        %424 = vmatpush1.bf16.msra.mxu0 0
        %425 = vmatprep.subr.bf16.mxu0 0
        %426 = vmatpush1.bf16.msra.mxu0 0
        %427 = vmatprep.subr.bf16.mxu0 0
        %428 = vmatpush1.bf16.msra.mxu0 0
        %429 = vmatprep.subr.bf16.mxu0 0
        %430 = vmatpush1.bf16.msra.mxu0 0
        %431 = vmatprep.mubr.bf16.mxu0 0
        %432 = vmatmul.mubr.bf16.gmra.mrb[0].mxu0 %v397
        %v433 = vpop.f32.mrb[0].mxu0
        %v434 = vadd.f32 0.0, %v433
        %v435 = vpop.f32.mrb[0].mxu0
        %v436 = vpop.f32.mrb[0].mxu0
        %v437 = vadd.f32 0.0, %v436
        %v438 = vpop.f32.mrb[0].mxu0
        %439 = vdwg.mxu0
        %v440 = vpack.c.bf16 %v437, %v434
        %v442 = vunpack.c.l.b16 %v440
        %v443 = vunpack.c.h.b16 %v440
        %v444 = vpack.c.b16 %v442, %v442
        %v445 = vpack.c.b16 %v443, %v443
        %vm448 = vcmask 125952
        %449 = vst.msk [vmem:[%s309] sm:$0xf] %vm448, %v444
        %450 = vst.msk [vmem:[%s309 + $0x4] sm:$0xf] %vm448, %v445
        %vm451 = vcmask 130048
        %v452 = vsel %vm451, %v434, 0.0
        %453 = vadd.xlane.f32.xlu0 %v452
        %v454 = vpop.xlane.xlu0 %453
        %v455 = vsel %vm451, %v437, 0.0
        %456 = vadd.xlane.f32.xlu0 %v455
        %v457 = vpop.xlane.xlu0 %456
        %vm458 = vcmask 7168
        %459 = vst.msk [vmem:[%s316] sm:$0xff] %vm458, %v454
        %460 = vst.msk [vmem:[%s316 + $0x8] sm:$0xff] %vm458, %v457
        %v461 = vmul.f32 %v434, %v434
        %v462 = vmul.f32 %v437, %v437
        %v463 = vsel %vm451, %v461, 0.0
        %464 = vadd.xlane.f32.xlu0 %v463
        %v465 = vpop.xlane.xlu0 %464
        %v466 = vsel %vm451, %v462, 0.0
        %467 = vadd.xlane.f32.xlu0 %v466
        %v468 = vpop.xlane.xlu0 %467
        %vm469 = vcmask 15368
        %470 = vst.msk [vmem:[%s316] sm:$0xff] %vm469, %v465
        %471 = vst.msk [vmem:[%s316 + $0x8] sm:$0xff] %vm469, %v468
        %s472 = sand.u32 %s141, 1
        %s473 = scalar_lea.sflag [#allocation4], %s472
        %s474 = sand.u32 %s141, 1
        %s475 = smul.addr %s474, 8
        %s476 = scalar_lea.vmem [#allocation10], %s475
        %s477 = sand.u32 %s169, 1
        %s478 = scalar_lea.sflag [#allocation12], %s477
        %s479 = sand.u32 %s169, 1
        %s480 = smul.addr %s479, 16
        %s481 = scalar_lea.vmem [#allocation11], %s480
        // Predicated region
        $region53: #{pointgencon_forward.5} parent=35 // pred_check
          %p482 = pneg %p151
        $region54: #{pointgencon_forward.5} parent=35 // pred_check_branch
          %484 = sbr.rel (%p482) target = $region56
        $region55: #{pointgencon_forward.5} parent=35 // pred_region
          %s486 = ssub.s32 128, 128
          %487 = vsyncadd %s473, %s486
          %s488 = smul.addr %s32, 2
          %s489 = sadd.s32 %s33, %s488
          %s490 = smul.addr %s489, 64
          %s491 = scalar_lea.hbm %s4, %s490
          %s492 = sshll.u32 %s476, 4
          %s493 = int_to_ptr.vmem [resolvable:$true] %s492
          %498 = dma.vmem_to_hbm [thread:$0]  %s493, 128, %s491, %s473, 64, 64, 4
        $region56: #{pointgencon_forward.5} parent=35 // pred_fallthru
          _
        // Predicated region
        $region57: #{pointgencon_forward.5} parent=35 // pred_check
          %p499 = pneg %p179
        $region58: #{pointgencon_forward.5} parent=35 // pred_check_branch
          %501 = sbr.rel (%p499) target = $region60
        $region59: #{pointgencon_forward.5} parent=35 // pred_region
          %s503 = ssub.s32 256, 256
          %504 = vsyncadd %s478, %s503
          %s505 = smul.addr %s33, 2
          %s506 = smul.addr %s32, 2
          %s507 = sadd.s32 %s505, %s506
          %s508 = smul.addr %s507, 128
          %s509 = scalar_lea.hbm %s5, %s508
          %s510 = sshll.u32 %s481, 4
          %s511 = int_to_ptr.vmem [resolvable:$true] %s510
          %516 = dma.vmem_to_hbm [thread:$0]  %s511, 256, %s509, %s478, 128, 128, 8
        $region60: #{pointgencon_forward.5} parent=35 // pred_fallthru
          _
      $region36: #{pointgencon_forward.5} parent=5 // pred_fallthru
        _
      %p517 = scmp.le.s32.totalorder 2, %s23
      // Predicated region
      $region61: #{pointgencon_forward.5} parent=5 // pred_check
        %p518 = pneg %p517
      $region62: #{pointgencon_forward.5} parent=5 // pred_check_branch
        %520 = sbr.rel (%p518) target = $region64
      $region63: #{pointgencon_forward.5} parent=5 // pred_region
        %s521 = ssub.s32 %s23, 2
        // Predicated region
        $region65: #{pointgencon_forward.5} parent=63 // pred_check
          %p522 = pneg %p157
        $region66: #{pointgencon_forward.5} parent=63 // pred_check_branch
          %524 = sbr.rel (%p522) target = $region68
        $region67: #{pointgencon_forward.5} parent=63 // pred_region
          %s525 = sand.u32 %s142, 1
          %s526 = scalar_lea.sflag [#allocation4], %s525
          %s527 = sand.u32 %s142, 1
          %s528 = smul.addr %s527, 8
          %s529 = scalar_lea.vmem [#allocation10], %s528
          %530 = dma.done %s526, 128
        $region68: #{pointgencon_forward.5} parent=63 // pred_fallthru
          _
        // Predicated region
        $region69: #{pointgencon_forward.5} parent=63 // pred_check
          %p531 = pneg %p185
        $region70: #{pointgencon_forward.5} parent=63 // pred_check_branch
          %533 = sbr.rel (%p531) target = $region72
        $region71: #{pointgencon_forward.5} parent=63 // pred_region
          %s534 = sand.u32 %s170, 1
          %s535 = scalar_lea.sflag [#allocation12], %s534
          %s536 = sand.u32 %s170, 1
          %s537 = smul.addr %s536, 16
          %s538 = scalar_lea.vmem [#allocation11], %s537
          %539 = dma.done %s535, 256
        $region72: #{pointgencon_forward.5} parent=63 // pred_fallthru
          _
      $region64: #{pointgencon_forward.5} parent=5 // pred_fallthru
        _
    $region6: #{pointgencon_forward.5} parent=1 // loop_footer
      %s27 = sadd.s32 1, %s23
    $region7: #{pointgencon_forward.5} parent=1 // loop_footer_branch
      %22 = sbr.rel target = $region3
    $region8: #{pointgencon_forward.5} parent=1 // loop_exit
      _
    %540 = vsyncpa [#allocation3], 1
    %s541 = scalar_lea.sflag [#allocation3], 1
    %542 = vsyncpa %s541, 1
    %543 = vsyncpa [#allocation6], 1
    %544 = vsyncpa [#allocation9], 1
    %545 = vsyncpa [#allocation4], 1
    %s546 = scalar_lea.sflag [#allocation4], 1
    %547 = vsyncpa %s546, 1
    %548 = vsyncpa [#allocation12], 1
    %s549 = scalar_lea.sflag [#allocation12], 1
    %550 = vsyncpa %s549, 1

// kernel: pointgencon_forward.4
$region0: #{pointgencon_forward.4}
  #allocation0 [shape = 'u32[]', space=smem, size = 0x4, offset = 0x4, fixed_abs, tag = 'smem constant byte address 0x4 - core index']
  #allocation1 [shape = 'u32[144,128]{1,0:T(1,128)}', space=vmem, size = 0x12000, scoped, tag = 'internal scratch']
  %s0 = inlined_call_operand.hbm [shape: f32[2,32,16], index: 0, kind: input, shape index: {}]
  %s1 = inlined_call_operand.hbm [shape: bf16[32,32], index: 1, kind: input, shape index: {}]
  %s2 = inlined_call_operand.hbm [shape: bf16[2,32,16], index: 2, kind: output, shape index: {0}]
  %s3 = inlined_call_operand.hbm [shape: f32[2,1,32,2], index: 3, kind: output, shape index: {1}]
  %4 = xla_tuple %s2, %s3
  %s5 = sld [smem:[#allocation0]]
  $region57: #{pointgencon_forward.4} parent=0
    _
  %s7 = ssub.s32 1, %s5
  %s8 = scalar_select 0, %s7, %s5
  $region1: #{pointgencon_forward.4} parent=0
    #allocation2 [shape = 'u8[32768]{0}', space=vmem, size = 0x8000, scoped, tag = 'input window, operand 0']
    #allocation3 [shape = 's32[2]{0}', space=sflag, size = 0x8, scoped, tag = 'scoped memory for pointgencon_forward.4']
    #allocation4 [shape = 's32[2]{0}', space=sflag, size = 0x8, scoped, tag = 'scoped memory for pointgencon_forward.4']
    #allocation5 [shape = 'u8[8192]{0}', space=vmem, size = 0x2000, scoped, tag = 'input window, operand 1, single buffered']
    #allocation6 [shape = 's32[1]{0}', space=sflag, size = 0x4, scoped, tag = 'scoped memory for pointgencon_forward.4']
    #allocation7 [shape = 'u8[16384]{0}', space=vmem, size = 0x4000, scoped, tag = 'output window, operand 0']
    #allocation8 [shape = 'u8[32768]{0}', space=vmem, size = 0x8000, scoped, tag = 'output window, operand 1']
    #allocation9 [shape = 's32[2]{0}', space=sflag, size = 0x8, scoped, tag = 'scoped memory for pointgencon_forward.4']
    %9 = vsyncpa [#allocation3], 0
    %s10 = scalar_lea.sflag [#allocation3], 1
    %11 = vsyncpa %s10, 0
    %12 = vsyncpa [#allocation6], 0
    %13 = vsyncpa [#allocation4], 0
    %s14 = scalar_lea.sflag [#allocation4], 1
    %15 = vsyncpa %s14, 0
    %16 = vsyncpa [#allocation9], 0
    %s17 = scalar_lea.sflag [#allocation9], 1
    %18 = vsyncpa %s17, 0
    loop: start=0, step=1, limit=4
    $region2: #{pointgencon_forward.4} parent=1 // loop_pre_header
      _
    $region3: #{pointgencon_forward.4} parent=1 // loop_header
      %s20 = sphi 0, %s24
      %p21 = scmp.ge.s32.totalorder %s20, 4
      %s27 = sphi 0, %s39
      %s28 = sphi 0, %s35
      %s29 = sphi 0, %s27
      %s30 = sphi 0, %s28
      %s31 = sphi 0, %s29
      %s32 = sphi 0, %s30
      %s44 = sphi 0, %s46
      %s47 = sphi 0, %s44
      %s48 = sphi 0, %s47
      %s64 = sphi 0, %s48
      %s68 = sphi 0, %s68
      %s70 = sphi 0, %s68
      %s71 = sphi 0, %s70
      %s85 = sphi 0, %s71
      %s93 = sphi 0, %s95
      %s96 = sphi 0, %s93
      %s97 = sphi 0, %s96
      %s113 = sphi 0, %s97
      %s121 = sphi 0, %s123
      %s124 = sphi 0, %s121
      %s125 = sphi 0, %s124
      %s141 = sphi 0, %s125
    $region4: #{pointgencon_forward.4} parent=1 // loop_header_branch
      %23 = sbr.rel (%p21) target = $region8
    $region5: #{pointgencon_forward.4} parent=1 // loop_body
      %s25 = ssub.s32 %s20, 1
      %s26 = ssub.s32 %s20, 2
      %s33 = sadd.s32 1, %s28
      %p34 = scmp.ge.s32.totalorder %s33, 1
      %s35 = scalar_select %p34, 0, %s33
      %s36 = sadd.s32 1, %s27
      %s37 = scalar_select %p34, %s36, %s27
      %p38 = scmp.ge.s32.totalorder %s37, 2
      %s39 = scalar_select %p38, 0, %s37
      %s40 = ssub.s32 %s27, %s39
      %s41 = ssub.s32 %s28, %s35
      %s42 = sor.u32 %s40, %s41
      %p43 = scmp.eq.s32.totalorder %s42, 0
      %s45 = sadd.s32 %s44, 1
      %s46 = scalar_select %p43, %s44, %s45
      %p49 = pneg %p43
      %p50 = scmp.eq.s32.totalorder %s20, 1
      %p51 = por %p49, %p50
      %p52 = scmp.ne.s32.totalorder %s44, %s47
      %p53 = scmp.eq.s32.totalorder %s20, 0
      %p54 = por %p52, %p53
      %p55 = scmp.ne.s32.totalorder %s44, %s47
      %p56 = scmp.eq.s32.totalorder %s25, 1
      %p57 = por %p55, %p56
      %p58 = scmp.ne.s32.totalorder %s47, %s48
      %p59 = scmp.eq.s32.totalorder %s25, 0
      %p60 = por %p58, %p59
      %p61 = scmp.ne.s32.totalorder %s47, %s48
      %p62 = scmp.eq.s32.totalorder %s26, 1
      %p63 = por %p61, %p62
      %p65 = scmp.ne.s32.totalorder %s48, %s64
      %p66 = scmp.eq.s32.totalorder %s26, 0
      %p67 = por %p65, %p66
      %s69 = sadd.s32 %s68, 1
      %p72 = scmp.eq.s32.totalorder %s20, 1
      %p73 = scmp.ne.s32.totalorder %s68, %s70
      %p74 = scmp.eq.s32.totalorder %s20, 0
      %p75 = por %p73, %p74
      %p76 = scmp.ne.s32.totalorder %s68, %s70
      %p77 = scmp.eq.s32.totalorder %s25, 1
      %p78 = por %p76, %p77
      %p79 = scmp.ne.s32.totalorder %s70, %s71
      %p80 = scmp.eq.s32.totalorder %s25, 0
      %p81 = por %p79, %p80
      %p82 = scmp.ne.s32.totalorder %s70, %s71
      %p83 = scmp.eq.s32.totalorder %s26, 1
      %p84 = por %p82, %p83
      %p86 = scmp.ne.s32.totalorder %s71, %s85
      %p87 = scmp.eq.s32.totalorder %s26, 0
      %p88 = por %p86, %p87
      %s89 = ssub.s32 %s27, %s39
      %s90 = ssub.s32 %s28, %s35
      %s91 = sor.u32 %s89, %s90
      %p92 = scmp.eq.s32.totalorder %s91, 0
      %s94 = sadd.s32 %s93, 1
      %s95 = scalar_select %p92, %s93, %s94
      %p98 = pneg %p92
      %p99 = scmp.eq.s32.totalorder %s20, 1
      %p100 = por %p98, %p99
      %p101 = scmp.ne.s32.totalorder %s93, %s96
      %p102 = scmp.eq.s32.totalorder %s20, 0
      %p103 = por %p101, %p102
      %p104 = scmp.ne.s32.totalorder %s93, %s96
      %p105 = scmp.eq.s32.totalorder %s25, 1
      %p106 = por %p104, %p105
      %p107 = scmp.ne.s32.totalorder %s96, %s97
      %p108 = scmp.eq.s32.totalorder %s25, 0
      %p109 = por %p107, %p108
      %p110 = scmp.ne.s32.totalorder %s96, %s97
      %p111 = scmp.eq.s32.totalorder %s26, 1
      %p112 = por %p110, %p111
      %p114 = scmp.ne.s32.totalorder %s97, %s113
      %p115 = scmp.eq.s32.totalorder %s26, 0
      %p116 = por %p114, %p115
      %s117 = ssub.s32 %s27, %s39
      %s118 = ssub.s32 %s28, %s35
      %s119 = sor.u32 %s117, %s118
      %p120 = scmp.eq.s32.totalorder %s119, 0
      %s122 = sadd.s32 %s121, 1
      %s123 = scalar_select %p120, %s121, %s122
      %p126 = pneg %p120
      %p127 = scmp.eq.s32.totalorder %s20, 1
      %p128 = por %p126, %p127
      %p129 = scmp.ne.s32.totalorder %s121, %s124
      %p130 = scmp.eq.s32.totalorder %s20, 0
      %p131 = por %p129, %p130
      %p132 = scmp.ne.s32.totalorder %s121, %s124
      %p133 = scmp.eq.s32.totalorder %s25, 1
      %p134 = por %p132, %p133
      %p135 = scmp.ne.s32.totalorder %s124, %s125
      %p136 = scmp.eq.s32.totalorder %s25, 0
      %p137 = por %p135, %p136
      %p138 = scmp.ne.s32.totalorder %s124, %s125
      %p139 = scmp.eq.s32.totalorder %s26, 1
      %p140 = por %p138, %p139
      %p142 = scmp.ne.s32.totalorder %s125, %s141
      %p143 = scmp.eq.s32.totalorder %s26, 0
      %p144 = por %p142, %p143
      %p145 = scmp.le.s32.totalorder 1, %s20
      %p146 = scmp.lt.s32.totalorder %s20, 3
      %p147 = pnand %p145, %p146
      %p148 = pneg %p147
      // Predicated region
      $region9: #{pointgencon_forward.4} parent=5 // pred_check
        _
      $region10: #{pointgencon_forward.4} parent=5 // pred_check_branch
        %150 = sbr.rel (%p147) target = $region12
      $region11: #{pointgencon_forward.4} parent=5 // pred_region
        %s151 = ssub.s32 %s20, 1
        // Predicated region
        $region13: #{pointgencon_forward.4} parent=11 // pred_check
          %p152 = pneg %p81
        $region14: #{pointgencon_forward.4} parent=11 // pred_check_branch
          %154 = sbr.rel (%p152) target = $region16
        $region15: #{pointgencon_forward.4} parent=11 // pred_region
          %s156 = ssub.s32 256, 256
          %157 = vsyncadd [#allocation6], %s156
          %s158 = sshll.u32 [#allocation5], 4
          %s159 = int_to_ptr.vmem [resolvable:$true] %s158
          %164 = dma.hbm_to_vmem [thread:$0]  %s1, 256, %s159, [#allocation6], 64, 64, 4
        $region16: #{pointgencon_forward.4} parent=11 // pred_fallthru
          _
      $region12: #{pointgencon_forward.4} parent=5 // pred_fallthru
        _
      %p165 = scmp.lt.s32.totalorder %s20, 2
      // Predicated region
      $region17: #{pointgencon_forward.4} parent=5 // pred_check
        %p166 = pneg %p165
      $region18: #{pointgencon_forward.4} parent=5 // pred_check_branch
        %168 = sbr.rel (%p166) target = $region20
      $region19: #{pointgencon_forward.4} parent=5 // pred_region
        // Predicated region
        $region21: #{pointgencon_forward.4} parent=19 // pred_check
          %p169 = pneg %p54
        $region22: #{pointgencon_forward.4} parent=19 // pred_check_branch
          %171 = sbr.rel (%p169) target = $region24
        $region23: #{pointgencon_forward.4} parent=19 // pred_region
          %s172 = sand.u32 %s44, 1
          %s173 = scalar_lea.sflag [#allocation3], %s172
          %s174 = sand.u32 %s44, 1
          %s175 = smul.addr %s174, 32
          %s176 = scalar_lea.vmem [#allocation2], %s175
          %s178 = ssub.s32 512, 512
          %179 = vsyncadd %s173, %s178
          %s180 = smul.addr %s27, 4
          %s181 = sadd.s32 %s28, %s180
          %s182 = smul.addr %s181, 128
          %s183 = scalar_lea.hbm %s0, %s182
          %s184 = sshll.u32 %s176, 4
          %s185 = int_to_ptr.vmem [resolvable:$true] %s184
          %190 = dma.hbm_to_vmem [thread:$0]  %s183, 512, %s185, %s173, 128, 128, 8
        $region24: #{pointgencon_forward.4} parent=19 // pred_fallthru
          _
      $region20: #{pointgencon_forward.4} parent=5 // pred_fallthru
        _
      %p191 = scmp.le.s32.totalorder 1, %s20
      %p192 = scmp.lt.s32.totalorder %s20, 3
      %p193 = pnand %p191, %p192
      %p194 = pneg %p193
      // Predicated region
      $region25: #{pointgencon_forward.4} parent=5 // pred_check
        _
      $region26: #{pointgencon_forward.4} parent=5 // pred_check_branch
        %196 = sbr.rel (%p193) target = $region28
      $region27: #{pointgencon_forward.4} parent=5 // pred_region
        %s197 = ssub.s32 %s20, 1
        %s198 = sand.u32 %s47, 1
        %s199 = scalar_lea.sflag [#allocation3], %s198
        %s200 = sand.u32 %s47, 1
        %s201 = smul.addr %s200, 32
        %s202 = scalar_lea.vmem [#allocation2], %s201
        // Predicated region
        $region29: #{pointgencon_forward.4} parent=27 // pred_check
          %p203 = pneg %p60
        $region30: #{pointgencon_forward.4} parent=27 // pred_check_branch
          %205 = sbr.rel (%p203) target = $region32
        $region31: #{pointgencon_forward.4} parent=27 // pred_region
          %206 = dma.done %s199, 512
        $region32: #{pointgencon_forward.4} parent=27 // pred_fallthru
          _
        // Predicated region
        $region33: #{pointgencon_forward.4} parent=27 // pred_check
          %p207 = pneg %p81
        $region34: #{pointgencon_forward.4} parent=27 // pred_check_branch
          %209 = sbr.rel (%p207) target = $region36
        $region35: #{pointgencon_forward.4} parent=27 // pred_region
          %210 = dma.done [#allocation6], 256
        $region36: #{pointgencon_forward.4} parent=27 // pred_fallthru
          _
        %s211 = sand.u32 %s47, 1
        %s212 = scalar_lea.sflag [#allocation3], %s211
        %s213 = sand.u32 %s47, 1
        %s214 = smul.addr %s213, 32
        %s215 = scalar_lea.vmem [#allocation2], %s214
        %p216 = pneg %p60
        %p217 = pneg %p57
        %p218 = pneg %p81
        %p219 = pneg %p78
        %p220 = pneg %p109
        %p221 = pneg %p106
        %s222 = sand.u32 %s96, 1
        %s223 = scalar_lea.sflag [#allocation4], %s222
        %s224 = sand.u32 %s96, 1
        %s225 = smul.addr %s224, 16
        %s226 = scalar_lea.vmem [#allocation7], %s225
        %p227 = pneg %p137
        %p228 = pneg %p134
        %s229 = sand.u32 %s124, 1
        %s230 = scalar_lea.sflag [#allocation9], %s229
        %s231 = sand.u32 %s124, 1
        %s232 = smul.addr %s231, 32
        %s233 = scalar_lea.vmem [#allocation8], %s232
        %v235 = vld [vmem:[#allocation5] sm:$0xf]
        %v236 = vld [vmem:[#allocation5 + $0x4] sm:$0xf]
        %v237 = vld [vmem:[#allocation5 + $0x8] sm:$0xf]
        %v238 = vld [vmem:[#allocation5 + $0xc] sm:$0xf]
        %v239 = vld [vmem:[%s202] sm:$0xff]
        %v240 = vld [vmem:[%s202 + $0x8] sm:$0xff]
        %v241 = vld [vmem:[%s202 + $0x10] sm:$0xff]
        %v242 = vld [vmem:[%s202 + $0x18] sm:$0xff]
        %v243 = vpack.c.bf16 %v240, %v239
        %v244 = vpack.c.bf16 %v242, %v241
        %v249 = vunpack.c.l.b16 %v235
        %v250 = vunpack.c.l.b16 %v236
        %v251 = vunpack.c.l.b16 %v237
        %v252 = vunpack.c.l.b16 %v238
        %v253 = vpack.c.b16 %v250, %v249
        %v254 = vpack.c.b16 %v252, %v251
        %vm255 = vcmask 261120
        %v257 = vsel %vm255, %v253, 0
        %v260 = vsel %vm255, %v254, 0
        %262 = vmatprep.subr.bf16.mxu0 0
        %263 = vmatpush1.bf16.msra.mxu0 %v243
        %264 = vmatprep.subr.bf16.mxu0 0
        %265 = vmatpush1.bf16.msra.mxu0 %v244
        %266 = vmatprep.subr.bf16.mxu0 0
        %267 = vmatpush1.bf16.msra.mxu0 0
        %268 = vmatprep.subr.bf16.mxu0 0
        %269 = vmatpush1.bf16.msra.mxu0 0
        %270 = vmatprep.subr.bf16.mxu0 0
        %271 = vmatpush1.bf16.msra.mxu0 0
        %272 = vmatprep.subr.bf16.mxu0 0
        %273 = vmatpush1.bf16.msra.mxu0 0
        %274 = vmatprep.subr.bf16.mxu0 0
        %275 = vmatpush1.bf16.msra.mxu0 0
        %276 = vmatprep.subr.bf16.mxu0 0
        %277 = vmatpush1.bf16.msra.mxu0 0
        %278 = vmatprep.subr.bf16.mxu0 0
        %279 = vmatpush1.bf16.msra.mxu0 0
        %280 = vmatprep.subr.bf16.mxu0 0
        %281 = vmatpush1.bf16.msra.mxu0 0
        %282 = vmatprep.subr.bf16.mxu0 0
        %283 = vmatpush1.bf16.msra.mxu0 0
        %284 = vmatprep.subr.bf16.mxu0 0
        %285 = vmatpush1.bf16.msra.mxu0 0
        %286 = vmatprep.subr.bf16.mxu0 0
        %287 = vmatpush1.bf16.msra.mxu0 0
        %288 = vmatprep.subr.bf16.mxu0 0
        %289 = vmatpush1.bf16.msra.mxu0 0
        %290 = vmatprep.subr.bf16.mxu0 0
        %291 = vmatpush1.bf16.msra.mxu0 0
        %292 = vmatprep.subr.bf16.mxu0 0
        %293 = vmatpush1.bf16.msra.mxu0 0
        %294 = vmatprep.mubr.bf16.mxu0 0
        %295 = vmatmul.mubr.bf16.gmra.mrb[0].mxu0 %v257
        %v296 = vpop.f32.mrb[0].mxu0
        %v297 = vadd.f32 0.0, %v296
        %v298 = vpop.f32.mrb[0].mxu0
        %v299 = vpop.f32.mrb[0].mxu0
        %v300 = vadd.f32 0.0, %v299
        %v301 = vpop.f32.mrb[0].mxu0
        %302 = vmatprep.mubr.bf16.mxu0 0
        %303 = vmatmul.mubr.bf16.gmra.mrb[0].mxu0 %v260
        %v304 = vpop.f32.mrb[0].mxu0
        %v305 = vadd.f32 0.0, %v304
        %v306 = vpop.f32.mrb[0].mxu0
        %v307 = vpop.f32.mrb[0].mxu0
        %v308 = vadd.f32 0.0, %v307
        %v309 = vpop.f32.mrb[0].mxu0
        %310 = vdwg.mxu0
        %v311 = vpack.c.bf16 %v300, %v297
        %v312 = vpack.c.bf16 %v308, %v305
        %v315 = vunpack.c.l.b16 %v311
        %v316 = vunpack.c.h.b16 %v311
        %v317 = vunpack.c.l.b16 %v312
        %v318 = vunpack.c.h.b16 %v312
        %v319 = vpack.c.b16 %v315, %v315
        %v320 = vpack.c.b16 %v316, %v316
        %v321 = vpack.c.b16 %v317, %v317
        %v322 = vpack.c.b16 %v318, %v318
        %vm327 = vcmask 125952
        %328 = vst.msk [vmem:[%s226] sm:$0xf] %vm327, %v319
        %329 = vst.msk [vmem:[%s226 + $0x4] sm:$0xf] %vm327, %v320
        %330 = vst.msk [vmem:[%s226 + $0x8] sm:$0xf] %vm327, %v321
        %331 = vst.msk [vmem:[%s226 + $0xc] sm:$0xf] %vm327, %v322
        %vm332 = vcmask 130048
        %v333 = vsel %vm332, %v297, 0.0
        %334 = vadd.xlane.f32.xlu0 %v333
        %v335 = vpop.xlane.xlu0 %334
        %v336 = vsel %vm332, %v300, 0.0
        %337 = vadd.xlane.f32.xlu0 %v336
        %v338 = vpop.xlane.xlu0 %337
        %v339 = vsel %vm332, %v305, 0.0
        %340 = vadd.xlane.f32.xlu0 %v339
        %v341 = vpop.xlane.xlu0 %340
        %v342 = vsel %vm332, %v308, 0.0
        %343 = vadd.xlane.f32.xlu0 %v342
        %v344 = vpop.xlane.xlu0 %343
        %vm345 = vcmask 7168
        %346 = vst.msk [vmem:[%s233] sm:$0xff] %vm345, %v335
        %347 = vst.msk [vmem:[%s233 + $0x8] sm:$0xff] %vm345, %v338
        %348 = vst.msk [vmem:[%s233 + $0x10] sm:$0xff] %vm345, %v341
        %349 = vst.msk [vmem:[%s233 + $0x18] sm:$0xff] %vm345, %v344
        %v350 = vmul.f32 %v297, %v297
        %v351 = vmul.f32 %v300, %v300
        %v352 = vmul.f32 %v305, %v305
        %v353 = vmul.f32 %v308, %v308
        %v354 = vsel %vm332, %v350, 0.0
        %355 = vadd.xlane.f32.xlu0 %v354
        %v356 = vpop.xlane.xlu0 %355
        %v357 = vsel %vm332, %v351, 0.0
        %358 = vadd.xlane.f32.xlu0 %v357
        %v359 = vpop.xlane.xlu0 %358
        %v360 = vsel %vm332, %v352, 0.0
        %361 = vadd.xlane.f32.xlu0 %v360
        %v362 = vpop.xlane.xlu0 %361
        %v363 = vsel %vm332, %v353, 0.0
        %364 = vadd.xlane.f32.xlu0 %v363
        %v365 = vpop.xlane.xlu0 %364
        %vm366 = vcmask 15368
        %367 = vst.msk [vmem:[%s233] sm:$0xff] %vm366, %v356
        %368 = vst.msk [vmem:[%s233 + $0x8] sm:$0xff] %vm366, %v359
        %369 = vst.msk [vmem:[%s233 + $0x10] sm:$0xff] %vm366, %v362
        %370 = vst.msk [vmem:[%s233 + $0x18] sm:$0xff] %vm366, %v365
        %s371 = sand.u32 %s96, 1
        %s372 = scalar_lea.sflag [#allocation4], %s371
        %s373 = sand.u32 %s96, 1
        %s374 = smul.addr %s373, 16
        %s375 = scalar_lea.vmem [#allocation7], %s374
        %s376 = sand.u32 %s124, 1
        %s377 = scalar_lea.sflag [#allocation9], %s376
        %s378 = sand.u32 %s124, 1
        %s379 = smul.addr %s378, 32
        %s380 = scalar_lea.vmem [#allocation8], %s379
        // Predicated region
        $region37: #{pointgencon_forward.4} parent=27 // pred_check
          %p381 = pneg %p106
        $region38: #{pointgencon_forward.4} parent=27 // pred_check_branch
          %383 = sbr.rel (%p381) target = $region40
        $region39: #{pointgencon_forward.4} parent=27 // pred_region
          %s385 = ssub.s32 256, 256
          %386 = vsyncadd %s372, %s385
          %s387 = smul.addr %s29, 4
          %s388 = sadd.s32 %s30, %s387
          %s389 = smul.addr %s388, 64
          %s390 = scalar_lea.hbm %s2, %s389
          %s391 = sshll.u32 %s375, 4
          %s392 = int_to_ptr.vmem [resolvable:$true] %s391
          %397 = dma.vmem_to_hbm [thread:$0]  %s392, 256, %s390, %s372, 64, 64, 4
        $region40: #{pointgencon_forward.4} parent=27 // pred_fallthru
          _
        // Predicated region
        $region41: #{pointgencon_forward.4} parent=27 // pred_check
          %p398 = pneg %p134
        $region42: #{pointgencon_forward.4} parent=27 // pred_check_branch
          %400 = sbr.rel (%p398) target = $region44
        $region43: #{pointgencon_forward.4} parent=27 // pred_region
          %s402 = ssub.s32 512, 512
          %403 = vsyncadd %s377, %s402
          %s404 = smul.addr %s30, 4
          %s405 = smul.addr %s29, 4
          %s406 = sadd.s32 %s404, %s405
          %s407 = smul.addr %s406, 128
          %s408 = scalar_lea.hbm %s3, %s407
          %s409 = sshll.u32 %s380, 4
          %s410 = int_to_ptr.vmem [resolvable:$true] %s409
          %415 = dma.vmem_to_hbm [thread:$0]  %s410, 512, %s408, %s377, 128, 128, 8
        $region44: #{pointgencon_forward.4} parent=27 // pred_fallthru
          _
      $region28: #{pointgencon_forward.4} parent=5 // pred_fallthru
        _
      %p416 = scmp.le.s32.totalorder 2, %s20
      // Predicated region
      $region45: #{pointgencon_forward.4} parent=5 // pred_check
        %p417 = pneg %p416
      $region46: #{pointgencon_forward.4} parent=5 // pred_check_branch
        %419 = sbr.rel (%p417) target = $region48
      $region47: #{pointgencon_forward.4} parent=5 // pred_region
        %s420 = ssub.s32 %s20, 2
        // Predicated region
        $region49: #{pointgencon_forward.4} parent=47 // pred_check
          %p421 = pneg %p112
        $region50: #{pointgencon_forward.4} parent=47 // pred_check_branch
          %423 = sbr.rel (%p421) target = $region52
        $region51: #{pointgencon_forward.4} parent=47 // pred_region
          %s424 = sand.u32 %s97, 1
          %s425 = scalar_lea.sflag [#allocation4], %s424
          %s426 = sand.u32 %s97, 1
          %s427 = smul.addr %s426, 16
          %s428 = scalar_lea.vmem [#allocation7], %s427
          %429 = dma.done %s425, 256
        $region52: #{pointgencon_forward.4} parent=47 // pred_fallthru
          _
        // Predicated region
        $region53: #{pointgencon_forward.4} parent=47 // pred_check
          %p430 = pneg %p140
        $region54: #{pointgencon_forward.4} parent=47 // pred_check_branch
          %432 = sbr.rel (%p430) target = $region56
        $region55: #{pointgencon_forward.4} parent=47 // pred_region
          %s433 = sand.u32 %s125, 1
          %s434 = scalar_lea.sflag [#allocation9], %s433
          %s435 = sand.u32 %s125, 1
          %s436 = smul.addr %s435, 32
          %s437 = scalar_lea.vmem [#allocation8], %s436
          %438 = dma.done %s434, 512
        $region56: #{pointgencon_forward.4} parent=47 // pred_fallthru
          _
      $region48: #{pointgencon_forward.4} parent=5 // pred_fallthru
        _
    $region6: #{pointgencon_forward.4} parent=1 // loop_footer
      %s24 = sadd.s32 1, %s20
    $region7: #{pointgencon_forward.4} parent=1 // loop_footer_branch
      %19 = sbr.rel target = $region3
    $region8: #{pointgencon_forward.4} parent=1 // loop_exit
      _
    %439 = vsyncpa [#allocation3], 1
    %s440 = scalar_lea.sflag [#allocation3], 1
    %441 = vsyncpa %s440, 1
    %442 = vsyncpa [#allocation6], 1
    %443 = vsyncpa [#allocation4], 1
    %s444 = scalar_lea.sflag [#allocation4], 1
    %445 = vsyncpa %s444, 1
    %446 = vsyncpa [#allocation9], 1
    %s447 = scalar_lea.sflag [#allocation9], 1
    %448 = vsyncpa %s447, 1

// kernel: pointgencon_forward.7
$region0: #{pointgencon_forward.7}
  #allocation0 [shape = 'u32[]', space=smem, size = 0x4, offset = 0x4, fixed_abs, tag = 'smem constant byte address 0x4 - core index']
  #allocation1 [shape = 'u32[144,128]{1,0:T(1,128)}', space=vmem, size = 0x12000, scoped, tag = 'internal scratch']
  %s0 = inlined_call_operand.hbm [shape: bf16[2,8,16], index: 0, kind: input, shape index: {}]
  %s1 = inlined_call_operand.hbm [shape: f32[8,1], index: 1, kind: input, shape index: {}]
  %s2 = inlined_call_operand.hbm [shape: f32[8,1], index: 2, kind: input, shape index: {}]
  %s3 = inlined_call_operand.hbm [shape: bf16[3,8], index: 3, kind: input, shape index: {}]
  %s4 = inlined_call_operand.hbm [shape: f32[3,1], index: 4, kind: input, shape index: {}]
  %s5 = inlined_call_operand.hbm [shape: f32[2,3,16], index: 5, kind: output, shape index: {}]
  %s6 = sld [smem:[#allocation0]]
  $region73: #{pointgencon_forward.7} parent=0
    _
  %s8 = ssub.s32 1, %s6
  %s9 = scalar_select 0, %s8, %s6
  $region1: #{pointgencon_forward.7} parent=0
    #allocation2 [shape = 'u8[4096]{0}', space=vmem, size = 0x1000, scoped, tag = 'input window, operand 0']
    #allocation3 [shape = 's32[2]{0}', space=sflag, size = 0x8, scoped, tag = 'scoped memory for pointgencon_forward.7']
    #allocation4 [shape = 's32[2]{0}', space=sflag, size = 0x8, scoped, tag = 'scoped memory for pointgencon_forward.7']
    #allocation5 [shape = 'u8[4096]{0}', space=vmem, size = 0x1000, scoped, tag = 'input window, operand 1, single buffered']
    #allocation6 [shape = 's32[1]{0}', space=sflag, size = 0x4, scoped, tag = 'scoped memory for pointgencon_forward.7']
    #allocation7 [shape = 'u8[4096]{0}', space=vmem, size = 0x1000, scoped, tag = 'input window, operand 2, single buffered']
    #allocation8 [shape = 'u8[1024]{0}', space=vmem, size = 0x400, scoped, tag = 'input window, operand 3, single buffered']
    #allocation9 [shape = 's32[1]{0}', space=sflag, size = 0x4, scoped, tag = 'scoped memory for pointgencon_forward.7']
    #allocation10 [shape = 'u8[2048]{0}', space=vmem, size = 0x800, scoped, tag = 'input window, operand 4, single buffered']
    #allocation11 [shape = 'u8[4096]{0}', space=vmem, size = 0x1000, scoped, tag = 'output window, operand 0']
    %10 = vsyncpa [#allocation3], 0
    %s11 = scalar_lea.sflag [#allocation3], 1
    %12 = vsyncpa %s11, 0
    %13 = vsyncpa [#allocation6], 0
    %14 = vsyncpa [#allocation9], 0
    %15 = vsyncpa [#allocation4], 0
    %s16 = scalar_lea.sflag [#allocation4], 1
    %17 = vsyncpa %s16, 0
    loop: start=0, step=1, limit=4
    $region2: #{pointgencon_forward.7} parent=1 // loop_pre_header
      _
    $region3: #{pointgencon_forward.7} parent=1 // loop_header
      %s19 = sphi 0, %s23
      %p20 = scmp.ge.s32.totalorder %s19, 4
      %s26 = sphi 0, %s38
      %s27 = sphi 0, %s34
      %s28 = sphi 0, %s26
      %s29 = sphi 0, %s27
      %s30 = sphi 0, %s28
      %s31 = sphi 0, %s29
      %s43 = sphi 0, %s45
      %s46 = sphi 0, %s43
      %s47 = sphi 0, %s46
      %s63 = sphi 0, %s47
      %s67 = sphi 0, %s67
      %s69 = sphi 0, %s67
      %s70 = sphi 0, %s69
      %s84 = sphi 0, %s70
      %s88 = sphi 0, %s88
      %s90 = sphi 0, %s88
      %s91 = sphi 0, %s90
      %s105 = sphi 0, %s91
      %s109 = sphi 0, %s109
      %s111 = sphi 0, %s109
      %s112 = sphi 0, %s111
      %s126 = sphi 0, %s112
      %s130 = sphi 0, %s130
      %s132 = sphi 0, %s130
      %s133 = sphi 0, %s132
      %s147 = sphi 0, %s133
      %s155 = sphi 0, %s157
      %s158 = sphi 0, %s155
      %s159 = sphi 0, %s158
      %s175 = sphi 0, %s159
    $region4: #{pointgencon_forward.7} parent=1 // loop_header_branch
      %22 = sbr.rel (%p20) target = $region8
    $region5: #{pointgencon_forward.7} parent=1 // loop_body
      %s24 = ssub.s32 %s19, 1
      %s25 = ssub.s32 %s19, 2
      %s32 = sadd.s32 1, %s27
      %p33 = scmp.ge.s32.totalorder %s32, 1
      %s34 = scalar_select %p33, 0, %s32
      %s35 = sadd.s32 1, %s26
      %s36 = scalar_select %p33, %s35, %s26
      %p37 = scmp.ge.s32.totalorder %s36, 2
      %s38 = scalar_select %p37, 0, %s36
      %s39 = ssub.s32 %s26, %s38
      %s40 = ssub.s32 %s27, %s34
      %s41 = sor.u32 %s39, %s40
      %p42 = scmp.eq.s32.totalorder %s41, 0
      %s44 = sadd.s32 %s43, 1
      %s45 = scalar_select %p42, %s43, %s44
      %p48 = pneg %p42
      %p49 = scmp.eq.s32.totalorder %s19, 1
      %p50 = por %p48, %p49
      %p51 = scmp.ne.s32.totalorder %s43, %s46
      %p52 = scmp.eq.s32.totalorder %s19, 0
      %p53 = por %p51, %p52
      %p54 = scmp.ne.s32.totalorder %s43, %s46
      %p55 = scmp.eq.s32.totalorder %s24, 1
      %p56 = por %p54, %p55
      %p57 = scmp.ne.s32.totalorder %s46, %s47
      %p58 = scmp.eq.s32.totalorder %s24, 0
      %p59 = por %p57, %p58
      %p60 = scmp.ne.s32.totalorder %s46, %s47
      %p61 = scmp.eq.s32.totalorder %s25, 1
      %p62 = por %p60, %p61
      %p64 = scmp.ne.s32.totalorder %s47, %s63
      %p65 = scmp.eq.s32.totalorder %s25, 0
      %p66 = por %p64, %p65
      %s68 = sadd.s32 %s67, 1
      %p71 = scmp.eq.s32.totalorder %s19, 1
      %p72 = scmp.ne.s32.totalorder %s67, %s69
      %p73 = scmp.eq.s32.totalorder %s19, 0
      %p74 = por %p72, %p73
      %p75 = scmp.ne.s32.totalorder %s67, %s69
      %p76 = scmp.eq.s32.totalorder %s24, 1
      %p77 = por %p75, %p76
      %p78 = scmp.ne.s32.totalorder %s69, %s70
      %p79 = scmp.eq.s32.totalorder %s24, 0
      %p80 = por %p78, %p79
      %p81 = scmp.ne.s32.totalorder %s69, %s70
      %p82 = scmp.eq.s32.totalorder %s25, 1
      %p83 = por %p81, %p82
      %p85 = scmp.ne.s32.totalorder %s70, %s84
      %p86 = scmp.eq.s32.totalorder %s25, 0
      %p87 = por %p85, %p86
      %s89 = sadd.s32 %s88, 1
      %p92 = scmp.eq.s32.totalorder %s19, 1
      %p93 = scmp.ne.s32.totalorder %s88, %s90
      %p94 = scmp.eq.s32.totalorder %s19, 0
      %p95 = por %p93, %p94
      %p96 = scmp.ne.s32.totalorder %s88, %s90
      %p97 = scmp.eq.s32.totalorder %s24, 1
      %p98 = por %p96, %p97
      %p99 = scmp.ne.s32.totalorder %s90, %s91
      %p100 = scmp.eq.s32.totalorder %s24, 0
      %p101 = por %p99, %p100
      %p102 = scmp.ne.s32.totalorder %s90, %s91
      %p103 = scmp.eq.s32.totalorder %s25, 1
      %p104 = por %p102, %p103
      %p106 = scmp.ne.s32.totalorder %s91, %s105
      %p107 = scmp.eq.s32.totalorder %s25, 0
      %p108 = por %p106, %p107
      %s110 = sadd.s32 %s109, 1
      %p113 = scmp.eq.s32.totalorder %s19, 1
      %p114 = scmp.ne.s32.totalorder %s109, %s111
      %p115 = scmp.eq.s32.totalorder %s19, 0
      %p116 = por %p114, %p115
      %p117 = scmp.ne.s32.totalorder %s109, %s111
      %p118 = scmp.eq.s32.totalorder %s24, 1
      %p119 = por %p117, %p118
      %p120 = scmp.ne.s32.totalorder %s111, %s112
      %p121 = scmp.eq.s32.totalorder %s24, 0
      %p122 = por %p120, %p121
      %p123 = scmp.ne.s32.totalorder %s111, %s112
      %p124 = scmp.eq.s32.totalorder %s25, 1
      %p125 = por %p123, %p124
      %p127 = scmp.ne.s32.totalorder %s112, %s126
      %p128 = scmp.eq.s32.totalorder %s25, 0
      %p129 = por %p127, %p128
      %s131 = sadd.s32 %s130, 1
      %p134 = scmp.eq.s32.totalorder %s19, 1
      %p135 = scmp.ne.s32.totalorder %s130, %s132
      %p136 = scmp.eq.s32.totalorder %s19, 0
      %p137 = por %p135, %p136
      %p138 = scmp.ne.s32.totalorder %s130, %s132
      %p139 = scmp.eq.s32.totalorder %s24, 1
      %p140 = por %p138, %p139
      %p141 = scmp.ne.s32.totalorder %s132, %s133
      %p142 = scmp.eq.s32.totalorder %s24, 0
      %p143 = por %p141, %p142
      %p144 = scmp.ne.s32.totalorder %s132, %s133
      %p145 = scmp.eq.s32.totalorder %s25, 1
      %p146 = por %p144, %p145
      %p148 = scmp.ne.s32.totalorder %s133, %s147
      %p149 = scmp.eq.s32.totalorder %s25, 0
      %p150 = por %p148, %p149
      %s151 = ssub.s32 %s26, %s38
      %s152 = ssub.s32 %s27, %s34
      %s153 = sor.u32 %s151, %s152
      %p154 = scmp.eq.s32.totalorder %s153, 0
      %s156 = sadd.s32 %s155, 1
      %s157 = scalar_select %p154, %s155, %s156
      %p160 = pneg %p154
      %p161 = scmp.eq.s32.totalorder %s19, 1
      %p162 = por %p160, %p161
      %p163 = scmp.ne.s32.totalorder %s155, %s158
      %p164 = scmp.eq.s32.totalorder %s19, 0
      %p165 = por %p163, %p164
      %p166 = scmp.ne.s32.totalorder %s155, %s158
      %p167 = scmp.eq.s32.totalorder %s24, 1
      %p168 = por %p166, %p167
      %p169 = scmp.ne.s32.totalorder %s158, %s159
      %p170 = scmp.eq.s32.totalorder %s24, 0
      %p171 = por %p169, %p170
      %p172 = scmp.ne.s32.totalorder %s158, %s159
      %p173 = scmp.eq.s32.totalorder %s25, 1
      %p174 = por %p172, %p173
      %p176 = scmp.ne.s32.totalorder %s159, %s175
      %p177 = scmp.eq.s32.totalorder %s25, 0
      %p178 = por %p176, %p177
      %p179 = scmp.le.s32.totalorder 1, %s19
      %p180 = scmp.lt.s32.totalorder %s19, 3
      %p181 = pnand %p179, %p180
      %p182 = pneg %p181
      // Predicated region
      $region9: #{pointgencon_forward.7} parent=5 // pred_check
        _
      $region10: #{pointgencon_forward.7} parent=5 // pred_check_branch
        %184 = sbr.rel (%p181) target = $region12
      $region11: #{pointgencon_forward.7} parent=5 // pred_region
        %s185 = ssub.s32 %s19, 1
        // Predicated region
        $region13: #{pointgencon_forward.7} parent=11 // pred_check
          %p186 = pneg %p80
        $region14: #{pointgencon_forward.7} parent=11 // pred_check_branch
          %188 = sbr.rel (%p186) target = $region16
        $region15: #{pointgencon_forward.7} parent=11 // pred_region
          %s190 = ssub.s32 128, 128
          %191 = vsyncadd [#allocation6], %s190
          %s193 = sshll.u32 [#allocation5], 4
          %s194 = int_to_ptr.vmem [resolvable:$true] %s193
          %196 = dma.hbm_to_vmem [thread:$0]  %s1, 128, %s194, [#allocation6]
        $region16: #{pointgencon_forward.7} parent=11 // pred_fallthru
          _
        // Predicated region
        $region17: #{pointgencon_forward.7} parent=11 // pred_check
          %p197 = pneg %p101
        $region18: #{pointgencon_forward.7} parent=11 // pred_check_branch
          %199 = sbr.rel (%p197) target = $region20
        $region19: #{pointgencon_forward.7} parent=11 // pred_region
          %s201 = ssub.s32 128, 128
          %202 = vsyncadd [#allocation6], %s201
          %s204 = sshll.u32 [#allocation7], 4
          %s205 = int_to_ptr.vmem [resolvable:$true] %s204
          %207 = dma.hbm_to_vmem [thread:$0]  %s2, 128, %s205, [#allocation6]
        $region20: #{pointgencon_forward.7} parent=11 // pred_fallthru
          _
        // Predicated region
        $region21: #{pointgencon_forward.7} parent=11 // pred_check
          %p208 = pneg %p122
        $region22: #{pointgencon_forward.7} parent=11 // pred_check_branch
          %210 = sbr.rel (%p208) target = $region24
        $region23: #{pointgencon_forward.7} parent=11 // pred_region
          %s212 = ssub.s32 32, 32
          %213 = vsyncadd [#allocation9], %s212
          %s215 = sshll.u32 [#allocation8], 4
          %s216 = int_to_ptr.vmem [resolvable:$true] %s215
          %218 = dma.hbm_to_vmem [thread:$0]  %s3, 32, %s216, [#allocation9]
        $region24: #{pointgencon_forward.7} parent=11 // pred_fallthru
          _
        // Predicated region
        $region25: #{pointgencon_forward.7} parent=11 // pred_check
          %p219 = pneg %p143
        $region26: #{pointgencon_forward.7} parent=11 // pred_check_branch
          %221 = sbr.rel (%p219) target = $region28
        $region27: #{pointgencon_forward.7} parent=11 // pred_region
          %s223 = ssub.s32 64, 64
          %224 = vsyncadd [#allocation9], %s223
          %s226 = sshll.u32 [#allocation10], 4
          %s227 = int_to_ptr.vmem [resolvable:$true] %s226
          %229 = dma.hbm_to_vmem [thread:$0]  %s4, 64, %s227, [#allocation9]
        $region28: #{pointgencon_forward.7} parent=11 // pred_fallthru
          _
      $region12: #{pointgencon_forward.7} parent=5 // pred_fallthru
        _
      %p230 = scmp.lt.s32.totalorder %s19, 2
      // Predicated region
      $region29: #{pointgencon_forward.7} parent=5 // pred_check
        %p231 = pneg %p230
      $region30: #{pointgencon_forward.7} parent=5 // pred_check_branch
        %233 = sbr.rel (%p231) target = $region32
      $region31: #{pointgencon_forward.7} parent=5 // pred_region
        // Predicated region
        $region33: #{pointgencon_forward.7} parent=31 // pred_check
          %p234 = pneg %p53
        $region34: #{pointgencon_forward.7} parent=31 // pred_check_branch
          %236 = sbr.rel (%p234) target = $region36
        $region35: #{pointgencon_forward.7} parent=31 // pred_region
          %s237 = sand.u32 %s43, 1
          %s238 = scalar_lea.sflag [#allocation3], %s237
          %s239 = sand.u32 %s43, 1
          %s240 = smul.addr %s239, 4
          %s241 = scalar_lea.vmem [#allocation2], %s240
          %s243 = ssub.s32 64, 64
          %244 = vsyncadd %s238, %s243
          %s245 = sadd.s32 %s27, %s26
          %s246 = smul.addr %s245, 64
          %s247 = scalar_lea.hbm %s0, %s246
          %s249 = sshll.u32 %s241, 4
          %s250 = int_to_ptr.vmem [resolvable:$true] %s249
          %252 = dma.hbm_to_vmem [thread:$0]  %s247, 64, %s250, %s238
        $region36: #{pointgencon_forward.7} parent=31 // pred_fallthru
          _
      $region32: #{pointgencon_forward.7} parent=5 // pred_fallthru
        _
      %p253 = scmp.le.s32.totalorder 1, %s19
      %p254 = scmp.lt.s32.totalorder %s19, 3
      %p255 = pnand %p253, %p254
      %p256 = pneg %p255
      // Predicated region
      $region37: #{pointgencon_forward.7} parent=5 // pred_check
        _
      $region38: #{pointgencon_forward.7} parent=5 // pred_check_branch
        %258 = sbr.rel (%p255) target = $region40
      $region39: #{pointgencon_forward.7} parent=5 // pred_region
        %s259 = ssub.s32 %s19, 1
        %s260 = sand.u32 %s46, 1
        %s261 = scalar_lea.sflag [#allocation3], %s260
        %s262 = sand.u32 %s46, 1
        %s263 = smul.addr %s262, 4
        %s264 = scalar_lea.vmem [#allocation2], %s263
        // Predicated region
        $region41: #{pointgencon_forward.7} parent=39 // pred_check
          %p265 = pneg %p59
        $region42: #{pointgencon_forward.7} parent=39 // pred_check_branch
          %267 = sbr.rel (%p265) target = $region44
        $region43: #{pointgencon_forward.7} parent=39 // pred_region
          %268 = dma.done %s261, 64
        $region44: #{pointgencon_forward.7} parent=39 // pred_fallthru
          _
        // Predicated region
        $region45: #{pointgencon_forward.7} parent=39 // pred_check
          %p269 = pneg %p80
        $region46: #{pointgencon_forward.7} parent=39 // pred_check_branch
          %271 = sbr.rel (%p269) target = $region48
        $region47: #{pointgencon_forward.7} parent=39 // pred_region
          %272 = dma.done [#allocation6], 128
        $region48: #{pointgencon_forward.7} parent=39 // pred_fallthru
          _
        // Predicated region
        $region49: #{pointgencon_forward.7} parent=39 // pred_check
          %p273 = pneg %p101
        $region50: #{pointgencon_forward.7} parent=39 // pred_check_branch
          %275 = sbr.rel (%p273) target = $region52
        $region51: #{pointgencon_forward.7} parent=39 // pred_region
          %276 = dma.done [#allocation6], 128
        $region52: #{pointgencon_forward.7} parent=39 // pred_fallthru
          _
        // Predicated region
        $region53: #{pointgencon_forward.7} parent=39 // pred_check
          %p277 = pneg %p122
        $region54: #{pointgencon_forward.7} parent=39 // pred_check_branch
          %279 = sbr.rel (%p277) target = $region56
        $region55: #{pointgencon_forward.7} parent=39 // pred_region
          %280 = dma.done [#allocation9], 32
        $region56: #{pointgencon_forward.7} parent=39 // pred_fallthru
          _
        // Predicated region
        $region57: #{pointgencon_forward.7} parent=39 // pred_check
          %p281 = pneg %p143
        $region58: #{pointgencon_forward.7} parent=39 // pred_check_branch
          %283 = sbr.rel (%p281) target = $region60
        $region59: #{pointgencon_forward.7} parent=39 // pred_region
          %284 = dma.done [#allocation9], 64
        $region60: #{pointgencon_forward.7} parent=39 // pred_fallthru
          _
        %s285 = sand.u32 %s46, 1
        %s286 = scalar_lea.sflag [#allocation3], %s285
        %s287 = sand.u32 %s46, 1
        %s288 = smul.addr %s287, 4
        %s289 = scalar_lea.vmem [#allocation2], %s288
        %p290 = pneg %p59
        %p291 = pneg %p56
        %p292 = pneg %p80
        %p293 = pneg %p77
        %p294 = pneg %p101
        %p295 = pneg %p98
        %p296 = pneg %p122
        %p297 = pneg %p119
        %p298 = pneg %p143
        %p299 = pneg %p140
        %p300 = pneg %p171
        %p301 = pneg %p168
        %s302 = sand.u32 %s158, 1
        %s303 = scalar_lea.sflag [#allocation4], %s302
        %s304 = sand.u32 %s158, 1
        %s305 = smul.addr %s304, 4
        %s306 = scalar_lea.vmem [#allocation11], %s305
        %v308 = vld [vmem:[%s264] sm:$0xf]
        %v309 = vld [vmem:[#allocation5] sm:$0xff]
        %v310 = vunpack.c.l.bf16 %v308
        %312 = vset.pattern.permute.xlu0 0
        %313 = vperm.xlu0 %312, %v309
        %v314 = vpop.permute.xlu0 %313
        %v316 = vmul.f32 %v310, %v314
        %v317 = vld [vmem:[#allocation7] sm:$0xff]
        %319 = vset.pattern.permute.xlu0 0
        %320 = vperm.xlu0 %319, %v317
        %v321 = vpop.permute.xlu0 %320
        %v323 = vadd.f32 %v316, %v321
        %v324 = vmax.f32 %v323, 0.0
        %v325 = vld [vmem:[#allocation8] sm:$0x3]
        %v326 = vpack.c.bf16 %v324, %v324
        %v327 = vld [vmem:[#allocation10] sm:$0x7]
        %329 = vset.pattern.permute.xlu0 0
        %330 = vperm.xlu0 %329, %v327
        %v331 = vpop.permute.xlu0 %330
        %vm333 = vcmask 64512
        %v335 = vsel %vm333, %v325, 0
        %vm337 = vcmask 1043456
        %v339 = vsel %vm337, %v326, 0
        %341 = vmatprep.subr.bf16.mxu0 0
        %342 = vmatpush1.bf16.msra.mxu0 %v339
        %343 = vmatprep.subr.bf16.mxu0 0
        %344 = vmatpush1.bf16.msra.mxu0 0
        %345 = vmatprep.subr.bf16.mxu0 0
        %346 = vmatpush1.bf16.msra.mxu0 0
        %347 = vmatprep.subr.bf16.mxu0 0
        %348 = vmatpush1.bf16.msra.mxu0 0
        %349 = vmatprep.subr.bf16.mxu0 0
        %350 = vmatpush1.bf16.msra.mxu0 0
        %351 = vmatprep.subr.bf16.mxu0 0
        %352 = vmatpush1.bf16.msra.mxu0 0
        %353 = vmatprep.subr.bf16.mxu0 0
        %354 = vmatpush1.bf16.msra.mxu0 0
        %355 = vmatprep.subr.bf16.mxu0 0
        %356 = vmatpush1.bf16.msra.mxu0 0
        %357 = vmatprep.subr.bf16.mxu0 0
        %358 = vmatpush1.bf16.msra.mxu0 0
        %359 = vmatprep.subr.bf16.mxu0 0
        %360 = vmatpush1.bf16.msra.mxu0 0
        %361 = vmatprep.subr.bf16.mxu0 0
        %362 = vmatpush1.bf16.msra.mxu0 0
        %363 = vmatprep.subr.bf16.mxu0 0
        %364 = vmatpush1.bf16.msra.mxu0 0
        %365 = vmatprep.subr.bf16.mxu0 0
        %366 = vmatpush1.bf16.msra.mxu0 0
        %367 = vmatprep.subr.bf16.mxu0 0
        %368 = vmatpush1.bf16.msra.mxu0 0
        %369 = vmatprep.subr.bf16.mxu0 0
        %370 = vmatpush1.bf16.msra.mxu0 0
        %371 = vmatprep.subr.bf16.mxu0 0
        %372 = vmatpush1.bf16.msra.mxu0 0
        %373 = vmatprep.mubr.bf16.mxu0 0
        %374 = vmatmul.mubr.bf16.gmra.mrb[0].mxu0 %v335
        %v375 = vpop.f32.mrb[0].mxu0
        %v376 = vadd.f32 %v331, %v375
        %v377 = vpop.f32.mrb[0].mxu0
        %v378 = vpop.f32.mrb[0].mxu0
        %v379 = vpop.f32.mrb[0].mxu0
        %380 = vdwg.mxu0
        %v381 = vtanh.pop %v376
        %vm382 = vcmask 124928
        %383 = vst.msk [vmem:[%s306] sm:$0x7] %vm382, %v381
        %s384 = sand.u32 %s158, 1
        %s385 = scalar_lea.sflag [#allocation4], %s384
        %s386 = sand.u32 %s158, 1
        %s387 = smul.addr %s386, 4
        %s388 = scalar_lea.vmem [#allocation11], %s387
        // Predicated region
        $region61: #{pointgencon_forward.7} parent=39 // pred_check
          %p389 = pneg %p168
        $region62: #{pointgencon_forward.7} parent=39 // pred_check_branch
          %391 = sbr.rel (%p389) target = $region64
        $region63: #{pointgencon_forward.7} parent=39 // pred_region
          %s393 = ssub.s32 64, 64
          %394 = vsyncadd %s385, %s393
          %s395 = sadd.s32 %s29, %s28
          %s396 = smul.addr %s395, 64
          %s397 = scalar_lea.hbm %s5, %s396
          %s399 = sshll.u32 %s388, 4
          %s400 = int_to_ptr.vmem [resolvable:$true] %s399
          %402 = dma.vmem_to_hbm [thread:$0]  %s400, 64, %s397, %s385
        $region64: #{pointgencon_forward.7} parent=39 // pred_fallthru
          _
      $region40: #{pointgencon_forward.7} parent=5 // pred_fallthru
        _
      %p403 = scmp.le.s32.totalorder 2, %s19
      // Predicated region
      $region65: #{pointgencon_forward.7} parent=5 // pred_check
        %p404 = pneg %p403
      $region66: #{pointgencon_forward.7} parent=5 // pred_check_branch
        %406 = sbr.rel (%p404) target = $region68
      $region67: #{pointgencon_forward.7} parent=5 // pred_region
        %s407 = ssub.s32 %s19, 2
        // Predicated region
        $region69: #{pointgencon_forward.7} parent=67 // pred_check
          %p408 = pneg %p174
        $region70: #{pointgencon_forward.7} parent=67 // pred_check_branch
          %410 = sbr.rel (%p408) target = $region72
        $region71: #{pointgencon_forward.7} parent=67 // pred_region
          %s411 = sand.u32 %s159, 1
          %s412 = scalar_lea.sflag [#allocation4], %s411
          %s413 = sand.u32 %s159, 1
          %s414 = smul.addr %s413, 4
          %s415 = scalar_lea.vmem [#allocation11], %s414
          %416 = dma.done %s412, 64
        $region72: #{pointgencon_forward.7} parent=67 // pred_fallthru
          _
      $region68: #{pointgencon_forward.7} parent=5 // pred_fallthru
        _
    $region6: #{pointgencon_forward.7} parent=1 // loop_footer
      %s23 = sadd.s32 1, %s19
    $region7: #{pointgencon_forward.7} parent=1 // loop_footer_branch
      %18 = sbr.rel target = $region3
    $region8: #{pointgencon_forward.7} parent=1 // loop_exit
      _
    %417 = vsyncpa [#allocation3], 1
    %s418 = scalar_lea.sflag [#allocation3], 1
    %419 = vsyncpa %s418, 1
    %420 = vsyncpa [#allocation6], 1
    %421 = vsyncpa [#allocation9], 1
    %422 = vsyncpa [#allocation4], 1
    %s423 = scalar_lea.sflag [#allocation4], 1
    %424 = vsyncpa %s423, 1

// kernel: pointgencon_forward.6
$region0: #{pointgencon_forward.6}
  #allocation0 [shape = 'u32[]', space=smem, size = 0x4, offset = 0x4, fixed_abs, tag = 'smem constant byte address 0x4 - core index']
  #allocation1 [shape = 'u32[144,128]{1,0:T(1,128)}', space=vmem, size = 0x12000, scoped, tag = 'internal scratch']
  %s0 = inlined_call_operand.hbm [shape: bf16[2,16,16], index: 0, kind: input, shape index: {}]
  %s1 = inlined_call_operand.hbm [shape: f32[16,1], index: 1, kind: input, shape index: {}]
  %s2 = inlined_call_operand.hbm [shape: f32[16,1], index: 2, kind: input, shape index: {}]
  %s3 = inlined_call_operand.hbm [shape: bf16[8,16], index: 3, kind: input, shape index: {}]
  %s4 = inlined_call_operand.hbm [shape: bf16[2,8,16], index: 4, kind: output, shape index: {0}]
  %s5 = inlined_call_operand.hbm [shape: f32[2,1,8,2], index: 5, kind: output, shape index: {1}]
  %6 = xla_tuple %s4, %s5
  %s7 = sld [smem:[#allocation0]]
  $region73: #{pointgencon_forward.6} parent=0
    _
  %s9 = ssub.s32 1, %s7
  %s10 = scalar_select 0, %s9, %s7
  $region1: #{pointgencon_forward.6} parent=0
    #allocation2 [shape = 'u8[8192]{0}', space=vmem, size = 0x2000, scoped, tag = 'input window, operand 0']
    #allocation3 [shape = 's32[2]{0}', space=sflag, size = 0x8, scoped, tag = 'scoped memory for pointgencon_forward.6']
    #allocation4 [shape = 's32[2]{0}', space=sflag, size = 0x8, scoped, tag = 'scoped memory for pointgencon_forward.6']
    #allocation5 [shape = 'u8[8192]{0}', space=vmem, size = 0x2000, scoped, tag = 'input window, operand 1, single buffered']
    #allocation6 [shape = 's32[1]{0}', space=sflag, size = 0x4, scoped, tag = 'scoped memory for pointgencon_forward.6']
    #allocation7 [shape = 'u8[8192]{0}', space=vmem, size = 0x2000, scoped, tag = 'input window, operand 2, single buffered']
    #allocation8 [shape = 'u8[2048]{0}', space=vmem, size = 0x800, scoped, tag = 'input window, operand 3, single buffered']
    #allocation9 [shape = 's32[1]{0}', space=sflag, size = 0x4, scoped, tag = 'scoped memory for pointgencon_forward.6']
    #allocation10 [shape = 'u8[4096]{0}', space=vmem, size = 0x1000, scoped, tag = 'output window, operand 0']
    #allocation11 [shape = 'u8[8192]{0}', space=vmem, size = 0x2000, scoped, tag = 'output window, operand 1']
    #allocation12 [shape = 's32[2]{0}', space=sflag, size = 0x8, scoped, tag = 'scoped memory for pointgencon_forward.6']
    %11 = vsyncpa [#allocation3], 0
    %s12 = scalar_lea.sflag [#allocation3], 1
    %13 = vsyncpa %s12, 0
    %14 = vsyncpa [#allocation6], 0
    %15 = vsyncpa [#allocation9], 0
    %16 = vsyncpa [#allocation4], 0
    %s17 = scalar_lea.sflag [#allocation4], 1
    %18 = vsyncpa %s17, 0
    %19 = vsyncpa [#allocation12], 0
    %s20 = scalar_lea.sflag [#allocation12], 1
    %21 = vsyncpa %s20, 0
    loop: start=0, step=1, limit=4
    $region2: #{pointgencon_forward.6} parent=1 // loop_pre_header
      _
    $region3: #{pointgencon_forward.6} parent=1 // loop_header
      %s23 = sphi 0, %s27
      %p24 = scmp.ge.s32.totalorder %s23, 4
      %s30 = sphi 0, %s42
      %s31 = sphi 0, %s38
      %s32 = sphi 0, %s30
      %s33 = sphi 0, %s31
      %s34 = sphi 0, %s32
      %s35 = sphi 0, %s33
      %s47 = sphi 0, %s49
      %s50 = sphi 0, %s47
      %s51 = sphi 0, %s50
      %s67 = sphi 0, %s51
      %s71 = sphi 0, %s71
      %s73 = sphi 0, %s71
      %s74 = sphi 0, %s73
      %s88 = sphi 0, %s74
      %s92 = sphi 0, %s92
      %s94 = sphi 0, %s92
      %s95 = sphi 0, %s94
      %s109 = sphi 0, %s95
      %s113 = sphi 0, %s113
      %s115 = sphi 0, %s113
      %s116 = sphi 0, %s115
      %s130 = sphi 0, %s116
      %s138 = sphi 0, %s140
      %s141 = sphi 0, %s138
      %s142 = sphi 0, %s141
      %s158 = sphi 0, %s142
      %s166 = sphi 0, %s168
      %s169 = sphi 0, %s166
      %s170 = sphi 0, %s169
      %s186 = sphi 0, %s170
    $region4: #{pointgencon_forward.6} parent=1 // loop_header_branch
      %26 = sbr.rel (%p24) target = $region8
    $region5: #{pointgencon_forward.6} parent=1 // loop_body
      %s28 = ssub.s32 %s23, 1
      %s29 = ssub.s32 %s23, 2
      %s36 = sadd.s32 1, %s31
      %p37 = scmp.ge.s32.totalorder %s36, 1
      %s38 = scalar_select %p37, 0, %s36
      %s39 = sadd.s32 1, %s30
      %s40 = scalar_select %p37, %s39, %s30
      %p41 = scmp.ge.s32.totalorder %s40, 2
      %s42 = scalar_select %p41, 0, %s40
      %s43 = ssub.s32 %s30, %s42
      %s44 = ssub.s32 %s31, %s38
      %s45 = sor.u32 %s43, %s44
      %p46 = scmp.eq.s32.totalorder %s45, 0
      %s48 = sadd.s32 %s47, 1
      %s49 = scalar_select %p46, %s47, %s48
      %p52 = pneg %p46
      %p53 = scmp.eq.s32.totalorder %s23, 1
      %p54 = por %p52, %p53
      %p55 = scmp.ne.s32.totalorder %s47, %s50
      %p56 = scmp.eq.s32.totalorder %s23, 0
      %p57 = por %p55, %p56
      %p58 = scmp.ne.s32.totalorder %s47, %s50
      %p59 = scmp.eq.s32.totalorder %s28, 1
      %p60 = por %p58, %p59
      %p61 = scmp.ne.s32.totalorder %s50, %s51
      %p62 = scmp.eq.s32.totalorder %s28, 0
      %p63 = por %p61, %p62
      %p64 = scmp.ne.s32.totalorder %s50, %s51
      %p65 = scmp.eq.s32.totalorder %s29, 1
      %p66 = por %p64, %p65
      %p68 = scmp.ne.s32.totalorder %s51, %s67
      %p69 = scmp.eq.s32.totalorder %s29, 0
      %p70 = por %p68, %p69
      %s72 = sadd.s32 %s71, 1
      %p75 = scmp.eq.s32.totalorder %s23, 1
      %p76 = scmp.ne.s32.totalorder %s71, %s73
      %p77 = scmp.eq.s32.totalorder %s23, 0
      %p78 = por %p76, %p77
      %p79 = scmp.ne.s32.totalorder %s71, %s73
      %p80 = scmp.eq.s32.totalorder %s28, 1
      %p81 = por %p79, %p80
      %p82 = scmp.ne.s32.totalorder %s73, %s74
      %p83 = scmp.eq.s32.totalorder %s28, 0
      %p84 = por %p82, %p83
      %p85 = scmp.ne.s32.totalorder %s73, %s74
      %p86 = scmp.eq.s32.totalorder %s29, 1
      %p87 = por %p85, %p86
      %p89 = scmp.ne.s32.totalorder %s74, %s88
      %p90 = scmp.eq.s32.totalorder %s29, 0
      %p91 = por %p89, %p90
      %s93 = sadd.s32 %s92, 1
      %p96 = scmp.eq.s32.totalorder %s23, 1
      %p97 = scmp.ne.s32.totalorder %s92, %s94
      %p98 = scmp.eq.s32.totalorder %s23, 0
      %p99 = por %p97, %p98
      %p100 = scmp.ne.s32.totalorder %s92, %s94
      %p101 = scmp.eq.s32.totalorder %s28, 1
      %p102 = por %p100, %p101
      %p103 = scmp.ne.s32.totalorder %s94, %s95
      %p104 = scmp.eq.s32.totalorder %s28, 0
      %p105 = por %p103, %p104
      %p106 = scmp.ne.s32.totalorder %s94, %s95
      %p107 = scmp.eq.s32.totalorder %s29, 1
      %p108 = por %p106, %p107
      %p110 = scmp.ne.s32.totalorder %s95, %s109
      %p111 = scmp.eq.s32.totalorder %s29, 0
      %p112 = por %p110, %p111
      %s114 = sadd.s32 %s113, 1
      %p117 = scmp.eq.s32.totalorder %s23, 1
      %p118 = scmp.ne.s32.totalorder %s113, %s115
      %p119 = scmp.eq.s32.totalorder %s23, 0
      %p120 = por %p118, %p119
      %p121 = scmp.ne.s32.totalorder %s113, %s115
      %p122 = scmp.eq.s32.totalorder %s28, 1
      %p123 = por %p121, %p122
      %p124 = scmp.ne.s32.totalorder %s115, %s116
      %p125 = scmp.eq.s32.totalorder %s28, 0
      %p126 = por %p124, %p125
      %p127 = scmp.ne.s32.totalorder %s115, %s116
      %p128 = scmp.eq.s32.totalorder %s29, 1
      %p129 = por %p127, %p128
      %p131 = scmp.ne.s32.totalorder %s116, %s130
      %p132 = scmp.eq.s32.totalorder %s29, 0
      %p133 = por %p131, %p132
      %s134 = ssub.s32 %s30, %s42
      %s135 = ssub.s32 %s31, %s38
      %s136 = sor.u32 %s134, %s135
      %p137 = scmp.eq.s32.totalorder %s136, 0
      %s139 = sadd.s32 %s138, 1
      %s140 = scalar_select %p137, %s138, %s139
      %p143 = pneg %p137
      %p144 = scmp.eq.s32.totalorder %s23, 1
      %p145 = por %p143, %p144
      %p146 = scmp.ne.s32.totalorder %s138, %s141
      %p147 = scmp.eq.s32.totalorder %s23, 0
      %p148 = por %p146, %p147
      %p149 = scmp.ne.s32.totalorder %s138, %s141
      %p150 = scmp.eq.s32.totalorder %s28, 1
      %p151 = por %p149, %p150
      %p152 = scmp.ne.s32.totalorder %s141, %s142
      %p153 = scmp.eq.s32.totalorder %s28, 0
      %p154 = por %p152, %p153
      %p155 = scmp.ne.s32.totalorder %s141, %s142
      %p156 = scmp.eq.s32.totalorder %s29, 1
      %p157 = por %p155, %p156
      %p159 = scmp.ne.s32.totalorder %s142, %s158
      %p160 = scmp.eq.s32.totalorder %s29, 0
      %p161 = por %p159, %p160
      %s162 = ssub.s32 %s30, %s42
      %s163 = ssub.s32 %s31, %s38
      %s164 = sor.u32 %s162, %s163
      %p165 = scmp.eq.s32.totalorder %s164, 0
      %s167 = sadd.s32 %s166, 1
      %s168 = scalar_select %p165, %s166, %s167
      %p171 = pneg %p165
      %p172 = scmp.eq.s32.totalorder %s23, 1
      %p173 = por %p171, %p172
      %p174 = scmp.ne.s32.totalorder %s166, %s169
      %p175 = scmp.eq.s32.totalorder %s23, 0
      %p176 = por %p174, %p175
      %p177 = scmp.ne.s32.totalorder %s166, %s169
      %p178 = scmp.eq.s32.totalorder %s28, 1
      %p179 = por %p177, %p178
      %p180 = scmp.ne.s32.totalorder %s169, %s170
      %p181 = scmp.eq.s32.totalorder %s28, 0
      %p182 = por %p180, %p181
      %p183 = scmp.ne.s32.totalorder %s169, %s170
      %p184 = scmp.eq.s32.totalorder %s29, 1
      %p185 = por %p183, %p184
      %p187 = scmp.ne.s32.totalorder %s170, %s186
      %p188 = scmp.eq.s32.totalorder %s29, 0
      %p189 = por %p187, %p188
      %p190 = scmp.le.s32.totalorder 1, %s23
      %p191 = scmp.lt.s32.totalorder %s23, 3
      %p192 = pnand %p190, %p191
      %p193 = pneg %p192
      // Predicated region
      $region9: #{pointgencon_forward.6} parent=5 // pred_check
        _
      $region10: #{pointgencon_forward.6} parent=5 // pred_check_branch
        %195 = sbr.rel (%p192) target = $region12
      $region11: #{pointgencon_forward.6} parent=5 // pred_region
        %s196 = ssub.s32 %s23, 1
        // Predicated region
        $region13: #{pointgencon_forward.6} parent=11 // pred_check
          %p197 = pneg %p84
        $region14: #{pointgencon_forward.6} parent=11 // pred_check_branch
          %199 = sbr.rel (%p197) target = $region16
        $region15: #{pointgencon_forward.6} parent=11 // pred_region
          %s201 = ssub.s32 256, 256
          %202 = vsyncadd [#allocation6], %s201
          %s203 = sshll.u32 [#allocation5], 4
          %s204 = int_to_ptr.vmem [resolvable:$true] %s203
          %209 = dma.hbm_to_vmem [thread:$0]  %s1, 256, %s204, [#allocation6], 128, 128, 8
        $region16: #{pointgencon_forward.6} parent=11 // pred_fallthru
          _
        // Predicated region
        $region17: #{pointgencon_forward.6} parent=11 // pred_check
          %p210 = pneg %p105
        $region18: #{pointgencon_forward.6} parent=11 // pred_check_branch
          %212 = sbr.rel (%p210) target = $region20
        $region19: #{pointgencon_forward.6} parent=11 // pred_region
          %s214 = ssub.s32 256, 256
          %215 = vsyncadd [#allocation6], %s214
          %s216 = sshll.u32 [#allocation7], 4
          %s217 = int_to_ptr.vmem [resolvable:$true] %s216
          %222 = dma.hbm_to_vmem [thread:$0]  %s2, 256, %s217, [#allocation6], 128, 128, 8
        $region20: #{pointgencon_forward.6} parent=11 // pred_fallthru
          _
        // Predicated region
        $region21: #{pointgencon_forward.6} parent=11 // pred_check
          %p223 = pneg %p126
        $region22: #{pointgencon_forward.6} parent=11 // pred_check_branch
          %225 = sbr.rel (%p223) target = $region24
        $region23: #{pointgencon_forward.6} parent=11 // pred_region
          %s227 = ssub.s32 64, 64
          %228 = vsyncadd [#allocation9], %s227
          %s230 = sshll.u32 [#allocation8], 4
          %s231 = int_to_ptr.vmem [resolvable:$true] %s230
          %233 = dma.hbm_to_vmem [thread:$0]  %s3, 64, %s231, [#allocation9]
        $region24: #{pointgencon_forward.6} parent=11 // pred_fallthru
          _
      $region12: #{pointgencon_forward.6} parent=5 // pred_fallthru
        _
      %p234 = scmp.lt.s32.totalorder %s23, 2
      // Predicated region
      $region25: #{pointgencon_forward.6} parent=5 // pred_check
        %p235 = pneg %p234
      $region26: #{pointgencon_forward.6} parent=5 // pred_check_branch
        %237 = sbr.rel (%p235) target = $region28
      $region27: #{pointgencon_forward.6} parent=5 // pred_region
        // Predicated region
        $region29: #{pointgencon_forward.6} parent=27 // pred_check
          %p238 = pneg %p57
        $region30: #{pointgencon_forward.6} parent=27 // pred_check_branch
          %240 = sbr.rel (%p238) target = $region32
        $region31: #{pointgencon_forward.6} parent=27 // pred_region
          %s241 = sand.u32 %s47, 1
          %s242 = scalar_lea.sflag [#allocation3], %s241
          %s243 = sand.u32 %s47, 1
          %s244 = smul.addr %s243, 8
          %s245 = scalar_lea.vmem [#allocation2], %s244
          %s247 = ssub.s32 128, 128
          %248 = vsyncadd %s242, %s247
          %s249 = smul.addr %s30, 2
          %s250 = sadd.s32 %s31, %s249
          %s251 = smul.addr %s250, 64
          %s252 = scalar_lea.hbm %s0, %s251
          %s253 = sshll.u32 %s245, 4
          %s254 = int_to_ptr.vmem [resolvable:$true] %s253
          %259 = dma.hbm_to_vmem [thread:$0]  %s252, 128, %s254, %s242, 64, 64, 4
        $region32: #{pointgencon_forward.6} parent=27 // pred_fallthru
          _
      $region28: #{pointgencon_forward.6} parent=5 // pred_fallthru
        _
      %p260 = scmp.le.s32.totalorder 1, %s23
      %p261 = scmp.lt.s32.totalorder %s23, 3
      %p262 = pnand %p260, %p261
      %p263 = pneg %p262
      // Predicated region
      $region33: #{pointgencon_forward.6} parent=5 // pred_check
        _
      $region34: #{pointgencon_forward.6} parent=5 // pred_check_branch
        %265 = sbr.rel (%p262) target = $region36
      $region35: #{pointgencon_forward.6} parent=5 // pred_region
        %s266 = ssub.s32 %s23, 1
        %s267 = sand.u32 %s50, 1
        %s268 = scalar_lea.sflag [#allocation3], %s267
        %s269 = sand.u32 %s50, 1
        %s270 = smul.addr %s269, 8
        %s271 = scalar_lea.vmem [#allocation2], %s270
        // Predicated region
        $region37: #{pointgencon_forward.6} parent=35 // pred_check
          %p272 = pneg %p63
        $region38: #{pointgencon_forward.6} parent=35 // pred_check_branch
          %274 = sbr.rel (%p272) target = $region40
        $region39: #{pointgencon_forward.6} parent=35 // pred_region
          %275 = dma.done %s268, 128
        $region40: #{pointgencon_forward.6} parent=35 // pred_fallthru
          _
        // Predicated region
        $region41: #{pointgencon_forward.6} parent=35 // pred_check
          %p276 = pneg %p84
        $region42: #{pointgencon_forward.6} parent=35 // pred_check_branch
          %278 = sbr.rel (%p276) target = $region44
        $region43: #{pointgencon_forward.6} parent=35 // pred_region
          %279 = dma.done [#allocation6], 256
        $region44: #{pointgencon_forward.6} parent=35 // pred_fallthru
          _
        // Predicated region
        $region45: #{pointgencon_forward.6} parent=35 // pred_check
          %p280 = pneg %p105
        $region46: #{pointgencon_forward.6} parent=35 // pred_check_branch
          %282 = sbr.rel (%p280) target = $region48
        $region47: #{pointgencon_forward.6} parent=35 // pred_region
          %283 = dma.done [#allocation6], 256
        $region48: #{pointgencon_forward.6} parent=35 // pred_fallthru
          _
        // Predicated region
        $region49: #{pointgencon_forward.6} parent=35 // pred_check
          %p284 = pneg %p126
        $region50: #{pointgencon_forward.6} parent=35 // pred_check_branch
          %286 = sbr.rel (%p284) target = $region52
        $region51: #{pointgencon_forward.6} parent=35 // pred_region
          %287 = dma.done [#allocation9], 64
        $region52: #{pointgencon_forward.6} parent=35 // pred_fallthru
          _
        %s288 = sand.u32 %s50, 1
        %s289 = scalar_lea.sflag [#allocation3], %s288
        %s290 = sand.u32 %s50, 1
        %s291 = smul.addr %s290, 8
        %s292 = scalar_lea.vmem [#allocation2], %s291
        %p293 = pneg %p63
        %p294 = pneg %p60
        %p295 = pneg %p84
        %p296 = pneg %p81
        %p297 = pneg %p105
        %p298 = pneg %p102
        %p299 = pneg %p126
        %p300 = pneg %p123
        %p301 = pneg %p154
        %p302 = pneg %p151
        %s303 = sand.u32 %s141, 1
        %s304 = scalar_lea.sflag [#allocation4], %s303
        %s305 = sand.u32 %s141, 1
        %s306 = smul.addr %s305, 4
        %s307 = scalar_lea.vmem [#allocation10], %s306
        %p308 = pneg %p182
        %p309 = pneg %p179
        %s310 = sand.u32 %s169, 1
        %s311 = scalar_lea.sflag [#allocation12], %s310
        %s312 = sand.u32 %s169, 1
        %s313 = smul.addr %s312, 8
        %s314 = scalar_lea.vmem [#allocation11], %s313
        %v316 = vld [vmem:[%s271] sm:$0xf]
        %v317 = vld [vmem:[%s271 + $0x4] sm:$0xf]
        %v318 = vld [vmem:[#allocation5] sm:$0xff]
        %v319 = vld [vmem:[#allocation5 + $0x8] sm:$0xff]
        %v320 = vunpack.c.l.bf16 %v316
        %v321 = vunpack.c.l.bf16 %v317
        %323 = vset.pattern.permute.xlu0 0
        %324 = vperm.xlu0 %323, %v318
        %v325 = vpop.permute.xlu0 %324
        %328 = vset.pattern.permute.xlu0 0
        %329 = vperm.xlu0 %328, %v319
        %v330 = vpop.permute.xlu0 %329
        %v332 = vmul.f32 %v320, %v325
        %v333 = vmul.f32 %v321, %v330
        %v334 = vld [vmem:[#allocation7] sm:$0xff]
        %v335 = vld [vmem:[#allocation7 + $0x8] sm:$0xff]
        %337 = vset.pattern.permute.xlu0 0
        %338 = vperm.xlu0 %337, %v334
        %v339 = vpop.permute.xlu0 %338
        %342 = vset.pattern.permute.xlu0 0
        %343 = vperm.xlu0 %342, %v335
        %v344 = vpop.permute.xlu0 %343
        %v346 = vadd.f32 %v332, %v339
        %v347 = vadd.f32 %v333, %v344
        %v348 = vmax.f32 %v346, 0.0
        %v349 = vmax.f32 %v347, 0.0
        %v350 = vld [vmem:[#allocation8] sm:$0xf]
        %v351 = vpack.c.bf16 %v349, %v348
        %vm352 = vcmask 130048
        %v354 = vsel %vm352, %v350, 0
        %356 = vmatprep.subr.bf16.mxu0 0
        %357 = vmatpush1.bf16.msra.mxu0 %v351
        %358 = vmatprep.subr.bf16.mxu0 0
        %359 = vmatpush1.bf16.msra.mxu0 0
        %360 = vmatprep.subr.bf16.mxu0 0
        %361 = vmatpush1.bf16.msra.mxu0 0
        %362 = vmatprep.subr.bf16.mxu0 0
        %363 = vmatpush1.bf16.msra.mxu0 0
        %364 = vmatprep.subr.bf16.mxu0 0
        %365 = vmatpush1.bf16.msra.mxu0 0
        %366 = vmatprep.subr.bf16.mxu0 0
        %367 = vmatpush1.bf16.msra.mxu0 0
        %368 = vmatprep.subr.bf16.mxu0 0
        %369 = vmatpush1.bf16.msra.mxu0 0
        %370 = vmatprep.subr.bf16.mxu0 0
        %371 = vmatpush1.bf16.msra.mxu0 0
        %372 = vmatprep.subr.bf16.mxu0 0
        %373 = vmatpush1.bf16.msra.mxu0 0
        %374 = vmatprep.subr.bf16.mxu0 0
        %375 = vmatpush1.bf16.msra.mxu0 0
        %376 = vmatprep.subr.bf16.mxu0 0
        %377 = vmatpush1.bf16.msra.mxu0 0
        %378 = vmatprep.subr.bf16.mxu0 0
        %379 = vmatpush1.bf16.msra.mxu0 0
        %380 = vmatprep.subr.bf16.mxu0 0
        %381 = vmatpush1.bf16.msra.mxu0 0
        %382 = vmatprep.subr.bf16.mxu0 0
        %383 = vmatpush1.bf16.msra.mxu0 0
        %384 = vmatprep.subr.bf16.mxu0 0
        %385 = vmatpush1.bf16.msra.mxu0 0
        %386 = vmatprep.subr.bf16.mxu0 0
        %387 = vmatpush1.bf16.msra.mxu0 0
        %388 = vmatprep.mubr.bf16.mxu0 0
        %389 = vmatmul.mubr.bf16.gmra.mrb[0].mxu0 %v354
        %v390 = vpop.f32.mrb[0].mxu0
        %v391 = vadd.f32 0.0, %v390
        %v392 = vpop.f32.mrb[0].mxu0
        %v393 = vpop.f32.mrb[0].mxu0
        %v394 = vpop.f32.mrb[0].mxu0
        %395 = vdwg.mxu0
        %v396 = vpack.c.bf16 %v391, %v391
        %vm397 = vcmask 125952
        %398 = vst.msk [vmem:[%s307] sm:$0xf] %vm397, %v396
        %v399 = vsel %vm352, %v391, 0.0
        %400 = vadd.xlane.f32.xlu0 %v399
        %v401 = vpop.xlane.xlu0 %400
        %vm402 = vcmask 7168
        %403 = vst.msk [vmem:[%s314] sm:$0xff] %vm402, %v401
        %v404 = vmul.f32 %v391, %v391
        %v405 = vsel %vm352, %v404, 0.0
        %406 = vadd.xlane.f32.xlu0 %v405
        %v407 = vpop.xlane.xlu0 %406
        %vm408 = vcmask 15368
        %409 = vst.msk [vmem:[%s314] sm:$0xff] %vm408, %v407
        %s410 = sand.u32 %s141, 1
        %s411 = scalar_lea.sflag [#allocation4], %s410
        %s412 = sand.u32 %s141, 1
        %s413 = smul.addr %s412, 4
        %s414 = scalar_lea.vmem [#allocation10], %s413
        %s415 = sand.u32 %s169, 1
        %s416 = scalar_lea.sflag [#allocation12], %s415
        %s417 = sand.u32 %s169, 1
        %s418 = smul.addr %s417, 8
        %s419 = scalar_lea.vmem [#allocation11], %s418
        // Predicated region
        $region53: #{pointgencon_forward.6} parent=35 // pred_check
          %p420 = pneg %p151
        $region54: #{pointgencon_forward.6} parent=35 // pred_check_branch
          %422 = sbr.rel (%p420) target = $region56
        $region55: #{pointgencon_forward.6} parent=35 // pred_region
          %s424 = ssub.s32 64, 64
          %425 = vsyncadd %s411, %s424
          %s426 = sadd.s32 %s33, %s32
          %s427 = smul.addr %s426, 64
          %s428 = scalar_lea.hbm %s4, %s427
          %s430 = sshll.u32 %s414, 4
          %s431 = int_to_ptr.vmem [resolvable:$true] %s430
          %433 = dma.vmem_to_hbm [thread:$0]  %s431, 64, %s428, %s411
        $region56: #{pointgencon_forward.6} parent=35 // pred_fallthru
          _
        // Predicated region
        $region57: #{pointgencon_forward.6} parent=35 // pred_check
          %p434 = pneg %p179
        $region58: #{pointgencon_forward.6} parent=35 // pred_check_branch
          %436 = sbr.rel (%p434) target = $region60
        $region59: #{pointgencon_forward.6} parent=35 // pred_region
          %s438 = ssub.s32 128, 128
          %439 = vsyncadd %s416, %s438
          %s440 = sadd.s32 %s33, %s32
          %s441 = smul.addr %s440, 128
          %s442 = scalar_lea.hbm %s5, %s441
          %s444 = sshll.u32 %s419, 4
          %s445 = int_to_ptr.vmem [resolvable:$true] %s444
          %447 = dma.vmem_to_hbm [thread:$0]  %s445, 128, %s442, %s416
        $region60: #{pointgencon_forward.6} parent=35 // pred_fallthru
          _
      $region36: #{pointgencon_forward.6} parent=5 // pred_fallthru
        _
      %p448 = scmp.le.s32.totalorder 2, %s23
      // Predicated region
      $region61: #{pointgencon_forward.6} parent=5 // pred_check
        %p449 = pneg %p448
      $region62: #{pointgencon_forward.6} parent=5 // pred_check_branch
        %451 = sbr.rel (%p449) target = $region64
      $region63: #{pointgencon_forward.6} parent=5 // pred_region
        %s452 = ssub.s32 %s23, 2
        // Predicated region
        $region65: #{pointgencon_forward.6} parent=63 // pred_check
          %p453 = pneg %p157
        $region66: #{pointgencon_forward.6} parent=63 // pred_check_branch
          %455 = sbr.rel (%p453) target = $region68
        $region67: #{pointgencon_forward.6} parent=63 // pred_region
          %s456 = sand.u32 %s142, 1
          %s457 = scalar_lea.sflag [#allocation4], %s456
          %s458 = sand.u32 %s142, 1
          %s459 = smul.addr %s458, 4
          %s460 = scalar_lea.vmem [#allocation10], %s459
          %461 = dma.done %s457, 64
        $region68: #{pointgencon_forward.6} parent=63 // pred_fallthru
          _
        // Predicated region
        $region69: #{pointgencon_forward.6} parent=63 // pred_check
          %p462 = pneg %p185
        $region70: #{pointgencon_forward.6} parent=63 // pred_check_branch
          %464 = sbr.rel (%p462) target = $region72
        $region71: #{pointgencon_forward.6} parent=63 // pred_region
          %s465 = sand.u32 %s170, 1
          %s466 = scalar_lea.sflag [#allocation12], %s465
          %s467 = sand.u32 %s170, 1
          %s468 = smul.addr %s467, 8
          %s469 = scalar_lea.vmem [#allocation11], %s468
          %470 = dma.done %s466, 128
        $region72: #{pointgencon_forward.6} parent=63 // pred_fallthru
          _
      $region64: #{pointgencon_forward.6} parent=5 // pred_fallthru
        _
    $region6: #{pointgencon_forward.6} parent=1 // loop_footer
      %s27 = sadd.s32 1, %s23
    $region7: #{pointgencon_forward.6} parent=1 // loop_footer_branch
      %22 = sbr.rel target = $region3
    $region8: #{pointgencon_forward.6} parent=1 // loop_exit
      _
    %471 = vsyncpa [#allocation3], 1
    %s472 = scalar_lea.sflag [#allocation3], 1
    %473 = vsyncpa %s472, 1
    %474 = vsyncpa [#allocation6], 1
    %475 = vsyncpa [#allocation9], 1
    %476 = vsyncpa [#allocation4], 1
    %s477 = scalar_lea.sflag [#allocation4], 1
    %478 = vsyncpa %s477, 1
    %479 = vsyncpa [#allocation12], 1
    %s480 = scalar_lea.sflag [#allocation12], 1
    %481 = vsyncpa %s480, 1

</llo_original>
